<compile_context>
chip_gen: v5e
topology: v5e:2x2
jax: 0.10.0
libtpu: 0.0.40
codegen_flags: <defaults>
</compile_context>

<pallas_src>
import jax
import jax.numpy as jnp
from jax.experimental import pallas as pl
from jax.experimental.pallas import tpu as pltpu

BN_EPS = 1e-5
K_D_2 = {1: [10], 2: [6, 5], 3: [4, 4, 4]}


def _fold_dx_into_weights(w, wi):
    """Fold the horizontal (dx) conv taps into a block-Toeplitz matrix (host side).

    w: (kh, kw, cin, cout)  ->  (kh, wi*cin, wo*cout) with
    mat[dy, xi*cin+ci, xo*cout+co] = w[dy, xi-xo, ci, co] if 0 <= xi-xo < kw else 0,
    so that  conv_VALID(x, w)[b, yo, xo, co] = sum_dy (x[b, yo+dy, :, :].flat @ mat[dy]).
    """
    kh, kw, cin, cout = w.shape
    wo = wi - kw + 1
    mat = jnp.zeros((kh, wi, cin, wo, cout), w.dtype)
    for xo in range(wo):
        mat = mat.at[:, xo:xo + kw, :, xo, :].set(w)
    return mat.reshape(kh, wi * cin, wo * cout)


def make_psd_spatial_kernel(layer_cfgs, batch_block):
    """layer_cfgs: list of static dicts with kh, has_bias, has_bn."""
    n_layer = len(layer_cfgs)

    def kernel(*refs):
        x_ref = refs[0]
        o_ref = refs[-1]
        pr = refs[1:-1]

        # (Bblk, Hi, Wi*cin0) with the x*channel axis flattened on lanes (cin0 = 1).
        h = x_ref[0].astype(jnp.float32)

        i = 0
        for li, cfg in enumerate(layer_cfgs):
            kh = cfg["kh"]
            wmat_ref = pr[i]; i += 1              # (kh, Wi*cin, Wo*cout) bf16
            b = None
            if cfg["has_bias"]:
                b = pr[i][...]; i += 1            # (1, Wo*cout) f32, host-tiled over xo
            s = t = None
            if cfg["has_bn"]:
                s = pr[i][...]; i += 1            # (1, Wo*cout) f32 folded BN scale
                t = pr[i][...]; i += 1            # (1, Wo*cout) f32 folded BN shift

            Bb, Hi, K = h.shape                   # K = Wi*cin
            Ho = Hi - kh + 1

            # Single bf16 cast per layer; f32 accumulation on the MXU.
            hb = h.astype(jnp.bfloat16)
            acc = None
            for dy in range(kh):                  # kh deep-K matmuls, batch folded into M
                lhs = hb[:, dy:dy + Ho, :].reshape(Bb * Ho, K)
                p = jnp.dot(lhs, wmat_ref[dy], preferred_element_type=jnp.float32)
                acc = p if acc is None else acc + p      # (Bb*Ho, Wo*cout)

            if b is not None:                     # conv bias (only when batch_norm=True)
                acc = acc + b
            acc = jnp.maximum(acc, 0.0)           # ReLU
            # TODO(synk): train-mode Dropout(0.2) and batch-statistic BatchNorm are not
            #             implemented; eval semantics (dropout=identity, running stats).
            if s is not None:                     # eval-mode BatchNorm2d (after ReLU)
                acc = acc * s + t

            if li == n_layer - 1:
                # Lane-dense store: (Bblk*Hc, Wc*cout) slab, no minor-dim relayout.
                o_ref[0] = acc.astype(o_ref.dtype)
            else:
                # (xo, cout) stays flattened on the lane axis for the next layer.
                h = acc.reshape(Bb, Ho, acc.shape[-1])

    return kernel


def psd_spatial_block_forward(x_nchw, layers, *, batch_block=None):
    """x_nchw: (B, 1, H, W) float32; layers: list of param dicts from init_params."""
    B, c0, H, W = x_nchw.shape
    assert c0 == 1, "PSDSpatialBlock expects a single input channel"

    if batch_block is None:
        # Amortize per-grid-step overhead while keeping >= 2 grid steps so the
        # ("parallel",) batch axis can shard across both v7x TensorCores.
        batch_block = max(1, min(8, B // 2))
    num_blocks = pl.cdiv(B, batch_block)
    b_pad = num_blocks * batch_block

    # Drop the size-1 channel (layout glue outside the kernel); W sits on the lane axis.
    x3 = x_nchw.reshape(B, H, W)
    if b_pad != B:
        x3 = jnp.pad(x3, ((0, b_pad - B), (0, 0), (0, 0)))
    x_blk = x3.reshape(num_blocks, batch_block, H, W)

    cfgs = []
    args = [x_blk]
    in_specs = [pl.BlockSpec((1, batch_block, H, W), lambda b: (b, 0, 0, 0))]

    Hc, Wc, cc = H, W, c0
    for layer in layers:
        kh, kw, cin, cout = layer["w"].shape
        assert cin == cc, "layer channel chaining mismatch"
        Ho, Wo = Hc - kh + 1, Wc - kw + 1
        assert Ho >= 1 and Wo >= 1, "input too small for this kernel_size config"

        cfgs.append(dict(kh=kh, has_bias=("b" in layer), has_bn=("scale" in layer)))

        # Host-folded block-Toeplitz weights, streamed as bf16 (f32 accumulate in-kernel).
        wmat = _fold_dx_into_weights(layer["w"], Wc).astype(jnp.bfloat16)
        args.append(wmat)
        in_specs.append(pl.BlockSpec(wmat.shape, lambda b: (0, 0, 0)))

        if "b" in layer:                                    # tile per-channel -> (xo, cout) lanes
            args.append(jnp.tile(layer["b"], (1, Wo)))
            in_specs.append(pl.BlockSpec((1, Wo * cout), lambda b: (0, 0)))
        if "scale" in layer:
            args.append(jnp.tile(layer["scale"], (1, Wo)))
            in_specs.append(pl.BlockSpec((1, Wo * cout), lambda b: (0, 0)))
            args.append(jnp.tile(layer["shift"], (1, Wo)))
            in_specs.append(pl.BlockSpec((1, Wo * cout), lambda b: (0, 0)))

        Hc, Wc, cc = Ho, Wo, cout

    out = pl.pallas_call(
        make_psd_spatial_kernel(cfgs, batch_block),
        out_shape=jax.ShapeDtypeStruct((num_blocks, batch_block * Hc, Wc * cc),
                                       jnp.float32),
        grid=(num_blocks,),
        in_specs=in_specs,
        out_specs=pl.BlockSpec((1, batch_block * Hc, Wc * cc), lambda b: (b, 0, 0)),
        compiler_params=pltpu.CompilerParams(
            dimension_semantics=("parallel",),          # v7x: shard batch blocks over 2 TCs
            vmem_limit_bytes=32 << 20),
    )(*args)

    out = out.reshape(b_pad, Hc, Wc, cc)[:B]            # layout glue back to NCHW
    return jnp.transpose(out, (0, 3, 1, 2))


def init_params(key, kernel_size, batch_norm=False):
    n_layer = len(kernel_size)
    out_ch = [32 * (i + 1) for i in range(n_layer)]
    in_ch = [1 if i == 0 else 32 * i for i in range(n_layer)]
    keys = jax.random.split(key, 6 * n_layer)
    layers = []
    for i in range(n_layer):
        kh, kw = kernel_size[i], K_D_2[n_layer][i]
        cin, cout = in_ch[i], out_ch[i]
        k0, k1, k2, k3, k4, k5 = keys[6 * i: 6 * i + 6]
        fan_in = cin * kh * kw
        w = jax.random.normal(k0, (kh, kw, cin, cout), jnp.float32) / jnp.sqrt(fan_in)
        layer = {"w": w}
        if batch_norm:
            layer["b"] = 0.05 * jax.random.normal(k1, (1, cout), jnp.float32)
            gamma = 1.0 + 0.1 * jax.random.normal(k2, (1, cout), jnp.float32)
            beta = 0.1 * jax.random.normal(k3, (1, cout), jnp.float32)
            mean = 0.1 * jax.random.normal(k4, (1, cout), jnp.float32)
            var = jnp.abs(1.0 + 0.1 * jax.random.normal(k5, (1, cout), jnp.float32))
            scale = gamma * jax.lax.rsqrt(var + BN_EPS)   # eval-mode BN folded host-side
            layer["scale"] = scale
            layer["shift"] = beta - mean * scale
        layers.append(layer)
    return layers


def reference_forward(x_nchw, layers):
    """Pure-JAX reference (f32 math, using the same bf16-rounded weights the kernel sees)."""
    h = jnp.transpose(x_nchw, (0, 2, 3, 1))
    for layer in layers:
        w = layer["w"].astype(jnp.bfloat16).astype(jnp.float32)
        h = jax.lax.conv_general_dilated(
            h, w, window_strides=(1, 1), padding="VALID",
            dimension_numbers=("NHWC", "HWIO", "NHWC"),
            precision=jax.lax.Precision.HIGHEST)
        if "b" in layer:
            h = h + layer["b"]
        h = jnp.maximum(h, 0.0)
        if "scale" in layer:
            h = h * layer["scale"] + layer["shift"]
    return jnp.transpose(h, (0, 3, 1, 2))


if __name__ == "__main__":
    kernel_size = [3, 3]          # n_layer=2 -> conv kernels (3,6), (3,5); channels 1->32->64
    H, W = 16, 24
    key = jax.random.PRNGKey(0)
    kx, kp = jax.random.split(key)

    # B=2 (batch_block=1, 2 grid steps) and B=5 (batch_block=2, padding path exercised).
    for B in (2, 5):
        x = jax.random.normal(jax.random.fold_in(kx, B), (B, 1, H, W), jnp.float32)
        for batch_norm in (False, True):   # default config, and the bias+BatchNorm config
            layers = init_params(kp, kernel_size, batch_norm=batch_norm)
            out = jax.block_until_ready(psd_spatial_block_forward(x, layers))
            ref = reference_forward(x, layers)
            assert out.shape == ref.shape == (B, 64, H - 4, W - 9), out.shape
            max_err = float(jnp.max(jnp.abs(out - ref)))
            assert jnp.allclose(out, ref, atol=2e-2, rtol=2e-2), (B, batch_norm, max_err)

    print("KERNEL_OK")
</pallas_src>

<mosaic_0001>
module attributes {stable_mosaic.version = 11 : i64} {
  func.func @kernel(%arg0: i32, %arg1: memref<1x1x16x24xf32, #tpu.memory_space<vmem>>, %arg2: memref<3x24x608xbf16, #tpu.memory_space<vmem>>, %arg3: memref<3x608x960xbf16, #tpu.memory_space<vmem>>, %arg4: memref<1x12x960xf32, #tpu.memory_space<vmem>>) attributes {dimension_semantics = [#tpu.dimension_semantics<parallel>], iteration_bounds = array<i64: 2>, scalar_prefetch = 0 : i64, scratch_operands = 0 : i64, tpu.core_type = #tpu.core_type<tc>, window_params = [{transform_indices = @transform_0, window_bounds = array<i64: 1, 1, 16, 24>}, {pipeline_mode = #tpu.pipeline_mode<synchronous>, transform_indices = @transform_1, window_bounds = array<i64: 3, 24, 608>}, {pipeline_mode = #tpu.pipeline_mode<synchronous>, transform_indices = @transform_2, window_bounds = array<i64: 3, 608, 960>}, {transform_indices = @transform_3, window_bounds = array<i64: 1, 12, 960>}]} {
    %c0 = arith.constant 0 : index
    %c0_0 = arith.constant 0 : index
    %c0_1 = arith.constant 0 : index
    %c0_2 = arith.constant 0 : index
    %0 = vector.load %arg1[%c0, %c0_0, %c0_1, %c0_2] : memref<1x1x16x24xf32, #tpu.memory_space<vmem>>, vector<1x1x16x24xf32>
    %1 = vector.shape_cast %0 : vector<1x1x16x24xf32> to vector<1x16x24xf32>
    %2 = arith.truncf %1 : vector<1x16x24xf32> to vector<1x16x24xbf16>
    %3 = vector.extract_strided_slice %2 {offsets = [0, 0, 0], sizes = [1, 14, 24], strides = [1, 1, 1]} : vector<1x16x24xbf16> to vector<1x14x24xbf16>
    %4 = vector.shape_cast %3 : vector<1x14x24xbf16> to vector<14x24xbf16>
    %c0_3 = arith.constant 0 : index
    %c0_4 = arith.constant 0 : index
    %c0_5 = arith.constant 0 : index
    %5 = vector.load %arg2[%c0_3, %c0_4, %c0_5] : memref<3x24x608xbf16, #tpu.memory_space<vmem>>, vector<1x24x608xbf16>
    %6 = vector.shape_cast %5 : vector<1x24x608xbf16> to vector<24x608xbf16>
    %cst = arith.constant dense<0.000000e+00> : vector<14x608xf32>
    %7 = tpu.matmul %4, %6, %cst {dimension_numbers = #tpu.dot_dimension_numbers<[1], [0], [0], [1], [0, 0, 1, 1], [], []>} : vector<14x24xbf16>, vector<24x608xbf16>, vector<14x608xf32> -> vector<14x608xf32>
    %8 = vector.extract_strided_slice %2 {offsets = [0, 1, 0], sizes = [1, 14, 24], strides = [1, 1, 1]} : vector<1x16x24xbf16> to vector<1x14x24xbf16>
    %9 = vector.shape_cast %8 : vector<1x14x24xbf16> to vector<14x24xbf16>
    %c1 = arith.constant 1 : index
    %c0_6 = arith.constant 0 : index
    %c0_7 = arith.constant 0 : index
    %10 = vector.load %arg2[%c1, %c0_6, %c0_7] : memref<3x24x608xbf16, #tpu.memory_space<vmem>>, vector<1x24x608xbf16>
    %11 = vector.shape_cast %10 : vector<1x24x608xbf16> to vector<24x608xbf16>
    %cst_8 = arith.constant dense<0.000000e+00> : vector<14x608xf32>
    %12 = tpu.matmul %9, %11, %cst_8 {dimension_numbers = #tpu.dot_dimension_numbers<[1], [0], [0], [1], [0, 0, 1, 1], [], []>} : vector<14x24xbf16>, vector<24x608xbf16>, vector<14x608xf32> -> vector<14x608xf32>
    %13 = arith.addf %7, %12 : vector<14x608xf32>
    %14 = vector.extract_strided_slice %2 {offsets = [0, 2, 0], sizes = [1, 14, 24], strides = [1, 1, 1]} : vector<1x16x24xbf16> to vector<1x14x24xbf16>
    %15 = vector.shape_cast %14 : vector<1x14x24xbf16> to vector<14x24xbf16>
    %c2 = arith.constant 2 : index
    %c0_9 = arith.constant 0 : index
    %c0_10 = arith.constant 0 : index
    %16 = vector.load %arg2[%c2, %c0_9, %c0_10] : memref<3x24x608xbf16, #tpu.memory_space<vmem>>, vector<1x24x608xbf16>
    %17 = vector.shape_cast %16 : vector<1x24x608xbf16> to vector<24x608xbf16>
    %cst_11 = arith.constant dense<0.000000e+00> : vector<14x608xf32>
    %18 = tpu.matmul %15, %17, %cst_11 {dimension_numbers = #tpu.dot_dimension_numbers<[1], [0], [0], [1], [0, 0, 1, 1], [], []>} : vector<14x24xbf16>, vector<24x608xbf16>, vector<14x608xf32> -> vector<14x608xf32>
    %19 = arith.addf %13, %18 : vector<14x608xf32>
    %cst_12 = arith.constant 0.000000e+00 : f32
    %20 = vector.broadcast %cst_12 : f32 to vector<14x608xf32>
    %21 = arith.maximumf %19, %20 : vector<14x608xf32>
    %22 = vector.shape_cast %21 : vector<14x608xf32> to vector<1x14x608xf32>
    %23 = arith.truncf %22 : vector<1x14x608xf32> to vector<1x14x608xbf16>
    %24 = vector.extract_strided_slice %23 {offsets = [0, 0, 0], sizes = [1, 12, 608], strides = [1, 1, 1]} : vector<1x14x608xbf16> to vector<1x12x608xbf16>
    %25 = vector.shape_cast %24 : vector<1x12x608xbf16> to vector<12x608xbf16>
    %c0_13 = arith.constant 0 : index
    %c0_14 = arith.constant 0 : index
    %c0_15 = arith.constant 0 : index
    %26 = vector.load %arg3[%c0_13, %c0_14, %c0_15] : memref<3x608x960xbf16, #tpu.memory_space<vmem>>, vector<1x608x960xbf16>
    %27 = vector.shape_cast %26 : vector<1x608x960xbf16> to vector<608x960xbf16>
    %cst_16 = arith.constant dense<0.000000e+00> : vector<12x960xf32>
    %28 = tpu.matmul %25, %27, %cst_16 {dimension_numbers = #tpu.dot_dimension_numbers<[1], [0], [0], [1], [0, 0, 1, 1], [], []>} : vector<12x608xbf16>, vector<608x960xbf16>, vector<12x960xf32> -> vector<12x960xf32>
    %29 = vector.extract_strided_slice %23 {offsets = [0, 1, 0], sizes = [1, 12, 608], strides = [1, 1, 1]} : vector<1x14x608xbf16> to vector<1x12x608xbf16>
    %30 = vector.shape_cast %29 : vector<1x12x608xbf16> to vector<12x608xbf16>
    %c1_17 = arith.constant 1 : index
    %c0_18 = arith.constant 0 : index
    %c0_19 = arith.constant 0 : index
    %31 = vector.load %arg3[%c1_17, %c0_18, %c0_19] : memref<3x608x960xbf16, #tpu.memory_space<vmem>>, vector<1x608x960xbf16>
    %32 = vector.shape_cast %31 : vector<1x608x960xbf16> to vector<608x960xbf16>
    %cst_20 = arith.constant dense<0.000000e+00> : vector<12x960xf32>
    %33 = tpu.matmul %30, %32, %cst_20 {dimension_numbers = #tpu.dot_dimension_numbers<[1], [0], [0], [1], [0, 0, 1, 1], [], []>} : vector<12x608xbf16>, vector<608x960xbf16>, vector<12x960xf32> -> vector<12x960xf32>
    %34 = arith.addf %28, %33 : vector<12x960xf32>
    %35 = vector.extract_strided_slice %23 {offsets = [0, 2, 0], sizes = [1, 12, 608], strides = [1, 1, 1]} : vector<1x14x608xbf16> to vector<1x12x608xbf16>
    %36 = vector.shape_cast %35 : vector<1x12x608xbf16> to vector<12x608xbf16>
    %c2_21 = arith.constant 2 : index
    %c0_22 = arith.constant 0 : index
    %c0_23 = arith.constant 0 : index
    %37 = vector.load %arg3[%c2_21, %c0_22, %c0_23] : memref<3x608x960xbf16, #tpu.memory_space<vmem>>, vector<1x608x960xbf16>
    %38 = vector.shape_cast %37 : vector<1x608x960xbf16> to vector<608x960xbf16>
    %cst_24 = arith.constant dense<0.000000e+00> : vector<12x960xf32>
    %39 = tpu.matmul %36, %38, %cst_24 {dimension_numbers = #tpu.dot_dimension_numbers<[1], [0], [0], [1], [0, 0, 1, 1], [], []>} : vector<12x608xbf16>, vector<608x960xbf16>, vector<12x960xf32> -> vector<12x960xf32>
    %40 = arith.addf %34, %39 : vector<12x960xf32>
    %cst_25 = arith.constant 0.000000e+00 : f32
    %41 = vector.broadcast %cst_25 : f32 to vector<12x960xf32>
    %42 = arith.maximumf %40, %41 : vector<12x960xf32>
    %c0_26 = arith.constant 0 : index
    %c0_27 = arith.constant 0 : index
    %c0_28 = arith.constant 0 : index
    %43 = vector.load %arg4[%c0_26, %c0_27, %c0_28] : memref<1x12x960xf32, #tpu.memory_space<vmem>>, vector<1x12x960xf32>
    %44 = vector.shape_cast %43 : vector<1x12x960xf32> to vector<12x960xf32>
    %45 = vector.shape_cast %42 : vector<12x960xf32> to vector<1x12x960xf32>
    tpu.vector_store %arg4[%c0_26, %c0_27, %c0_28], %45 {strides = array<i32>} : memref<1x12x960xf32, #tpu.memory_space<vmem>>, vector<1x12x960xf32>,
    return
  }
  func.func @transform_0(%arg0: i32) -> (i32, i32, i32, i32) {
    %c0_i32 = arith.constant 0 : i32
    %c0_i32_0 = arith.constant 0 : i32
    %c0_i32_1 = arith.constant 0 : i32
    %c0_i32_2 = arith.constant 0 : i32
    return %arg0, %c0_i32, %c0_i32_0, %c0_i32_1 : i32, i32, i32, i32
  }
  func.func @transform_1(%arg0: i32) -> (i32, i32, i32) {
    %c0_i32 = arith.constant 0 : i32
    %c0_i32_0 = arith.constant 0 : i32
    %c0_i32_1 = arith.constant 0 : i32
    %c0_i32_2 = arith.constant 0 : i32
    return %c0_i32, %c0_i32_0, %c0_i32_1 : i32, i32, i32
  }
  func.func @transform_2(%arg0: i32) -> (i32, i32, i32) {
    %c0_i32 = arith.constant 0 : i32
    %c0_i32_0 = arith.constant 0 : i32
    %c0_i32_1 = arith.constant 0 : i32
    %c0_i32_2 = arith.constant 0 : i32
    return %c0_i32, %c0_i32_0, %c0_i32_1 : i32, i32, i32
  }
  func.func @transform_3(%arg0: i32) -> (i32, i32, i32) {
    %c0_i32 = arith.constant 0 : i32
    %c0_i32_0 = arith.constant 0 : i32
    %c0_i32_1 = arith.constant 0 : i32
    return %arg0, %c0_i32, %c0_i32_0 : i32, i32, i32
  }
}

</mosaic_0001>

<llo_original>
// kernel: tpu_custom_call.1
$region0: #{tpu_custom_call.1}
  #allocation0 [shape = 'u32[]', space=smem, size = 0x4, offset = 0x4, fixed_abs, tag = 'smem constant byte address 0x4 - core index']
  #allocation1 [shape = 'u32[72,128]{1,0:T(1,128)}', space=vmem, size = 0x9000, scoped, tag = 'internal scratch']
  %s0 = inlined_call_operand.vmem [shape: f32[2,1,16,24], index: 0, kind: input, shape index: {}]
  %s1 = inlined_call_operand.vmem [shape: bf16[3,24,608], index: 1, kind: input, shape index: {}]
  %s2 = inlined_call_operand.vmem [shape: bf16[3,608,960], index: 2, kind: input, shape index: {}]
  %s3 = inlined_call_operand.vmem [shape: f32[2,12,960], index: 3, kind: output, shape index: {}]
  %s4 = sld [smem:[#allocation0]]
  $region45: #{tpu_custom_call.1} parent=0
    _
  %s6 = ssub.s32 1, %s4
  %s7 = scalar_select 0, %s6, %s4
  loop: start=0, step=1, limit=4
  $region2: #{tpu_custom_call.1} parent=0 // loop_pre_header
    _
  $region3: #{tpu_custom_call.1} parent=0 // loop_header
    %s9 = sphi 0, %s13
    %p10 = scmp.ge.s32.totalorder %s9, 4
    %s19 = sphi 0, %s21
    %s22 = sphi 0, %s19
    %s23 = sphi 0, %s22
    %s39 = sphi 0, %s23
    %s43 = sphi 0, %s43
    %s45 = sphi 0, %s43
    %s46 = sphi 0, %s45
    %s60 = sphi 0, %s46
    %s64 = sphi 0, %s64
    %s66 = sphi 0, %s64
    %s67 = sphi 0, %s66
    %s81 = sphi 0, %s67
    %s87 = sphi 0, %s89
    %s90 = sphi 0, %s87
    %s91 = sphi 0, %s90
    %s107 = sphi 0, %s91
  $region4: #{tpu_custom_call.1} parent=0 // loop_header_branch
    %12 = sbr.rel (%p10) target = $region8
  $region5: #{tpu_custom_call.1} parent=0 // loop_body
    %s14 = ssub.s32 %s9, 1
    %s15 = ssub.s32 %s9, 2
    %s16 = sadd.s32 %s9, 1
    %s17 = ssub.s32 %s9, %s16
    %p18 = scmp.eq.s32.totalorder %s17, 0
    %s20 = sadd.s32 %s19, 1
    %s21 = scalar_select %p18, %s19, %s20
    %p24 = pneg %p18
    %p25 = scmp.eq.s32.totalorder %s9, 1
    %p26 = por %p24, %p25
    %p27 = scmp.ne.s32.totalorder %s19, %s22
    %p28 = scmp.eq.s32.totalorder %s9, 0
    %p29 = por %p27, %p28
    %p30 = scmp.ne.s32.totalorder %s19, %s22
    %p31 = scmp.eq.s32.totalorder %s14, 1
    %p32 = por %p30, %p31
    %p33 = scmp.ne.s32.totalorder %s22, %s23
    %p34 = scmp.eq.s32.totalorder %s14, 0
    %p35 = por %p33, %p34
    %p36 = scmp.ne.s32.totalorder %s22, %s23
    %p37 = scmp.eq.s32.totalorder %s15, 1
    %p38 = por %p36, %p37
    %p40 = scmp.ne.s32.totalorder %s23, %s39
    %p41 = scmp.eq.s32.totalorder %s15, 0
    %p42 = por %p40, %p41
    %s44 = sadd.s32 %s43, 1
    %p47 = scmp.eq.s32.totalorder %s9, 1
    %p48 = scmp.ne.s32.totalorder %s43, %s45
    %p49 = scmp.eq.s32.totalorder %s9, 0
    %p50 = por %p48, %p49
    %p51 = scmp.ne.s32.totalorder %s43, %s45
    %p52 = scmp.eq.s32.totalorder %s14, 1
    %p53 = por %p51, %p52
    %p54 = scmp.ne.s32.totalorder %s45, %s46
    %p55 = scmp.eq.s32.totalorder %s14, 0
    %p56 = por %p54, %p55
    %p57 = scmp.ne.s32.totalorder %s45, %s46
    %p58 = scmp.eq.s32.totalorder %s15, 1
    %p59 = por %p57, %p58
    %p61 = scmp.ne.s32.totalorder %s46, %s60
    %p62 = scmp.eq.s32.totalorder %s15, 0
    %p63 = por %p61, %p62
    %s65 = sadd.s32 %s64, 1
    %p68 = scmp.eq.s32.totalorder %s9, 1
    %p69 = scmp.ne.s32.totalorder %s64, %s66
    %p70 = scmp.eq.s32.totalorder %s9, 0
    %p71 = por %p69, %p70
    %p72 = scmp.ne.s32.totalorder %s64, %s66
    %p73 = scmp.eq.s32.totalorder %s14, 1
    %p74 = por %p72, %p73
    %p75 = scmp.ne.s32.totalorder %s66, %s67
    %p76 = scmp.eq.s32.totalorder %s14, 0
    %p77 = por %p75, %p76
    %p78 = scmp.ne.s32.totalorder %s66, %s67
    %p79 = scmp.eq.s32.totalorder %s15, 1
    %p80 = por %p78, %p79
    %p82 = scmp.ne.s32.totalorder %s67, %s81
    %p83 = scmp.eq.s32.totalorder %s15, 0
    %p84 = por %p82, %p83
    %s85 = ssub.s32 %s9, %s16
    %p86 = scmp.eq.s32.totalorder %s85, 0
    %s88 = sadd.s32 %s87, 1
    %s89 = scalar_select %p86, %s87, %s88
    %p92 = pneg %p86
    %p93 = scmp.eq.s32.totalorder %s9, 1
    %p94 = por %p92, %p93
    %p95 = scmp.ne.s32.totalorder %s87, %s90
    %p96 = scmp.eq.s32.totalorder %s9, 0
    %p97 = por %p95, %p96
    %p98 = scmp.ne.s32.totalorder %s87, %s90
    %p99 = scmp.eq.s32.totalorder %s14, 1
    %p100 = por %p98, %p99
    %p101 = scmp.ne.s32.totalorder %s90, %s91
    %p102 = scmp.eq.s32.totalorder %s14, 0
    %p103 = por %p101, %p102
    %p104 = scmp.ne.s32.totalorder %s90, %s91
    %p105 = scmp.eq.s32.totalorder %s15, 1
    %p106 = por %p104, %p105
    %p108 = scmp.ne.s32.totalorder %s91, %s107
    %p109 = scmp.eq.s32.totalorder %s15, 0
    %p110 = por %p108, %p109
    %p111 = scmp.le.s32.totalorder 1, %s9
    %p112 = scmp.lt.s32.totalorder %s9, 3
    %p113 = pnand %p111, %p112
    %p114 = pneg %p113
    // Predicated region
    $region9: #{tpu_custom_call.1} parent=5 // pred_check
      _
    $region10: #{tpu_custom_call.1} parent=5 // pred_check_branch
      %116 = sbr.rel (%p113) target = $region12
    $region11: #{tpu_custom_call.1} parent=5 // pred_region
      %s117 = ssub.s32 %s9, 1
      // Predicated region
      $region13: #{tpu_custom_call.1} parent=11 // pred_check
        %p118 = pneg %p56
      $region14: #{tpu_custom_call.1} parent=11 // pred_check_branch
        %120 = sbr.rel (%p118) target = $region16
      $region15: #{tpu_custom_call.1} parent=11 // pred_region
        _
      $region16: #{tpu_custom_call.1} parent=11 // pred_fallthru
        _
      // Predicated region
      $region17: #{tpu_custom_call.1} parent=11 // pred_check
        %p121 = pneg %p77
      $region18: #{tpu_custom_call.1} parent=11 // pred_check_branch
        %123 = sbr.rel (%p121) target = $region20
      $region19: #{tpu_custom_call.1} parent=11 // pred_region
        _
      $region20: #{tpu_custom_call.1} parent=11 // pred_fallthru
        _
    $region12: #{tpu_custom_call.1} parent=5 // pred_fallthru
      _
    %p124 = scmp.lt.s32.totalorder %s9, 2
    // Predicated region
    $region21: #{tpu_custom_call.1} parent=5 // pred_check
      %p125 = pneg %p124
    $region22: #{tpu_custom_call.1} parent=5 // pred_check_branch
      %127 = sbr.rel (%p125) target = $region24
    $region23: #{tpu_custom_call.1} parent=5 // pred_region
      // Predicated region
      $region25: #{tpu_custom_call.1} parent=23 // pred_check
        %p128 = pneg %p29
      $region26: #{tpu_custom_call.1} parent=23 // pred_check_branch
        %130 = sbr.rel (%p128) target = $region28
      $region27: #{tpu_custom_call.1} parent=23 // pred_region
        %p131 = scmp.lt.s32.totalorder %s9, 1
        %s132 = scalar_select %p131, %s9, 1
        %s133 = smul.addr %s132, 2
        %s134 = smul.addr %s133, 8
        %s135 = scalar_lea.vmem %s0, %s134
      $region28: #{tpu_custom_call.1} parent=23 // pred_fallthru
        _
    $region24: #{tpu_custom_call.1} parent=5 // pred_fallthru
      _
    %p136 = scmp.le.s32.totalorder 1, %s9
    %p137 = scmp.lt.s32.totalorder %s9, 3
    %p138 = pnand %p136, %p137
    %p139 = pneg %p138
    // Predicated region
    $region29: #{tpu_custom_call.1} parent=5 // pred_check
      _
    $region30: #{tpu_custom_call.1} parent=5 // pred_check_branch
      %141 = sbr.rel (%p138) target = $region32
    $region31: #{tpu_custom_call.1} parent=5 // pred_region
      %s142 = ssub.s32 %s9, 1
      %p143 = scmp.lt.s32.totalorder %s14, 1
      %s144 = scalar_select %p143, %s14, 1
      %s145 = smul.addr %s144, 2
      %s146 = smul.addr %s145, 8
      %s147 = scalar_lea.vmem %s0, %s146
      %p148 = pneg %p35
      %p149 = pneg %p32
      %p150 = pneg %p56
      %p151 = pneg %p53
      %p152 = pneg %p77
      %p153 = pneg %p74
      %p154 = pneg %p103
      %p155 = pneg %p100
      %p156 = scmp.lt.s32.totalorder %s14, 1
      %s157 = scalar_select %p156, %s14, 1
      %s158 = smul.addr %s157, 16
      %s159 = smul.addr %s158, 8
      %s160 = scalar_lea.vmem %s3, %s159
      %p161 = scmp.lt.s32.totalorder %s14, 1
      %s162 = scalar_select %p161, %s14, 1
      %s163 = smul.addr %s162, 2
      %s164 = smul.addr %s163, 8
      %s165 = scalar_lea.vmem %s0, %s164
      %p166 = scmp.lt.s32.totalorder %s14, 1
      %s167 = scalar_select %p166, %s14, 1
      %s168 = smul.addr %s167, 16
      %s169 = smul.addr %s168, 8
      %s170 = scalar_lea.vmem %s3, %s169
      %v172 = vld [vmem:[%s165] sm:$0xff]
      %v173 = vld [vmem:[%s165 + $0x8] sm:$0xff]
      %v174 = vpack.c.bf16 %v172, %v172
      %v175 = vpack.c.bf16 %v173, %v173
      %v176 = vld [vmem:[%s1] sm:$0xff]
      %v177 = vld [vmem:[%s1 + $0x8] sm:$0xff]
      %v178 = vld [vmem:[%s1 + $0x10] sm:$0xf]
      %v179 = vld [vmem:[%s1 + $0x14] sm:$0xff]
      %v180 = vld [vmem:[%s1 + $0x1c] sm:$0xff]
      %v181 = vld [vmem:[%s1 + $0x24] sm:$0xf]
      %v182 = vld [vmem:[%s1 + $0x28] sm:$0xff]
      %v183 = vld [vmem:[%s1 + $0x30] sm:$0xff]
      %v184 = vld [vmem:[%s1 + $0x38] sm:$0xf]
      %s185 = scalar_lea.vmem %s1, 60
      %v186 = vld [vmem:[%s185] sm:$0xff]
      %v187 = vld [vmem:[%s185 + $0x8] sm:$0xff]
      %v188 = vld [vmem:[%s185 + $0x10] sm:$0xf]
      %v189 = vld [vmem:[%s185 + $0x14] sm:$0xff]
      %v190 = vld [vmem:[%s185 + $0x1c] sm:$0xff]
      %v191 = vld [vmem:[%s185 + $0x24] sm:$0xf]
      %v192 = vld [vmem:[%s185 + $0x28] sm:$0xff]
      %v193 = vld [vmem:[%s185 + $0x30] sm:$0xff]
      %v194 = vld [vmem:[%s185 + $0x38] sm:$0xf]
      %v197 = vunpack.c.l.b16 %v174
      %v198 = vunpack.c.l.b16 %v175
      %v199 = vpack.c.b16 %v198, %v197
      %v201 = vshrl.u32 %v199, 16
      %v203 = vshll.u32 %v199, 16
      %v205 = vrot.slane %v203, 1
      %v206 = vor.u32 %v201, %v205
      %v216 = vunpack.c.l.b16 %v186
      %v217 = vunpack.c.h.b16 %v186
      %v218 = vunpack.c.l.b16 %v187
      %v219 = vunpack.c.h.b16 %v187
      %v220 = vunpack.c.l.b16 %v188
      %v221 = vunpack.c.l.b16 %v189
      %v222 = vunpack.c.h.b16 %v189
      %v223 = vunpack.c.l.b16 %v190
      %v224 = vunpack.c.h.b16 %v190
      %v225 = vunpack.c.l.b16 %v191
      %v226 = vunpack.c.l.b16 %v192
      %v227 = vunpack.c.h.b16 %v192
      %v228 = vunpack.c.l.b16 %v193
      %v229 = vunpack.c.h.b16 %v193
      %v230 = vunpack.c.l.b16 %v194
      %v231 = vpack.c.b16 %v221, %v216
      %v232 = vpack.c.b16 %v222, %v217
      %v233 = vpack.c.b16 %v223, %v218
      %v234 = vpack.c.b16 %v224, %v219
      %v235 = vpack.c.b16 %v225, %v220
      %v236 = vpack.c.b16 %v226, %v226
      %v237 = vpack.c.b16 %v227, %v227
      %v238 = vpack.c.b16 %v228, %v228
      %v239 = vpack.c.b16 %v229, %v229
      %v240 = vpack.c.b16 %v230, %v230
      %vm246 = vcmask 195584
      %v248 = vsel %vm246, %v206, 0
      %vm250 = vcmask 1043456
      %v252 = vsel %vm250, %v236, 0
      %v255 = vsel %vm250, %v237, 0
      %v258 = vsel %vm250, %v238, 0
      %v261 = vsel %vm250, %v239, 0
      %v264 = vsel %vm250, %v240, 0
      %266 = vmatpush.bf16.msra.mxu0 0
      %267 = vmatpush.bf16.msra.mxu0 0
      %268 = vmatpush.bf16.msra.mxu0 0
      %269 = vmatpush.bf16.msra.mxu0 0
      %270 = vmatpush.bf16.msra.mxu0 0
      %271 = vmatpush.bf16.msra.mxu0 0
      %272 = vmatpush.bf16.msra.mxu0 %v252
      %273 = vmatpush.bf16.msra.mxu0 %v231
      %274 = vmatmul.bf16.gmra.mxu0 %v248
      %v275 = vpop.f32.mrf.mxu0
      %v276 = vadd.f32 0.0, %v275
      %v277 = vpop.f32.mrf.mxu0
      %v278 = vadd.f32 0.0, %v277
      %279 = vdwg.mxu0
      %280 = vmatpush.bf16.msra.mxu0 0
      %281 = vmatpush.bf16.msra.mxu0 0
      %282 = vmatpush.bf16.msra.mxu0 0
      %283 = vmatpush.bf16.msra.mxu0 0
      %284 = vmatpush.bf16.msra.mxu0 0
      %285 = vmatpush.bf16.msra.mxu0 0
      %286 = vmatpush.bf16.msra.mxu0 %v255
      %287 = vmatpush.bf16.msra.mxu0 %v232
      %288 = vmatmul.bf16.gmra.mxu0 %v248
      %v289 = vpop.f32.mrf.mxu0
      %v290 = vadd.f32 0.0, %v289
      %v291 = vpop.f32.mrf.mxu0
      %v292 = vadd.f32 0.0, %v291
      %293 = vdwg.mxu0
      %294 = vmatpush.bf16.msra.mxu0 0
      %295 = vmatpush.bf16.msra.mxu0 0
      %296 = vmatpush.bf16.msra.mxu0 0
      %297 = vmatpush.bf16.msra.mxu0 0
      %298 = vmatpush.bf16.msra.mxu0 0
      %299 = vmatpush.bf16.msra.mxu0 0
      %300 = vmatpush.bf16.msra.mxu0 %v258
      %301 = vmatpush.bf16.msra.mxu0 %v233
      %302 = vmatmul.bf16.gmra.mxu0 %v248
      %v303 = vpop.f32.mrf.mxu0
      %v304 = vadd.f32 0.0, %v303
      %v305 = vpop.f32.mrf.mxu0
      %v306 = vadd.f32 0.0, %v305
      %307 = vdwg.mxu0
      %308 = vmatpush.bf16.msra.mxu0 0
      %309 = vmatpush.bf16.msra.mxu0 0
      %310 = vmatpush.bf16.msra.mxu0 0
      %311 = vmatpush.bf16.msra.mxu0 0
      %312 = vmatpush.bf16.msra.mxu0 0
      %313 = vmatpush.bf16.msra.mxu0 0
      %314 = vmatpush.bf16.msra.mxu0 %v261
      %315 = vmatpush.bf16.msra.mxu0 %v234
      %316 = vmatmul.bf16.gmra.mxu0 %v248
      %v317 = vpop.f32.mrf.mxu0
      %v318 = vadd.f32 0.0, %v317
      %v319 = vpop.f32.mrf.mxu0
      %v320 = vadd.f32 0.0, %v319
      %321 = vdwg.mxu0
      %322 = vmatpush.bf16.msra.mxu0 0
      %323 = vmatpush.bf16.msra.mxu0 0
      %324 = vmatpush.bf16.msra.mxu0 0
      %325 = vmatpush.bf16.msra.mxu0 0
      %326 = vmatpush.bf16.msra.mxu0 0
      %327 = vmatpush.bf16.msra.mxu0 0
      %328 = vmatpush.bf16.msra.mxu0 %v264
      %329 = vmatpush.bf16.msra.mxu0 %v235
      %330 = vmatmul.bf16.gmra.mxu0 %v248
      %v331 = vpop.f32.mrf.mxu0
      %v332 = vadd.f32 0.0, %v331
      %v333 = vpop.f32.mrf.mxu0
      %v334 = vadd.f32 0.0, %v333
      %335 = vdwg.mxu0
      %v345 = vunpack.c.l.b16 %v176
      %v346 = vunpack.c.h.b16 %v176
      %v347 = vunpack.c.l.b16 %v177
      %v348 = vunpack.c.h.b16 %v177
      %v349 = vunpack.c.l.b16 %v178
      %v350 = vunpack.c.l.b16 %v179
      %v351 = vunpack.c.h.b16 %v179
      %v352 = vunpack.c.l.b16 %v180
      %v353 = vunpack.c.h.b16 %v180
      %v354 = vunpack.c.l.b16 %v181
      %v355 = vunpack.c.l.b16 %v182
      %v356 = vunpack.c.h.b16 %v182
      %v357 = vunpack.c.l.b16 %v183
      %v358 = vunpack.c.h.b16 %v183
      %v359 = vunpack.c.l.b16 %v184
      %v360 = vpack.c.b16 %v350, %v345
      %v361 = vpack.c.b16 %v351, %v346
      %v362 = vpack.c.b16 %v352, %v347
      %v363 = vpack.c.b16 %v353, %v348
      %v364 = vpack.c.b16 %v354, %v349
      %v365 = vpack.c.b16 %v355, %v355
      %v366 = vpack.c.b16 %v356, %v356
      %v367 = vpack.c.b16 %v357, %v357
      %v368 = vpack.c.b16 %v358, %v358
      %v369 = vpack.c.b16 %v359, %v359
      %v375 = vsel %vm246, %v199, 0
      %v378 = vsel %vm250, %v365, 0
      %v381 = vsel %vm250, %v366, 0
      %v384 = vsel %vm250, %v367, 0
      %v387 = vsel %vm250, %v368, 0
      %v390 = vsel %vm250, %v369, 0
      %392 = vmatpush.bf16.msra.mxu0 0
      %393 = vmatpush.bf16.msra.mxu0 0
      %394 = vmatpush.bf16.msra.mxu0 0
      %395 = vmatpush.bf16.msra.mxu0 0
      %396 = vmatpush.bf16.msra.mxu0 0
      %397 = vmatpush.bf16.msra.mxu0 0
      %398 = vmatpush.bf16.msra.mxu0 %v378
      %399 = vmatpush.bf16.msra.mxu0 %v360
      %400 = vmatmul.bf16.gmra.mxu0 %v375
      %v401 = vpop.f32.mrf.mxu0
      %v402 = vadd.f32 %v276, %v401
      %v403 = vpop.f32.mrf.mxu0
      %v404 = vadd.f32 %v278, %v403
      %405 = vdwg.mxu0
      %406 = vmatpush.bf16.msra.mxu0 0
      %407 = vmatpush.bf16.msra.mxu0 0
      %408 = vmatpush.bf16.msra.mxu0 0
      %409 = vmatpush.bf16.msra.mxu0 0
      %410 = vmatpush.bf16.msra.mxu0 0
      %411 = vmatpush.bf16.msra.mxu0 0
      %412 = vmatpush.bf16.msra.mxu0 %v381
      %413 = vmatpush.bf16.msra.mxu0 %v361
      %414 = vmatmul.bf16.gmra.mxu0 %v375
      %v415 = vpop.f32.mrf.mxu0
      %v416 = vadd.f32 %v290, %v415
      %v417 = vpop.f32.mrf.mxu0
      %v418 = vadd.f32 %v292, %v417
      %419 = vdwg.mxu0
      %420 = vmatpush.bf16.msra.mxu0 0
      %421 = vmatpush.bf16.msra.mxu0 0
      %422 = vmatpush.bf16.msra.mxu0 0
      %423 = vmatpush.bf16.msra.mxu0 0
      %424 = vmatpush.bf16.msra.mxu0 0
      %425 = vmatpush.bf16.msra.mxu0 0
      %426 = vmatpush.bf16.msra.mxu0 %v384
      %427 = vmatpush.bf16.msra.mxu0 %v362
      %428 = vmatmul.bf16.gmra.mxu0 %v375
      %v429 = vpop.f32.mrf.mxu0
      %v430 = vadd.f32 %v304, %v429
      %v431 = vpop.f32.mrf.mxu0
      %v432 = vadd.f32 %v306, %v431
      %433 = vdwg.mxu0
      %434 = vmatpush.bf16.msra.mxu0 0
      %435 = vmatpush.bf16.msra.mxu0 0
      %436 = vmatpush.bf16.msra.mxu0 0
      %437 = vmatpush.bf16.msra.mxu0 0
      %438 = vmatpush.bf16.msra.mxu0 0
      %439 = vmatpush.bf16.msra.mxu0 0
      %440 = vmatpush.bf16.msra.mxu0 %v387
      %441 = vmatpush.bf16.msra.mxu0 %v363
      %442 = vmatmul.bf16.gmra.mxu0 %v375
      %v443 = vpop.f32.mrf.mxu0
      %v444 = vadd.f32 %v318, %v443
      %v445 = vpop.f32.mrf.mxu0
      %v446 = vadd.f32 %v320, %v445
      %447 = vdwg.mxu0
      %448 = vmatpush.bf16.msra.mxu0 0
      %449 = vmatpush.bf16.msra.mxu0 0
      %450 = vmatpush.bf16.msra.mxu0 0
      %451 = vmatpush.bf16.msra.mxu0 0
      %452 = vmatpush.bf16.msra.mxu0 0
      %453 = vmatpush.bf16.msra.mxu0 0
      %454 = vmatpush.bf16.msra.mxu0 %v390
      %455 = vmatpush.bf16.msra.mxu0 %v364
      %456 = vmatmul.bf16.gmra.mxu0 %v375
      %v457 = vpop.f32.mrf.mxu0
      %v458 = vadd.f32 %v332, %v457
      %v459 = vpop.f32.mrf.mxu0
      %v460 = vadd.f32 %v334, %v459
      %461 = vdwg.mxu0
      %s462 = scalar_lea.vmem %s1, 120
      %v463 = vld [vmem:[%s462] sm:$0xff]
      %v464 = vld [vmem:[%s462 + $0x8] sm:$0xff]
      %v465 = vld [vmem:[%s462 + $0x10] sm:$0xf]
      %v466 = vld [vmem:[%s462 + $0x14] sm:$0xff]
      %v467 = vld [vmem:[%s462 + $0x1c] sm:$0xff]
      %v468 = vld [vmem:[%s462 + $0x24] sm:$0xf]
      %v469 = vld [vmem:[%s462 + $0x28] sm:$0xff]
      %v470 = vld [vmem:[%s462 + $0x30] sm:$0xff]
      %v471 = vld [vmem:[%s462 + $0x38] sm:$0xf]
      %v472 = vrot.slane %v199, 1
      %v482 = vunpack.c.l.b16 %v463
      %v483 = vunpack.c.h.b16 %v463
      %v484 = vunpack.c.l.b16 %v464
      %v485 = vunpack.c.h.b16 %v464
      %v486 = vunpack.c.l.b16 %v465
      %v487 = vunpack.c.l.b16 %v466
      %v488 = vunpack.c.h.b16 %v466
      %v489 = vunpack.c.l.b16 %v467
      %v490 = vunpack.c.h.b16 %v467
      %v491 = vunpack.c.l.b16 %v468
      %v492 = vunpack.c.l.b16 %v469
      %v493 = vunpack.c.h.b16 %v469
      %v494 = vunpack.c.l.b16 %v470
      %v495 = vunpack.c.h.b16 %v470
      %v496 = vunpack.c.l.b16 %v471
      %v497 = vpack.c.b16 %v487, %v482
      %v498 = vpack.c.b16 %v488, %v483
      %v499 = vpack.c.b16 %v489, %v484
      %v500 = vpack.c.b16 %v490, %v485
      %v501 = vpack.c.b16 %v491, %v486
      %v502 = vpack.c.b16 %v492, %v492
      %v503 = vpack.c.b16 %v493, %v493
      %v504 = vpack.c.b16 %v494, %v494
      %v505 = vpack.c.b16 %v495, %v495
      %v506 = vpack.c.b16 %v496, %v496
      %v513 = vsel %vm246, %v472, 0
      %v516 = vsel %vm250, %v502, 0
      %v519 = vsel %vm250, %v503, 0
      %v522 = vsel %vm250, %v504, 0
      %v525 = vsel %vm250, %v505, 0
      %v528 = vsel %vm250, %v506, 0
      %530 = vmatpush.bf16.msra.mxu0 0
      %531 = vmatpush.bf16.msra.mxu0 0
      %532 = vmatpush.bf16.msra.mxu0 0
      %533 = vmatpush.bf16.msra.mxu0 0
      %534 = vmatpush.bf16.msra.mxu0 0
      %535 = vmatpush.bf16.msra.mxu0 0
      %536 = vmatpush.bf16.msra.mxu0 %v516
      %537 = vmatpush.bf16.msra.mxu0 %v497
      %538 = vmatmul.bf16.gmra.mxu0 %v513
      %v539 = vpop.f32.mrf.mxu0
      %v540 = vadd.f32 0.0, %v539
      %v541 = vpop.f32.mrf.mxu0
      %v542 = vadd.f32 0.0, %v541
      %543 = vdwg.mxu0
      %544 = vmatpush.bf16.msra.mxu0 0
      %545 = vmatpush.bf16.msra.mxu0 0
      %546 = vmatpush.bf16.msra.mxu0 0
      %547 = vmatpush.bf16.msra.mxu0 0
      %548 = vmatpush.bf16.msra.mxu0 0
      %549 = vmatpush.bf16.msra.mxu0 0
      %550 = vmatpush.bf16.msra.mxu0 %v519
      %551 = vmatpush.bf16.msra.mxu0 %v498
      %552 = vmatmul.bf16.gmra.mxu0 %v513
      %v553 = vpop.f32.mrf.mxu0
      %v554 = vadd.f32 0.0, %v553
      %v555 = vpop.f32.mrf.mxu0
      %v556 = vadd.f32 0.0, %v555
      %557 = vdwg.mxu0
      %558 = vmatpush.bf16.msra.mxu0 0
      %559 = vmatpush.bf16.msra.mxu0 0
      %560 = vmatpush.bf16.msra.mxu0 0
      %561 = vmatpush.bf16.msra.mxu0 0
      %562 = vmatpush.bf16.msra.mxu0 0
      %563 = vmatpush.bf16.msra.mxu0 0
      %564 = vmatpush.bf16.msra.mxu0 %v522
      %565 = vmatpush.bf16.msra.mxu0 %v499
      %566 = vmatmul.bf16.gmra.mxu0 %v513
      %v567 = vpop.f32.mrf.mxu0
      %v568 = vadd.f32 0.0, %v567
      %v569 = vpop.f32.mrf.mxu0
      %v570 = vadd.f32 0.0, %v569
      %571 = vdwg.mxu0
      %572 = vmatpush.bf16.msra.mxu0 0
      %573 = vmatpush.bf16.msra.mxu0 0
      %574 = vmatpush.bf16.msra.mxu0 0
      %575 = vmatpush.bf16.msra.mxu0 0
      %576 = vmatpush.bf16.msra.mxu0 0
      %577 = vmatpush.bf16.msra.mxu0 0
      %578 = vmatpush.bf16.msra.mxu0 %v525
      %579 = vmatpush.bf16.msra.mxu0 %v500
      %580 = vmatmul.bf16.gmra.mxu0 %v513
      %v581 = vpop.f32.mrf.mxu0
      %v582 = vadd.f32 0.0, %v581
      %v583 = vpop.f32.mrf.mxu0
      %v584 = vadd.f32 0.0, %v583
      %585 = vdwg.mxu0
      %586 = vmatpush.bf16.msra.mxu0 0
      %587 = vmatpush.bf16.msra.mxu0 0
      %588 = vmatpush.bf16.msra.mxu0 0
      %589 = vmatpush.bf16.msra.mxu0 0
      %590 = vmatpush.bf16.msra.mxu0 0
      %591 = vmatpush.bf16.msra.mxu0 0
      %592 = vmatpush.bf16.msra.mxu0 %v528
      %593 = vmatpush.bf16.msra.mxu0 %v501
      %594 = vmatmul.bf16.gmra.mxu0 %v513
      %v595 = vpop.f32.mrf.mxu0
      %v596 = vadd.f32 0.0, %v595
      %v597 = vpop.f32.mrf.mxu0
      %v598 = vadd.f32 0.0, %v597
      %599 = vdwg.mxu0
      %v600 = vadd.f32 %v402, %v540
      %v601 = vadd.f32 %v416, %v554
      %v602 = vadd.f32 %v430, %v568
      %v603 = vadd.f32 %v444, %v582
      %v604 = vadd.f32 %v458, %v596
      %v605 = vadd.f32 %v404, %v542
      %v606 = vadd.f32 %v418, %v556
      %v607 = vadd.f32 %v432, %v570
      %v608 = vadd.f32 %v446, %v584
      %v609 = vadd.f32 %v460, %v598
      %v610 = vmax.f32 %v600, 0.0
      %v611 = vmax.f32 %v601, 0.0
      %v612 = vmax.f32 %v602, 0.0
      %v613 = vmax.f32 %v603, 0.0
      %v614 = vmax.f32 %v604, 0.0
      %v615 = vmax.f32 %v605, 0.0
      %v616 = vmax.f32 %v606, 0.0
      %v617 = vmax.f32 %v607, 0.0
      %v618 = vmax.f32 %v608, 0.0
      %v619 = vmax.f32 %v609, 0.0
      %v620 = vpack.c.bf16 %v611, %v610
      %v621 = vpack.c.bf16 %v613, %v612
      %v622 = vpack.c.bf16 %v614, %v614
      %v623 = vpack.c.bf16 %v616, %v615
      %v624 = vpack.c.bf16 %v618, %v617
      %v625 = vpack.c.bf16 %v619, %v619
      %v626 = vld [vmem:[%s2] sm:$0xff]
      %v627 = vld [vmem:[%s2 + $0x8] sm:$0xff]
      %v628 = vld [vmem:[%s2 + $0x10] sm:$0xff]
      %v629 = vld [vmem:[%s2 + $0x18] sm:$0xff]
      %v630 = vld [vmem:[%s2 + $0x20] sm:$0xff]
      %v631 = vld [vmem:[%s2 + $0x28] sm:$0xff]
      %v632 = vld [vmem:[%s2 + $0x30] sm:$0xff]
      %v633 = vld [vmem:[%s2 + $0x38] sm:$0xff]
      %v634 = vld [vmem:[%s2 + $0x40] sm:$0xff]
      %v635 = vld [vmem:[%s2 + $0x48] sm:$0xff]
      %v636 = vld [vmem:[%s2 + $0x50] sm:$0xff]
      %v637 = vld [vmem:[%s2 + $0x58] sm:$0xff]
      %v638 = vld [vmem:[%s2 + $0x60] sm:$0xff]
      %v639 = vld [vmem:[%s2 + $0x68] sm:$0xff]
      %v640 = vld [vmem:[%s2 + $0x70] sm:$0xff]
      %v641 = vld [vmem:[%s2 + $0x78] sm:$0xff]
      %v642 = vld [vmem:[%s2 + $0x80] sm:$0xff]
      %v643 = vld [vmem:[%s2 + $0x88] sm:$0xff]
      %v644 = vld [vmem:[%s2 + $0x90] sm:$0xff]
      %v645 = vld [vmem:[%s2 + $0x98] sm:$0xff]
      %v646 = vld [vmem:[%s2 + $0xa0] sm:$0xff]
      %v647 = vld [vmem:[%s2 + $0xa8] sm:$0xff]
      %v648 = vld [vmem:[%s2 + $0xb0] sm:$0xff]
      %v649 = vld [vmem:[%s2 + $0xb8] sm:$0xff]
      %v650 = vld [vmem:[%s2 + $0xc0] sm:$0xff]
      %v651 = vld [vmem:[%s2 + $0xc8] sm:$0xff]
      %v652 = vld [vmem:[%s2 + $0xd0] sm:$0xff]
      %v653 = vld [vmem:[%s2 + $0xd8] sm:$0xff]
      %v654 = vld [vmem:[%s2 + $0xe0] sm:$0xff]
      %v655 = vld [vmem:[%s2 + $0xe8] sm:$0xff]
      %v656 = vld [vmem:[%s2 + $0xf0] sm:$0xff]
      %v657 = vld [vmem:[%s2 + $0xf8] sm:$0xff]
      %v658 = vld [vmem:[%s2 + $0x100] sm:$0xff]
      %v659 = vld [vmem:[%s2 + $0x108] sm:$0xff]
      %v660 = vld [vmem:[%s2 + $0x110] sm:$0xff]
      %v661 = vld [vmem:[%s2 + $0x118] sm:$0xff]
      %v662 = vld [vmem:[%s2 + $0x120] sm:$0xff]
      %v663 = vld [vmem:[%s2 + $0x128] sm:$0xff]
      %v664 = vld [vmem:[%s2 + $0x130] sm:$0xff]
      %v665 = vld [vmem:[%s2 + $0x138] sm:$0xff]
      %v666 = vld [vmem:[%s2 + $0x140] sm:$0xff]
      %v667 = vld [vmem:[%s2 + $0x148] sm:$0xff]
      %v668 = vld [vmem:[%s2 + $0x150] sm:$0xff]
      %v669 = vld [vmem:[%s2 + $0x158] sm:$0xff]
      %v670 = vld [vmem:[%s2 + $0x160] sm:$0xff]
      %v671 = vld [vmem:[%s2 + $0x168] sm:$0xff]
      %v672 = vld [vmem:[%s2 + $0x170] sm:$0xff]
      %v673 = vld [vmem:[%s2 + $0x178] sm:$0xff]
      %v674 = vld [vmem:[%s2 + $0x180] sm:$0xff]
      %v675 = vld [vmem:[%s2 + $0x188] sm:$0xff]
      %v676 = vld [vmem:[%s2 + $0x190] sm:$0xff]
      %v677 = vld [vmem:[%s2 + $0x198] sm:$0xff]
      %v678 = vld [vmem:[%s2 + $0x1a0] sm:$0xff]
      %v679 = vld [vmem:[%s2 + $0x1a8] sm:$0xff]
      %v680 = vld [vmem:[%s2 + $0x1b0] sm:$0xff]
      %v681 = vld [vmem:[%s2 + $0x1b8] sm:$0xff]
      %v682 = vld [vmem:[%s2 + $0x1c0] sm:$0xff]
      %v683 = vld [vmem:[%s2 + $0x1c8] sm:$0xff]
      %v684 = vld [vmem:[%s2 + $0x1d0] sm:$0xff]
      %v685 = vld [vmem:[%s2 + $0x1d8] sm:$0xff]
      %v686 = vld [vmem:[%s2 + $0x1e0] sm:$0xff]
      %v687 = vld [vmem:[%s2 + $0x1e8] sm:$0xff]
      %v688 = vld [vmem:[%s2 + $0x1f0] sm:$0xff]
      %v689 = vld [vmem:[%s2 + $0x1f8] sm:$0xff]
      %v690 = vld [vmem:[%s2 + $0x200] sm:$0xff]
      %v691 = vld [vmem:[%s2 + $0x208] sm:$0xff]
      %v692 = vld [vmem:[%s2 + $0x210] sm:$0xff]
      %v693 = vld [vmem:[%s2 + $0x218] sm:$0xff]
      %v694 = vld [vmem:[%s2 + $0x220] sm:$0xff]
      %v695 = vld [vmem:[%s2 + $0x228] sm:$0xff]
      %v696 = vld [vmem:[%s2 + $0x230] sm:$0xff]
      %v697 = vld [vmem:[%s2 + $0x238] sm:$0xff]
      %v698 = vld [vmem:[%s2 + $0x240] sm:$0xff]
      %v699 = vld [vmem:[%s2 + $0x248] sm:$0xff]
      %v700 = vld [vmem:[%s2 + $0x250] sm:$0xff]
      %v701 = vld [vmem:[%s2 + $0x258] sm:$0xff]
      %v702 = vld [vmem:[%s2 + $0x260] sm:$0xff]
      %v703 = vld [vmem:[%s2 + $0x268] sm:$0xff]
      %v704 = vld [vmem:[%s2 + $0x270] sm:$0xff]
      %v705 = vld [vmem:[%s2 + $0x278] sm:$0xff]
      %v706 = vld [vmem:[%s2 + $0x280] sm:$0xff]
      %v707 = vld [vmem:[%s2 + $0x288] sm:$0xff]
      %v708 = vld [vmem:[%s2 + $0x290] sm:$0xff]
      %v709 = vld [vmem:[%s2 + $0x298] sm:$0xff]
      %v710 = vld [vmem:[%s2 + $0x2a0] sm:$0xff]
      %v711 = vld [vmem:[%s2 + $0x2a8] sm:$0xff]
      %v712 = vld [vmem:[%s2 + $0x2b0] sm:$0xff]
      %v713 = vld [vmem:[%s2 + $0x2b8] sm:$0xff]
      %v714 = vld [vmem:[%s2 + $0x2c0] sm:$0xff]
      %v715 = vld [vmem:[%s2 + $0x2c8] sm:$0xff]
      %v716 = vld [vmem:[%s2 + $0x2d0] sm:$0xff]
      %v717 = vld [vmem:[%s2 + $0x2d8] sm:$0xff]
      %v718 = vld [vmem:[%s2 + $0x2e0] sm:$0xff]
      %v719 = vld [vmem:[%s2 + $0x2e8] sm:$0xff]
      %v720 = vld [vmem:[%s2 + $0x2f0] sm:$0xff]
      %v721 = vld [vmem:[%s2 + $0x2f8] sm:$0xff]
      %v722 = vld [vmem:[%s2 + $0x300] sm:$0xff]
      %v723 = vld [vmem:[%s2 + $0x308] sm:$0xff]
      %v724 = vld [vmem:[%s2 + $0x310] sm:$0xff]
      %v725 = vld [vmem:[%s2 + $0x318] sm:$0xff]
      %v726 = vld [vmem:[%s2 + $0x320] sm:$0xff]
      %v727 = vld [vmem:[%s2 + $0x328] sm:$0xff]
      %v728 = vld [vmem:[%s2 + $0x330] sm:$0xff]
      %v729 = vld [vmem:[%s2 + $0x338] sm:$0xff]
      %v730 = vld [vmem:[%s2 + $0x340] sm:$0xff]
      %v731 = vld [vmem:[%s2 + $0x348] sm:$0xff]
      %v732 = vld [vmem:[%s2 + $0x350] sm:$0xff]
      %v733 = vld [vmem:[%s2 + $0x358] sm:$0xff]
      %v734 = vld [vmem:[%s2 + $0x360] sm:$0xff]
      %v735 = vld [vmem:[%s2 + $0x368] sm:$0xff]
      %v736 = vld [vmem:[%s2 + $0x370] sm:$0xff]
      %v737 = vld [vmem:[%s2 + $0x378] sm:$0xff]
      %v738 = vld [vmem:[%s2 + $0x380] sm:$0xff]
      %v739 = vld [vmem:[%s2 + $0x388] sm:$0xff]
      %v740 = vld [vmem:[%s2 + $0x390] sm:$0xff]
      %v741 = vld [vmem:[%s2 + $0x398] sm:$0xff]
      %v742 = vld [vmem:[%s2 + $0x3a0] sm:$0xff]
      %v743 = vld [vmem:[%s2 + $0x3a8] sm:$0xff]
      %v744 = vld [vmem:[%s2 + $0x3b0] sm:$0xff]
      %v745 = vld [vmem:[%s2 + $0x3b8] sm:$0xff]
      %v746 = vld [vmem:[%s2 + $0x3c0] sm:$0xff]
      %v747 = vld [vmem:[%s2 + $0x3c8] sm:$0xff]
      %v748 = vld [vmem:[%s2 + $0x3d0] sm:$0xff]
      %v749 = vld [vmem:[%s2 + $0x3d8] sm:$0xff]
      %v750 = vld [vmem:[%s2 + $0x3e0] sm:$0xff]
      %v751 = vld [vmem:[%s2 + $0x3e8] sm:$0xff]
      %v752 = vld [vmem:[%s2 + $0x3f0] sm:$0xff]
      %v753 = vld [vmem:[%s2 + $0x3f8] sm:$0xff]
      %v754 = vld [vmem:[%s2 + $0x400] sm:$0xff]
      %v755 = vld [vmem:[%s2 + $0x408] sm:$0xff]
      %v756 = vld [vmem:[%s2 + $0x410] sm:$0xff]
      %v757 = vld [vmem:[%s2 + $0x418] sm:$0xff]
      %v758 = vld [vmem:[%s2 + $0x420] sm:$0xff]
      %v759 = vld [vmem:[%s2 + $0x428] sm:$0xff]
      %v760 = vld [vmem:[%s2 + $0x430] sm:$0xff]
      %v761 = vld [vmem:[%s2 + $0x438] sm:$0xff]
      %v762 = vld [vmem:[%s2 + $0x440] sm:$0xff]
      %v763 = vld [vmem:[%s2 + $0x448] sm:$0xff]
      %v764 = vld [vmem:[%s2 + $0x450] sm:$0xff]
      %v765 = vld [vmem:[%s2 + $0x458] sm:$0xff]
      %v766 = vld [vmem:[%s2 + $0x460] sm:$0xff]
      %v767 = vld [vmem:[%s2 + $0x468] sm:$0xff]
      %v768 = vld [vmem:[%s2 + $0x470] sm:$0xff]
      %v769 = vld [vmem:[%s2 + $0x478] sm:$0xff]
      %v770 = vld [vmem:[%s2 + $0x480] sm:$0xff]
      %v771 = vld [vmem:[%s2 + $0x488] sm:$0xff]
      %v772 = vld [vmem:[%s2 + $0x490] sm:$0xff]
      %v773 = vld [vmem:[%s2 + $0x498] sm:$0xff]
      %v774 = vld [vmem:[%s2 + $0x4a0] sm:$0xff]
      %v775 = vld [vmem:[%s2 + $0x4a8] sm:$0xff]
      %v776 = vld [vmem:[%s2 + $0x4b0] sm:$0xff]
      %v777 = vld [vmem:[%s2 + $0x4b8] sm:$0xff]
      %v778 = vld [vmem:[%s2 + $0x4c0] sm:$0xff]
      %v779 = vld [vmem:[%s2 + $0x4c8] sm:$0xff]
      %v780 = vld [vmem:[%s2 + $0x4d0] sm:$0xff]
      %v781 = vld [vmem:[%s2 + $0x4d8] sm:$0xff]
      %v782 = vld [vmem:[%s2 + $0x4e0] sm:$0xff]
      %v783 = vld [vmem:[%s2 + $0x4e8] sm:$0xff]
      %v784 = vld [vmem:[%s2 + $0x4f0] sm:$0xff]
      %v785 = vld [vmem:[%s2 + $0x4f8] sm:$0xff]
      %v786 = vld [vmem:[%s2 + $0x500] sm:$0xff]
      %v787 = vld [vmem:[%s2 + $0x508] sm:$0xff]
      %v788 = vld [vmem:[%s2 + $0x510] sm:$0xff]
      %v789 = vld [vmem:[%s2 + $0x518] sm:$0xff]
      %v790 = vld [vmem:[%s2 + $0x520] sm:$0xff]
      %v791 = vld [vmem:[%s2 + $0x528] sm:$0xff]
      %v792 = vld [vmem:[%s2 + $0x530] sm:$0xff]
      %v793 = vld [vmem:[%s2 + $0x538] sm:$0xff]
      %v794 = vld [vmem:[%s2 + $0x540] sm:$0xff]
      %v795 = vld [vmem:[%s2 + $0x548] sm:$0xff]
      %v796 = vld [vmem:[%s2 + $0x550] sm:$0xff]
      %v797 = vld [vmem:[%s2 + $0x558] sm:$0xff]
      %v798 = vld [vmem:[%s2 + $0x560] sm:$0xff]
      %v799 = vld [vmem:[%s2 + $0x568] sm:$0xff]
      %v800 = vld [vmem:[%s2 + $0x570] sm:$0xff]
      %v801 = vld [vmem:[%s2 + $0x578] sm:$0xff]
      %v802 = vld [vmem:[%s2 + $0x580] sm:$0xff]
      %v803 = vld [vmem:[%s2 + $0x588] sm:$0xff]
      %v804 = vld [vmem:[%s2 + $0x590] sm:$0xff]
      %v805 = vld [vmem:[%s2 + $0x598] sm:$0xff]
      %v806 = vld [vmem:[%s2 + $0x5a0] sm:$0xff]
      %v807 = vld [vmem:[%s2 + $0x5a8] sm:$0xff]
      %v808 = vld [vmem:[%s2 + $0x5b0] sm:$0xff]
      %v809 = vld [vmem:[%s2 + $0x5b8] sm:$0xff]
      %v810 = vld [vmem:[%s2 + $0x5c0] sm:$0xff]
      %v811 = vld [vmem:[%s2 + $0x5c8] sm:$0xff]
      %v812 = vld [vmem:[%s2 + $0x5d0] sm:$0xff]
      %v813 = vld [vmem:[%s2 + $0x5d8] sm:$0xff]
      %v814 = vld [vmem:[%s2 + $0x5e0] sm:$0xff]
      %v815 = vld [vmem:[%s2 + $0x5e8] sm:$0xff]
      %v816 = vld [vmem:[%s2 + $0x5f0] sm:$0xff]
      %v817 = vld [vmem:[%s2 + $0x5f8] sm:$0xff]
      %v818 = vld [vmem:[%s2 + $0x600] sm:$0xff]
      %v819 = vld [vmem:[%s2 + $0x608] sm:$0xff]
      %v820 = vld [vmem:[%s2 + $0x610] sm:$0xff]
      %v821 = vld [vmem:[%s2 + $0x618] sm:$0xff]
      %v822 = vld [vmem:[%s2 + $0x620] sm:$0xff]
      %v823 = vld [vmem:[%s2 + $0x628] sm:$0xff]
      %v824 = vld [vmem:[%s2 + $0x630] sm:$0xff]
      %v825 = vld [vmem:[%s2 + $0x638] sm:$0xff]
      %v826 = vld [vmem:[%s2 + $0x640] sm:$0xff]
      %v827 = vld [vmem:[%s2 + $0x648] sm:$0xff]
      %v828 = vld [vmem:[%s2 + $0x650] sm:$0xff]
      %v829 = vld [vmem:[%s2 + $0x658] sm:$0xff]
      %v830 = vld [vmem:[%s2 + $0x660] sm:$0xff]
      %v831 = vld [vmem:[%s2 + $0x668] sm:$0xff]
      %v832 = vld [vmem:[%s2 + $0x670] sm:$0xff]
      %v833 = vld [vmem:[%s2 + $0x678] sm:$0xff]
      %v834 = vld [vmem:[%s2 + $0x680] sm:$0xff]
      %v835 = vld [vmem:[%s2 + $0x688] sm:$0xff]
      %v836 = vld [vmem:[%s2 + $0x690] sm:$0xff]
      %v837 = vld [vmem:[%s2 + $0x698] sm:$0xff]
      %v838 = vld [vmem:[%s2 + $0x6a0] sm:$0xff]
      %v839 = vld [vmem:[%s2 + $0x6a8] sm:$0xff]
      %v840 = vld [vmem:[%s2 + $0x6b0] sm:$0xff]
      %v841 = vld [vmem:[%s2 + $0x6b8] sm:$0xff]
      %v842 = vld [vmem:[%s2 + $0x6c0] sm:$0xff]
      %v843 = vld [vmem:[%s2 + $0x6c8] sm:$0xff]
      %v844 = vld [vmem:[%s2 + $0x6d0] sm:$0xff]
      %v845 = vld [vmem:[%s2 + $0x6d8] sm:$0xff]
      %v846 = vld [vmem:[%s2 + $0x6e0] sm:$0xff]
      %v847 = vld [vmem:[%s2 + $0x6e8] sm:$0xff]
      %v848 = vld [vmem:[%s2 + $0x6f0] sm:$0xff]
      %v849 = vld [vmem:[%s2 + $0x6f8] sm:$0xff]
      %v850 = vld [vmem:[%s2 + $0x700] sm:$0xff]
      %v851 = vld [vmem:[%s2 + $0x708] sm:$0xff]
      %v852 = vld [vmem:[%s2 + $0x710] sm:$0xff]
      %v853 = vld [vmem:[%s2 + $0x718] sm:$0xff]
      %v854 = vld [vmem:[%s2 + $0x720] sm:$0xff]
      %v855 = vld [vmem:[%s2 + $0x728] sm:$0xff]
      %v856 = vld [vmem:[%s2 + $0x730] sm:$0xff]
      %v857 = vld [vmem:[%s2 + $0x738] sm:$0xff]
      %v858 = vld [vmem:[%s2 + $0x740] sm:$0xff]
      %v859 = vld [vmem:[%s2 + $0x748] sm:$0xff]
      %v860 = vld [vmem:[%s2 + $0x750] sm:$0xff]
      %v861 = vld [vmem:[%s2 + $0x758] sm:$0xff]
      %v862 = vld [vmem:[%s2 + $0x760] sm:$0xff]
      %v863 = vld [vmem:[%s2 + $0x768] sm:$0xff]
      %v864 = vld [vmem:[%s2 + $0x770] sm:$0xff]
      %v865 = vld [vmem:[%s2 + $0x778] sm:$0xff]
      %v866 = vld [vmem:[%s2 + $0x780] sm:$0xff]
      %v867 = vld [vmem:[%s2 + $0x788] sm:$0xff]
      %v868 = vld [vmem:[%s2 + $0x790] sm:$0xff]
      %v869 = vld [vmem:[%s2 + $0x798] sm:$0xff]
      %v870 = vld [vmem:[%s2 + $0x7a0] sm:$0xff]
      %v871 = vld [vmem:[%s2 + $0x7a8] sm:$0xff]
      %v872 = vld [vmem:[%s2 + $0x7b0] sm:$0xff]
      %v873 = vld [vmem:[%s2 + $0x7b8] sm:$0xff]
      %v874 = vld [vmem:[%s2 + $0x7c0] sm:$0xff]
      %v875 = vld [vmem:[%s2 + $0x7c8] sm:$0xff]
      %v876 = vld [vmem:[%s2 + $0x7d0] sm:$0xff]
      %v877 = vld [vmem:[%s2 + $0x7d8] sm:$0xff]
      %v878 = vld [vmem:[%s2 + $0x7e0] sm:$0xff]
      %v879 = vld [vmem:[%s2 + $0x7e8] sm:$0xff]
      %v880 = vld [vmem:[%s2 + $0x7f0] sm:$0xff]
      %v881 = vld [vmem:[%s2 + $0x7f8] sm:$0xff]
      %v882 = vld [vmem:[%s2 + $0x800] sm:$0xff]
      %v883 = vld [vmem:[%s2 + $0x808] sm:$0xff]
      %v884 = vld [vmem:[%s2 + $0x810] sm:$0xff]
      %v885 = vld [vmem:[%s2 + $0x818] sm:$0xff]
      %v886 = vld [vmem:[%s2 + $0x820] sm:$0xff]
      %v887 = vld [vmem:[%s2 + $0x828] sm:$0xff]
      %v888 = vld [vmem:[%s2 + $0x830] sm:$0xff]
      %v889 = vld [vmem:[%s2 + $0x838] sm:$0xff]
      %v890 = vld [vmem:[%s2 + $0x840] sm:$0xff]
      %v891 = vld [vmem:[%s2 + $0x848] sm:$0xff]
      %v892 = vld [vmem:[%s2 + $0x850] sm:$0xff]
      %v893 = vld [vmem:[%s2 + $0x858] sm:$0xff]
      %v894 = vld [vmem:[%s2 + $0x860] sm:$0xff]
      %v895 = vld [vmem:[%s2 + $0x868] sm:$0xff]
      %v896 = vld [vmem:[%s2 + $0x870] sm:$0xff]
      %v897 = vld [vmem:[%s2 + $0x878] sm:$0xff]
      %v898 = vld [vmem:[%s2 + $0x880] sm:$0xff]
      %v899 = vld [vmem:[%s2 + $0x888] sm:$0xff]
      %v900 = vld [vmem:[%s2 + $0x890] sm:$0xff]
      %v901 = vld [vmem:[%s2 + $0x898] sm:$0xff]
      %v902 = vld [vmem:[%s2 + $0x8a0] sm:$0xff]
      %v903 = vld [vmem:[%s2 + $0x8a8] sm:$0xff]
      %v904 = vld [vmem:[%s2 + $0x8b0] sm:$0xff]
      %v905 = vld [vmem:[%s2 + $0x8b8] sm:$0xff]
      %v906 = vld [vmem:[%s2 + $0x8c0] sm:$0xff]
      %v907 = vld [vmem:[%s2 + $0x8c8] sm:$0xff]
      %v908 = vld [vmem:[%s2 + $0x8d0] sm:$0xff]
      %v909 = vld [vmem:[%s2 + $0x8d8] sm:$0xff]
      %v910 = vld [vmem:[%s2 + $0x8e0] sm:$0xff]
      %v911 = vld [vmem:[%s2 + $0x8e8] sm:$0xff]
      %v912 = vld [vmem:[%s2 + $0x8f0] sm:$0xff]
      %v913 = vld [vmem:[%s2 + $0x8f8] sm:$0xff]
      %v914 = vld [vmem:[%s2 + $0x900] sm:$0xff]
      %v915 = vld [vmem:[%s2 + $0x908] sm:$0xff]
      %v916 = vld [vmem:[%s2 + $0x910] sm:$0xff]
      %v917 = vld [vmem:[%s2 + $0x918] sm:$0xff]
      %v918 = vld [vmem:[%s2 + $0x920] sm:$0xff]
      %v919 = vld [vmem:[%s2 + $0x928] sm:$0xff]
      %v920 = vld [vmem:[%s2 + $0x930] sm:$0xff]
      %v921 = vld [vmem:[%s2 + $0x938] sm:$0xff]
      %v922 = vld [vmem:[%s2 + $0x940] sm:$0xff]
      %v923 = vld [vmem:[%s2 + $0x948] sm:$0xff]
      %v924 = vld [vmem:[%s2 + $0x950] sm:$0xff]
      %v925 = vld [vmem:[%s2 + $0x958] sm:$0xff]
      %v926 = vld [vmem:[%s2 + $0x960] sm:$0xff]
      %v927 = vld [vmem:[%s2 + $0x968] sm:$0xff]
      %v928 = vld [vmem:[%s2 + $0x970] sm:$0xff]
      %v929 = vld [vmem:[%s2 + $0x978] sm:$0xff]
      %s930 = scalar_lea.vmem %s2, 2432
      %v931 = vld [vmem:[%s930] sm:$0xff]
      %v932 = vld [vmem:[%s930 + $0x8] sm:$0xff]
      %v933 = vld [vmem:[%s930 + $0x10] sm:$0xff]
      %v934 = vld [vmem:[%s930 + $0x18] sm:$0xff]
      %v935 = vld [vmem:[%s930 + $0x20] sm:$0xff]
      %v936 = vld [vmem:[%s930 + $0x28] sm:$0xff]
      %v937 = vld [vmem:[%s930 + $0x30] sm:$0xff]
      %v938 = vld [vmem:[%s930 + $0x38] sm:$0xff]
      %v939 = vld [vmem:[%s930 + $0x40] sm:$0xff]
      %v940 = vld [vmem:[%s930 + $0x48] sm:$0xff]
      %v941 = vld [vmem:[%s930 + $0x50] sm:$0xff]
      %v942 = vld [vmem:[%s930 + $0x58] sm:$0xff]
      %v943 = vld [vmem:[%s930 + $0x60] sm:$0xff]
      %v944 = vld [vmem:[%s930 + $0x68] sm:$0xff]
      %v945 = vld [vmem:[%s930 + $0x70] sm:$0xff]
      %v946 = vld [vmem:[%s930 + $0x78] sm:$0xff]
      %v947 = vld [vmem:[%s930 + $0x80] sm:$0xff]
      %v948 = vld [vmem:[%s930 + $0x88] sm:$0xff]
      %v949 = vld [vmem:[%s930 + $0x90] sm:$0xff]
      %v950 = vld [vmem:[%s930 + $0x98] sm:$0xff]
      %v951 = vld [vmem:[%s930 + $0xa0] sm:$0xff]
      %v952 = vld [vmem:[%s930 + $0xa8] sm:$0xff]
      %v953 = vld [vmem:[%s930 + $0xb0] sm:$0xff]
      %v954 = vld [vmem:[%s930 + $0xb8] sm:$0xff]
      %v955 = vld [vmem:[%s930 + $0xc0] sm:$0xff]
      %v956 = vld [vmem:[%s930 + $0xc8] sm:$0xff]
      %v957 = vld [vmem:[%s930 + $0xd0] sm:$0xff]
      %v958 = vld [vmem:[%s930 + $0xd8] sm:$0xff]
      %v959 = vld [vmem:[%s930 + $0xe0] sm:$0xff]
      %v960 = vld [vmem:[%s930 + $0xe8] sm:$0xff]
      %v961 = vld [vmem:[%s930 + $0xf0] sm:$0xff]
      %v962 = vld [vmem:[%s930 + $0xf8] sm:$0xff]
      %v963 = vld [vmem:[%s930 + $0x100] sm:$0xff]
      %v964 = vld [vmem:[%s930 + $0x108] sm:$0xff]
      %v965 = vld [vmem:[%s930 + $0x110] sm:$0xff]
      %v966 = vld [vmem:[%s930 + $0x118] sm:$0xff]
      %v967 = vld [vmem:[%s930 + $0x120] sm:$0xff]
      %v968 = vld [vmem:[%s930 + $0x128] sm:$0xff]
      %v969 = vld [vmem:[%s930 + $0x130] sm:$0xff]
      %v970 = vld [vmem:[%s930 + $0x138] sm:$0xff]
      %v971 = vld [vmem:[%s930 + $0x140] sm:$0xff]
      %v972 = vld [vmem:[%s930 + $0x148] sm:$0xff]
      %v973 = vld [vmem:[%s930 + $0x150] sm:$0xff]
      %v974 = vld [vmem:[%s930 + $0x158] sm:$0xff]
      %v975 = vld [vmem:[%s930 + $0x160] sm:$0xff]
      %v976 = vld [vmem:[%s930 + $0x168] sm:$0xff]
      %v977 = vld [vmem:[%s930 + $0x170] sm:$0xff]
      %v978 = vld [vmem:[%s930 + $0x178] sm:$0xff]
      %v979 = vld [vmem:[%s930 + $0x180] sm:$0xff]
      %v980 = vld [vmem:[%s930 + $0x188] sm:$0xff]
      %v981 = vld [vmem:[%s930 + $0x190] sm:$0xff]
      %v982 = vld [vmem:[%s930 + $0x198] sm:$0xff]
      %v983 = vld [vmem:[%s930 + $0x1a0] sm:$0xff]
      %v984 = vld [vmem:[%s930 + $0x1a8] sm:$0xff]
      %v985 = vld [vmem:[%s930 + $0x1b0] sm:$0xff]
      %v986 = vld [vmem:[%s930 + $0x1b8] sm:$0xff]
      %v987 = vld [vmem:[%s930 + $0x1c0] sm:$0xff]
      %v988 = vld [vmem:[%s930 + $0x1c8] sm:$0xff]
      %v989 = vld [vmem:[%s930 + $0x1d0] sm:$0xff]
      %v990 = vld [vmem:[%s930 + $0x1d8] sm:$0xff]
      %v991 = vld [vmem:[%s930 + $0x1e0] sm:$0xff]
      %v992 = vld [vmem:[%s930 + $0x1e8] sm:$0xff]
      %v993 = vld [vmem:[%s930 + $0x1f0] sm:$0xff]
      %v994 = vld [vmem:[%s930 + $0x1f8] sm:$0xff]
      %v995 = vld [vmem:[%s930 + $0x200] sm:$0xff]
      %v996 = vld [vmem:[%s930 + $0x208] sm:$0xff]
      %v997 = vld [vmem:[%s930 + $0x210] sm:$0xff]
      %v998 = vld [vmem:[%s930 + $0x218] sm:$0xff]
      %v999 = vld [vmem:[%s930 + $0x220] sm:$0xff]
      %v1000 = vld [vmem:[%s930 + $0x228] sm:$0xff]
      %v1001 = vld [vmem:[%s930 + $0x230] sm:$0xff]
      %v1002 = vld [vmem:[%s930 + $0x238] sm:$0xff]
      %v1003 = vld [vmem:[%s930 + $0x240] sm:$0xff]
      %v1004 = vld [vmem:[%s930 + $0x248] sm:$0xff]
      %v1005 = vld [vmem:[%s930 + $0x250] sm:$0xff]
      %v1006 = vld [vmem:[%s930 + $0x258] sm:$0xff]
      %v1007 = vld [vmem:[%s930 + $0x260] sm:$0xff]
      %v1008 = vld [vmem:[%s930 + $0x268] sm:$0xff]
      %v1009 = vld [vmem:[%s930 + $0x270] sm:$0xff]
      %v1010 = vld [vmem:[%s930 + $0x278] sm:$0xff]
      %v1011 = vld [vmem:[%s930 + $0x280] sm:$0xff]
      %v1012 = vld [vmem:[%s930 + $0x288] sm:$0xff]
      %v1013 = vld [vmem:[%s930 + $0x290] sm:$0xff]
      %v1014 = vld [vmem:[%s930 + $0x298] sm:$0xff]
      %v1015 = vld [vmem:[%s930 + $0x2a0] sm:$0xff]
      %v1016 = vld [vmem:[%s930 + $0x2a8] sm:$0xff]
      %v1017 = vld [vmem:[%s930 + $0x2b0] sm:$0xff]
      %v1018 = vld [vmem:[%s930 + $0x2b8] sm:$0xff]
      %v1019 = vld [vmem:[%s930 + $0x2c0] sm:$0xff]
      %v1020 = vld [vmem:[%s930 + $0x2c8] sm:$0xff]
      %v1021 = vld [vmem:[%s930 + $0x2d0] sm:$0xff]
      %v1022 = vld [vmem:[%s930 + $0x2d8] sm:$0xff]
      %v1023 = vld [vmem:[%s930 + $0x2e0] sm:$0xff]
      %v1024 = vld [vmem:[%s930 + $0x2e8] sm:$0xff]
      %v1025 = vld [vmem:[%s930 + $0x2f0] sm:$0xff]
      %v1026 = vld [vmem:[%s930 + $0x2f8] sm:$0xff]
      %v1027 = vld [vmem:[%s930 + $0x300] sm:$0xff]
      %v1028 = vld [vmem:[%s930 + $0x308] sm:$0xff]
      %v1029 = vld [vmem:[%s930 + $0x310] sm:$0xff]
      %v1030 = vld [vmem:[%s930 + $0x318] sm:$0xff]
      %v1031 = vld [vmem:[%s930 + $0x320] sm:$0xff]
      %v1032 = vld [vmem:[%s930 + $0x328] sm:$0xff]
      %v1033 = vld [vmem:[%s930 + $0x330] sm:$0xff]
      %v1034 = vld [vmem:[%s930 + $0x338] sm:$0xff]
      %v1035 = vld [vmem:[%s930 + $0x340] sm:$0xff]
      %v1036 = vld [vmem:[%s930 + $0x348] sm:$0xff]
      %v1037 = vld [vmem:[%s930 + $0x350] sm:$0xff]
      %v1038 = vld [vmem:[%s930 + $0x358] sm:$0xff]
      %v1039 = vld [vmem:[%s930 + $0x360] sm:$0xff]
      %v1040 = vld [vmem:[%s930 + $0x368] sm:$0xff]
      %v1041 = vld [vmem:[%s930 + $0x370] sm:$0xff]
      %v1042 = vld [vmem:[%s930 + $0x378] sm:$0xff]
      %v1043 = vld [vmem:[%s930 + $0x380] sm:$0xff]
      %v1044 = vld [vmem:[%s930 + $0x388] sm:$0xff]
      %v1045 = vld [vmem:[%s930 + $0x390] sm:$0xff]
      %v1046 = vld [vmem:[%s930 + $0x398] sm:$0xff]
      %v1047 = vld [vmem:[%s930 + $0x3a0] sm:$0xff]
      %v1048 = vld [vmem:[%s930 + $0x3a8] sm:$0xff]
      %v1049 = vld [vmem:[%s930 + $0x3b0] sm:$0xff]
      %v1050 = vld [vmem:[%s930 + $0x3b8] sm:$0xff]
      %v1051 = vld [vmem:[%s930 + $0x3c0] sm:$0xff]
      %v1052 = vld [vmem:[%s930 + $0x3c8] sm:$0xff]
      %v1053 = vld [vmem:[%s930 + $0x3d0] sm:$0xff]
      %v1054 = vld [vmem:[%s930 + $0x3d8] sm:$0xff]
      %v1055 = vld [vmem:[%s930 + $0x3e0] sm:$0xff]
      %v1056 = vld [vmem:[%s930 + $0x3e8] sm:$0xff]
      %v1057 = vld [vmem:[%s930 + $0x3f0] sm:$0xff]
      %v1058 = vld [vmem:[%s930 + $0x3f8] sm:$0xff]
      %v1059 = vld [vmem:[%s930 + $0x400] sm:$0xff]
      %v1060 = vld [vmem:[%s930 + $0x408] sm:$0xff]
      %v1061 = vld [vmem:[%s930 + $0x410] sm:$0xff]
      %v1062 = vld [vmem:[%s930 + $0x418] sm:$0xff]
      %v1063 = vld [vmem:[%s930 + $0x420] sm:$0xff]
      %v1064 = vld [vmem:[%s930 + $0x428] sm:$0xff]
      %v1065 = vld [vmem:[%s930 + $0x430] sm:$0xff]
      %v1066 = vld [vmem:[%s930 + $0x438] sm:$0xff]
      %v1067 = vld [vmem:[%s930 + $0x440] sm:$0xff]
      %v1068 = vld [vmem:[%s930 + $0x448] sm:$0xff]
      %v1069 = vld [vmem:[%s930 + $0x450] sm:$0xff]
      %v1070 = vld [vmem:[%s930 + $0x458] sm:$0xff]
      %v1071 = vld [vmem:[%s930 + $0x460] sm:$0xff]
      %v1072 = vld [vmem:[%s930 + $0x468] sm:$0xff]
      %v1073 = vld [vmem:[%s930 + $0x470] sm:$0xff]
      %v1074 = vld [vmem:[%s930 + $0x478] sm:$0xff]
      %v1075 = vld [vmem:[%s930 + $0x480] sm:$0xff]
      %v1076 = vld [vmem:[%s930 + $0x488] sm:$0xff]
      %v1077 = vld [vmem:[%s930 + $0x490] sm:$0xff]
      %v1078 = vld [vmem:[%s930 + $0x498] sm:$0xff]
      %v1079 = vld [vmem:[%s930 + $0x4a0] sm:$0xff]
      %v1080 = vld [vmem:[%s930 + $0x4a8] sm:$0xff]
      %v1081 = vld [vmem:[%s930 + $0x4b0] sm:$0xff]
      %v1082 = vld [vmem:[%s930 + $0x4b8] sm:$0xff]
      %v1083 = vld [vmem:[%s930 + $0x4c0] sm:$0xff]
      %v1084 = vld [vmem:[%s930 + $0x4c8] sm:$0xff]
      %v1085 = vld [vmem:[%s930 + $0x4d0] sm:$0xff]
      %v1086 = vld [vmem:[%s930 + $0x4d8] sm:$0xff]
      %v1087 = vld [vmem:[%s930 + $0x4e0] sm:$0xff]
      %v1088 = vld [vmem:[%s930 + $0x4e8] sm:$0xff]
      %v1089 = vld [vmem:[%s930 + $0x4f0] sm:$0xff]
      %v1090 = vld [vmem:[%s930 + $0x4f8] sm:$0xff]
      %v1091 = vld [vmem:[%s930 + $0x500] sm:$0xff]
      %v1092 = vld [vmem:[%s930 + $0x508] sm:$0xff]
      %v1093 = vld [vmem:[%s930 + $0x510] sm:$0xff]
      %v1094 = vld [vmem:[%s930 + $0x518] sm:$0xff]
      %v1095 = vld [vmem:[%s930 + $0x520] sm:$0xff]
      %v1096 = vld [vmem:[%s930 + $0x528] sm:$0xff]
      %v1097 = vld [vmem:[%s930 + $0x530] sm:$0xff]
      %v1098 = vld [vmem:[%s930 + $0x538] sm:$0xff]
      %v1099 = vld [vmem:[%s930 + $0x540] sm:$0xff]
      %v1100 = vld [vmem:[%s930 + $0x548] sm:$0xff]
      %v1101 = vld [vmem:[%s930 + $0x550] sm:$0xff]
      %v1102 = vld [vmem:[%s930 + $0x558] sm:$0xff]
      %v1103 = vld [vmem:[%s930 + $0x560] sm:$0xff]
      %v1104 = vld [vmem:[%s930 + $0x568] sm:$0xff]
      %v1105 = vld [vmem:[%s930 + $0x570] sm:$0xff]
      %v1106 = vld [vmem:[%s930 + $0x578] sm:$0xff]
      %v1107 = vld [vmem:[%s930 + $0x580] sm:$0xff]
      %v1108 = vld [vmem:[%s930 + $0x588] sm:$0xff]
      %v1109 = vld [vmem:[%s930 + $0x590] sm:$0xff]
      %v1110 = vld [vmem:[%s930 + $0x598] sm:$0xff]
      %v1111 = vld [vmem:[%s930 + $0x5a0] sm:$0xff]
      %v1112 = vld [vmem:[%s930 + $0x5a8] sm:$0xff]
      %v1113 = vld [vmem:[%s930 + $0x5b0] sm:$0xff]
      %v1114 = vld [vmem:[%s930 + $0x5b8] sm:$0xff]
      %v1115 = vld [vmem:[%s930 + $0x5c0] sm:$0xff]
      %v1116 = vld [vmem:[%s930 + $0x5c8] sm:$0xff]
      %v1117 = vld [vmem:[%s930 + $0x5d0] sm:$0xff]
      %v1118 = vld [vmem:[%s930 + $0x5d8] sm:$0xff]
      %v1119 = vld [vmem:[%s930 + $0x5e0] sm:$0xff]
      %v1120 = vld [vmem:[%s930 + $0x5e8] sm:$0xff]
      %v1121 = vld [vmem:[%s930 + $0x5f0] sm:$0xff]
      %v1122 = vld [vmem:[%s930 + $0x5f8] sm:$0xff]
      %v1123 = vld [vmem:[%s930 + $0x600] sm:$0xff]
      %v1124 = vld [vmem:[%s930 + $0x608] sm:$0xff]
      %v1125 = vld [vmem:[%s930 + $0x610] sm:$0xff]
      %v1126 = vld [vmem:[%s930 + $0x618] sm:$0xff]
      %v1127 = vld [vmem:[%s930 + $0x620] sm:$0xff]
      %v1128 = vld [vmem:[%s930 + $0x628] sm:$0xff]
      %v1129 = vld [vmem:[%s930 + $0x630] sm:$0xff]
      %v1130 = vld [vmem:[%s930 + $0x638] sm:$0xff]
      %v1131 = vld [vmem:[%s930 + $0x640] sm:$0xff]
      %v1132 = vld [vmem:[%s930 + $0x648] sm:$0xff]
      %v1133 = vld [vmem:[%s930 + $0x650] sm:$0xff]
      %v1134 = vld [vmem:[%s930 + $0x658] sm:$0xff]
      %v1135 = vld [vmem:[%s930 + $0x660] sm:$0xff]
      %v1136 = vld [vmem:[%s930 + $0x668] sm:$0xff]
      %v1137 = vld [vmem:[%s930 + $0x670] sm:$0xff]
      %v1138 = vld [vmem:[%s930 + $0x678] sm:$0xff]
      %v1139 = vld [vmem:[%s930 + $0x680] sm:$0xff]
      %v1140 = vld [vmem:[%s930 + $0x688] sm:$0xff]
      %v1141 = vld [vmem:[%s930 + $0x690] sm:$0xff]
      %v1142 = vld [vmem:[%s930 + $0x698] sm:$0xff]
      %v1143 = vld [vmem:[%s930 + $0x6a0] sm:$0xff]
      %v1144 = vld [vmem:[%s930 + $0x6a8] sm:$0xff]
      %v1145 = vld [vmem:[%s930 + $0x6b0] sm:$0xff]
      %v1146 = vld [vmem:[%s930 + $0x6b8] sm:$0xff]
      %v1147 = vld [vmem:[%s930 + $0x6c0] sm:$0xff]
      %v1148 = vld [vmem:[%s930 + $0x6c8] sm:$0xff]
      %v1149 = vld [vmem:[%s930 + $0x6d0] sm:$0xff]
      %v1150 = vld [vmem:[%s930 + $0x6d8] sm:$0xff]
      %v1151 = vld [vmem:[%s930 + $0x6e0] sm:$0xff]
      %v1152 = vld [vmem:[%s930 + $0x6e8] sm:$0xff]
      %v1153 = vld [vmem:[%s930 + $0x6f0] sm:$0xff]
      %v1154 = vld [vmem:[%s930 + $0x6f8] sm:$0xff]
      %v1155 = vld [vmem:[%s930 + $0x700] sm:$0xff]
      %v1156 = vld [vmem:[%s930 + $0x708] sm:$0xff]
      %v1157 = vld [vmem:[%s930 + $0x710] sm:$0xff]
      %v1158 = vld [vmem:[%s930 + $0x718] sm:$0xff]
      %v1159 = vld [vmem:[%s930 + $0x720] sm:$0xff]
      %v1160 = vld [vmem:[%s930 + $0x728] sm:$0xff]
      %v1161 = vld [vmem:[%s930 + $0x730] sm:$0xff]
      %v1162 = vld [vmem:[%s930 + $0x738] sm:$0xff]
      %v1163 = vld [vmem:[%s930 + $0x740] sm:$0xff]
      %v1164 = vld [vmem:[%s930 + $0x748] sm:$0xff]
      %v1165 = vld [vmem:[%s930 + $0x750] sm:$0xff]
      %v1166 = vld [vmem:[%s930 + $0x758] sm:$0xff]
      %v1167 = vld [vmem:[%s930 + $0x760] sm:$0xff]
      %v1168 = vld [vmem:[%s930 + $0x768] sm:$0xff]
      %v1169 = vld [vmem:[%s930 + $0x770] sm:$0xff]
      %v1170 = vld [vmem:[%s930 + $0x778] sm:$0xff]
      %v1171 = vld [vmem:[%s930 + $0x780] sm:$0xff]
      %v1172 = vld [vmem:[%s930 + $0x788] sm:$0xff]
      %v1173 = vld [vmem:[%s930 + $0x790] sm:$0xff]
      %v1174 = vld [vmem:[%s930 + $0x798] sm:$0xff]
      %v1175 = vld [vmem:[%s930 + $0x7a0] sm:$0xff]
      %v1176 = vld [vmem:[%s930 + $0x7a8] sm:$0xff]
      %v1177 = vld [vmem:[%s930 + $0x7b0] sm:$0xff]
      %v1178 = vld [vmem:[%s930 + $0x7b8] sm:$0xff]
      %v1179 = vld [vmem:[%s930 + $0x7c0] sm:$0xff]
      %v1180 = vld [vmem:[%s930 + $0x7c8] sm:$0xff]
      %v1181 = vld [vmem:[%s930 + $0x7d0] sm:$0xff]
      %v1182 = vld [vmem:[%s930 + $0x7d8] sm:$0xff]
      %v1183 = vld [vmem:[%s930 + $0x7e0] sm:$0xff]
      %v1184 = vld [vmem:[%s930 + $0x7e8] sm:$0xff]
      %v1185 = vld [vmem:[%s930 + $0x7f0] sm:$0xff]
      %v1186 = vld [vmem:[%s930 + $0x7f8] sm:$0xff]
      %v1187 = vld [vmem:[%s930 + $0x800] sm:$0xff]
      %v1188 = vld [vmem:[%s930 + $0x808] sm:$0xff]
      %v1189 = vld [vmem:[%s930 + $0x810] sm:$0xff]
      %v1190 = vld [vmem:[%s930 + $0x818] sm:$0xff]
      %v1191 = vld [vmem:[%s930 + $0x820] sm:$0xff]
      %v1192 = vld [vmem:[%s930 + $0x828] sm:$0xff]
      %v1193 = vld [vmem:[%s930 + $0x830] sm:$0xff]
      %v1194 = vld [vmem:[%s930 + $0x838] sm:$0xff]
      %v1195 = vld [vmem:[%s930 + $0x840] sm:$0xff]
      %v1196 = vld [vmem:[%s930 + $0x848] sm:$0xff]
      %v1197 = vld [vmem:[%s930 + $0x850] sm:$0xff]
      %v1198 = vld [vmem:[%s930 + $0x858] sm:$0xff]
      %v1199 = vld [vmem:[%s930 + $0x860] sm:$0xff]
      %v1200 = vld [vmem:[%s930 + $0x868] sm:$0xff]
      %v1201 = vld [vmem:[%s930 + $0x870] sm:$0xff]
      %v1202 = vld [vmem:[%s930 + $0x878] sm:$0xff]
      %v1203 = vld [vmem:[%s930 + $0x880] sm:$0xff]
      %v1204 = vld [vmem:[%s930 + $0x888] sm:$0xff]
      %v1205 = vld [vmem:[%s930 + $0x890] sm:$0xff]
      %v1206 = vld [vmem:[%s930 + $0x898] sm:$0xff]
      %v1207 = vld [vmem:[%s930 + $0x8a0] sm:$0xff]
      %v1208 = vld [vmem:[%s930 + $0x8a8] sm:$0xff]
      %v1209 = vld [vmem:[%s930 + $0x8b0] sm:$0xff]
      %v1210 = vld [vmem:[%s930 + $0x8b8] sm:$0xff]
      %v1211 = vld [vmem:[%s930 + $0x8c0] sm:$0xff]
      %v1212 = vld [vmem:[%s930 + $0x8c8] sm:$0xff]
      %v1213 = vld [vmem:[%s930 + $0x8d0] sm:$0xff]
      %v1214 = vld [vmem:[%s930 + $0x8d8] sm:$0xff]
      %v1215 = vld [vmem:[%s930 + $0x8e0] sm:$0xff]
      %v1216 = vld [vmem:[%s930 + $0x8e8] sm:$0xff]
      %v1217 = vld [vmem:[%s930 + $0x8f0] sm:$0xff]
      %v1218 = vld [vmem:[%s930 + $0x8f8] sm:$0xff]
      %v1219 = vld [vmem:[%s930 + $0x900] sm:$0xff]
      %v1220 = vld [vmem:[%s930 + $0x908] sm:$0xff]
      %v1221 = vld [vmem:[%s930 + $0x910] sm:$0xff]
      %v1222 = vld [vmem:[%s930 + $0x918] sm:$0xff]
      %v1223 = vld [vmem:[%s930 + $0x920] sm:$0xff]
      %v1224 = vld [vmem:[%s930 + $0x928] sm:$0xff]
      %v1225 = vld [vmem:[%s930 + $0x930] sm:$0xff]
      %v1226 = vld [vmem:[%s930 + $0x938] sm:$0xff]
      %v1227 = vld [vmem:[%s930 + $0x940] sm:$0xff]
      %v1228 = vld [vmem:[%s930 + $0x948] sm:$0xff]
      %v1229 = vld [vmem:[%s930 + $0x950] sm:$0xff]
      %v1230 = vld [vmem:[%s930 + $0x958] sm:$0xff]
      %v1231 = vld [vmem:[%s930 + $0x960] sm:$0xff]
      %v1232 = vld [vmem:[%s930 + $0x968] sm:$0xff]
      %v1233 = vld [vmem:[%s930 + $0x970] sm:$0xff]
      %v1234 = vld [vmem:[%s930 + $0x978] sm:$0xff]
      %v1241 = vunpack.c.l.b16 %v620
      %v1242 = vunpack.c.h.b16 %v620
      %v1243 = vunpack.c.l.b16 %v621
      %v1244 = vunpack.c.h.b16 %v621
      %v1245 = vunpack.c.l.b16 %v622
      %v1246 = vunpack.c.l.b16 %v623
      %v1247 = vunpack.c.h.b16 %v623
      %v1248 = vunpack.c.l.b16 %v624
      %v1249 = vunpack.c.h.b16 %v624
      %v1250 = vunpack.c.l.b16 %v625
      %v1251 = vpack.c.b16 %v1246, %v1241
      %v1252 = vpack.c.b16 %v1247, %v1242
      %v1253 = vpack.c.b16 %v1248, %v1243
      %v1254 = vpack.c.b16 %v1249, %v1244
      %v1255 = vpack.c.b16 %v1250, %v1245
      %v1257 = vshrl.u32 %v1251, 16
      %v1259 = vshll.u32 %v1251, 16
      %v1261 = vrot.slane %v1259, 1
      %v1262 = vor.u32 %v1257, %v1261
      %v1264 = vshrl.u32 %v1252, 16
      %v1266 = vshll.u32 %v1252, 16
      %v1268 = vrot.slane %v1266, 1
      %v1269 = vor.u32 %v1264, %v1268
      %v1271 = vshrl.u32 %v1253, 16
      %v1273 = vshll.u32 %v1253, 16
      %v1275 = vrot.slane %v1273, 1
      %v1276 = vor.u32 %v1271, %v1275
      %v1278 = vshrl.u32 %v1254, 16
      %v1280 = vshll.u32 %v1254, 16
      %v1282 = vrot.slane %v1280, 1
      %v1283 = vor.u32 %v1278, %v1282
      %v1285 = vshrl.u32 %v1255, 16
      %v1287 = vshll.u32 %v1255, 16
      %v1289 = vrot.slane %v1287, 1
      %v1290 = vor.u32 %v1285, %v1289
      %v1599 = vunpack.c.l.b16 %v931
      %v1600 = vunpack.c.h.b16 %v931
      %v1601 = vunpack.c.l.b16 %v932
      %v1602 = vunpack.c.h.b16 %v932
      %v1603 = vunpack.c.l.b16 %v933
      %v1604 = vunpack.c.h.b16 %v933
      %v1605 = vunpack.c.l.b16 %v934
      %v1606 = vunpack.c.h.b16 %v934
      %v1607 = vunpack.c.l.b16 %v935
      %v1608 = vunpack.c.h.b16 %v935
      %v1609 = vunpack.c.l.b16 %v936
      %v1610 = vunpack.c.h.b16 %v936
      %v1611 = vunpack.c.l.b16 %v937
      %v1612 = vunpack.c.h.b16 %v937
      %v1613 = vunpack.c.l.b16 %v938
      %v1614 = vunpack.c.h.b16 %v938
      %v1615 = vunpack.c.l.b16 %v939
      %v1616 = vunpack.c.h.b16 %v939
      %v1617 = vunpack.c.l.b16 %v940
      %v1618 = vunpack.c.h.b16 %v940
      %v1619 = vunpack.c.l.b16 %v941
      %v1620 = vunpack.c.h.b16 %v941
      %v1621 = vunpack.c.l.b16 %v942
      %v1622 = vunpack.c.h.b16 %v942
      %v1623 = vunpack.c.l.b16 %v943
      %v1624 = vunpack.c.h.b16 %v943
      %v1625 = vunpack.c.l.b16 %v944
      %v1626 = vunpack.c.h.b16 %v944
      %v1627 = vunpack.c.l.b16 %v945
      %v1628 = vunpack.c.h.b16 %v945
      %v1629 = vunpack.c.l.b16 %v946
      %v1630 = vunpack.c.h.b16 %v946
      %v1631 = vunpack.c.l.b16 %v947
      %v1632 = vunpack.c.h.b16 %v947
      %v1633 = vunpack.c.l.b16 %v948
      %v1634 = vunpack.c.h.b16 %v948
      %v1635 = vunpack.c.l.b16 %v949
      %v1636 = vunpack.c.h.b16 %v949
      %v1637 = vunpack.c.l.b16 %v950
      %v1638 = vunpack.c.h.b16 %v950
      %v1639 = vunpack.c.l.b16 %v951
      %v1640 = vunpack.c.h.b16 %v951
      %v1641 = vunpack.c.l.b16 %v952
      %v1642 = vunpack.c.h.b16 %v952
      %v1643 = vunpack.c.l.b16 %v953
      %v1644 = vunpack.c.h.b16 %v953
      %v1645 = vunpack.c.l.b16 %v954
      %v1646 = vunpack.c.h.b16 %v954
      %v1647 = vunpack.c.l.b16 %v955
      %v1648 = vunpack.c.h.b16 %v955
      %v1649 = vunpack.c.l.b16 %v956
      %v1650 = vunpack.c.h.b16 %v956
      %v1651 = vunpack.c.l.b16 %v957
      %v1652 = vunpack.c.h.b16 %v957
      %v1653 = vunpack.c.l.b16 %v958
      %v1654 = vunpack.c.h.b16 %v958
      %v1655 = vunpack.c.l.b16 %v959
      %v1656 = vunpack.c.h.b16 %v959
      %v1657 = vunpack.c.l.b16 %v960
      %v1658 = vunpack.c.h.b16 %v960
      %v1659 = vunpack.c.l.b16 %v961
      %v1660 = vunpack.c.h.b16 %v961
      %v1661 = vunpack.c.l.b16 %v962
      %v1662 = vunpack.c.h.b16 %v962
      %v1663 = vunpack.c.l.b16 %v963
      %v1664 = vunpack.c.h.b16 %v963
      %v1665 = vunpack.c.l.b16 %v964
      %v1666 = vunpack.c.h.b16 %v964
      %v1667 = vunpack.c.l.b16 %v965
      %v1668 = vunpack.c.h.b16 %v965
      %v1669 = vunpack.c.l.b16 %v966
      %v1670 = vunpack.c.h.b16 %v966
      %v1671 = vunpack.c.l.b16 %v967
      %v1672 = vunpack.c.h.b16 %v967
      %v1673 = vunpack.c.l.b16 %v968
      %v1674 = vunpack.c.h.b16 %v968
      %v1675 = vunpack.c.l.b16 %v969
      %v1676 = vunpack.c.h.b16 %v969
      %v1677 = vunpack.c.l.b16 %v970
      %v1678 = vunpack.c.h.b16 %v970
      %v1679 = vunpack.c.l.b16 %v971
      %v1680 = vunpack.c.h.b16 %v971
      %v1681 = vunpack.c.l.b16 %v972
      %v1682 = vunpack.c.h.b16 %v972
      %v1683 = vunpack.c.l.b16 %v973
      %v1684 = vunpack.c.h.b16 %v973
      %v1685 = vunpack.c.l.b16 %v974
      %v1686 = vunpack.c.h.b16 %v974
      %v1687 = vunpack.c.l.b16 %v975
      %v1688 = vunpack.c.h.b16 %v975
      %v1689 = vunpack.c.l.b16 %v976
      %v1690 = vunpack.c.h.b16 %v976
      %v1691 = vunpack.c.l.b16 %v977
      %v1692 = vunpack.c.h.b16 %v977
      %v1693 = vunpack.c.l.b16 %v978
      %v1694 = vunpack.c.h.b16 %v978
      %v1695 = vunpack.c.l.b16 %v979
      %v1696 = vunpack.c.h.b16 %v979
      %v1697 = vunpack.c.l.b16 %v980
      %v1698 = vunpack.c.h.b16 %v980
      %v1699 = vunpack.c.l.b16 %v981
      %v1700 = vunpack.c.h.b16 %v981
      %v1701 = vunpack.c.l.b16 %v982
      %v1702 = vunpack.c.h.b16 %v982
      %v1703 = vunpack.c.l.b16 %v983
      %v1704 = vunpack.c.h.b16 %v983
      %v1705 = vunpack.c.l.b16 %v984
      %v1706 = vunpack.c.h.b16 %v984
      %v1707 = vunpack.c.l.b16 %v985
      %v1708 = vunpack.c.h.b16 %v985
      %v1709 = vunpack.c.l.b16 %v986
      %v1710 = vunpack.c.h.b16 %v986
      %v1711 = vunpack.c.l.b16 %v987
      %v1712 = vunpack.c.h.b16 %v987
      %v1713 = vunpack.c.l.b16 %v988
      %v1714 = vunpack.c.h.b16 %v988
      %v1715 = vunpack.c.l.b16 %v989
      %v1716 = vunpack.c.h.b16 %v989
      %v1717 = vunpack.c.l.b16 %v990
      %v1718 = vunpack.c.h.b16 %v990
      %v1719 = vunpack.c.l.b16 %v991
      %v1720 = vunpack.c.h.b16 %v991
      %v1721 = vunpack.c.l.b16 %v992
      %v1722 = vunpack.c.h.b16 %v992
      %v1723 = vunpack.c.l.b16 %v993
      %v1724 = vunpack.c.h.b16 %v993
      %v1725 = vunpack.c.l.b16 %v994
      %v1726 = vunpack.c.h.b16 %v994
      %v1727 = vunpack.c.l.b16 %v995
      %v1728 = vunpack.c.h.b16 %v995
      %v1729 = vunpack.c.l.b16 %v996
      %v1730 = vunpack.c.h.b16 %v996
      %v1731 = vunpack.c.l.b16 %v997
      %v1732 = vunpack.c.h.b16 %v997
      %v1733 = vunpack.c.l.b16 %v998
      %v1734 = vunpack.c.h.b16 %v998
      %v1735 = vunpack.c.l.b16 %v999
      %v1736 = vunpack.c.h.b16 %v999
      %v1737 = vunpack.c.l.b16 %v1000
      %v1738 = vunpack.c.h.b16 %v1000
      %v1739 = vunpack.c.l.b16 %v1001
      %v1740 = vunpack.c.h.b16 %v1001
      %v1741 = vunpack.c.l.b16 %v1002
      %v1742 = vunpack.c.h.b16 %v1002
      %v1743 = vunpack.c.l.b16 %v1003
      %v1744 = vunpack.c.h.b16 %v1003
      %v1745 = vunpack.c.l.b16 %v1004
      %v1746 = vunpack.c.h.b16 %v1004
      %v1747 = vunpack.c.l.b16 %v1005
      %v1748 = vunpack.c.h.b16 %v1005
      %v1749 = vunpack.c.l.b16 %v1006
      %v1750 = vunpack.c.h.b16 %v1006
      %v1751 = vunpack.c.l.b16 %v1007
      %v1752 = vunpack.c.h.b16 %v1007
      %v1753 = vunpack.c.l.b16 %v1008
      %v1754 = vunpack.c.h.b16 %v1008
      %v1755 = vunpack.c.l.b16 %v1009
      %v1756 = vunpack.c.h.b16 %v1009
      %v1757 = vunpack.c.l.b16 %v1010
      %v1758 = vunpack.c.h.b16 %v1010
      %v1759 = vunpack.c.l.b16 %v1011
      %v1760 = vunpack.c.h.b16 %v1011
      %v1761 = vunpack.c.l.b16 %v1012
      %v1762 = vunpack.c.h.b16 %v1012
      %v1763 = vunpack.c.l.b16 %v1013
      %v1764 = vunpack.c.h.b16 %v1013
      %v1765 = vunpack.c.l.b16 %v1014
      %v1766 = vunpack.c.h.b16 %v1014
      %v1767 = vunpack.c.l.b16 %v1015
      %v1768 = vunpack.c.h.b16 %v1015
      %v1769 = vunpack.c.l.b16 %v1016
      %v1770 = vunpack.c.h.b16 %v1016
      %v1771 = vunpack.c.l.b16 %v1017
      %v1772 = vunpack.c.h.b16 %v1017
      %v1773 = vunpack.c.l.b16 %v1018
      %v1774 = vunpack.c.h.b16 %v1018
      %v1775 = vunpack.c.l.b16 %v1019
      %v1776 = vunpack.c.h.b16 %v1019
      %v1777 = vunpack.c.l.b16 %v1020
      %v1778 = vunpack.c.h.b16 %v1020
      %v1779 = vunpack.c.l.b16 %v1021
      %v1780 = vunpack.c.h.b16 %v1021
      %v1781 = vunpack.c.l.b16 %v1022
      %v1782 = vunpack.c.h.b16 %v1022
      %v1783 = vunpack.c.l.b16 %v1023
      %v1784 = vunpack.c.h.b16 %v1023
      %v1785 = vunpack.c.l.b16 %v1024
      %v1786 = vunpack.c.h.b16 %v1024
      %v1787 = vunpack.c.l.b16 %v1025
      %v1788 = vunpack.c.h.b16 %v1025
      %v1789 = vunpack.c.l.b16 %v1026
      %v1790 = vunpack.c.h.b16 %v1026
      %v1791 = vunpack.c.l.b16 %v1027
      %v1792 = vunpack.c.h.b16 %v1027
      %v1793 = vunpack.c.l.b16 %v1028
      %v1794 = vunpack.c.h.b16 %v1028
      %v1795 = vunpack.c.l.b16 %v1029
      %v1796 = vunpack.c.h.b16 %v1029
      %v1797 = vunpack.c.l.b16 %v1030
      %v1798 = vunpack.c.h.b16 %v1030
      %v1799 = vunpack.c.l.b16 %v1031
      %v1800 = vunpack.c.h.b16 %v1031
      %v1801 = vunpack.c.l.b16 %v1032
      %v1802 = vunpack.c.h.b16 %v1032
      %v1803 = vunpack.c.l.b16 %v1033
      %v1804 = vunpack.c.h.b16 %v1033
      %v1805 = vunpack.c.l.b16 %v1034
      %v1806 = vunpack.c.h.b16 %v1034
      %v1807 = vunpack.c.l.b16 %v1035
      %v1808 = vunpack.c.h.b16 %v1035
      %v1809 = vunpack.c.l.b16 %v1036
      %v1810 = vunpack.c.h.b16 %v1036
      %v1811 = vunpack.c.l.b16 %v1037
      %v1812 = vunpack.c.h.b16 %v1037
      %v1813 = vunpack.c.l.b16 %v1038
      %v1814 = vunpack.c.h.b16 %v1038
      %v1815 = vunpack.c.l.b16 %v1039
      %v1816 = vunpack.c.h.b16 %v1039
      %v1817 = vunpack.c.l.b16 %v1040
      %v1818 = vunpack.c.h.b16 %v1040
      %v1819 = vunpack.c.l.b16 %v1041
      %v1820 = vunpack.c.h.b16 %v1041
      %v1821 = vunpack.c.l.b16 %v1042
      %v1822 = vunpack.c.h.b16 %v1042
      %v1823 = vunpack.c.l.b16 %v1043
      %v1824 = vunpack.c.h.b16 %v1043
      %v1825 = vunpack.c.l.b16 %v1044
      %v1826 = vunpack.c.h.b16 %v1044
      %v1827 = vunpack.c.l.b16 %v1045
      %v1828 = vunpack.c.h.b16 %v1045
      %v1829 = vunpack.c.l.b16 %v1046
      %v1830 = vunpack.c.h.b16 %v1046
      %v1831 = vunpack.c.l.b16 %v1047
      %v1832 = vunpack.c.h.b16 %v1047
      %v1833 = vunpack.c.l.b16 %v1048
      %v1834 = vunpack.c.h.b16 %v1048
      %v1835 = vunpack.c.l.b16 %v1049
      %v1836 = vunpack.c.h.b16 %v1049
      %v1837 = vunpack.c.l.b16 %v1050
      %v1838 = vunpack.c.h.b16 %v1050
      %v1839 = vunpack.c.l.b16 %v1051
      %v1840 = vunpack.c.h.b16 %v1051
      %v1841 = vunpack.c.l.b16 %v1052
      %v1842 = vunpack.c.h.b16 %v1052
      %v1843 = vunpack.c.l.b16 %v1053
      %v1844 = vunpack.c.h.b16 %v1053
      %v1845 = vunpack.c.l.b16 %v1054
      %v1846 = vunpack.c.h.b16 %v1054
      %v1847 = vunpack.c.l.b16 %v1055
      %v1848 = vunpack.c.h.b16 %v1055
      %v1849 = vunpack.c.l.b16 %v1056
      %v1850 = vunpack.c.h.b16 %v1056
      %v1851 = vunpack.c.l.b16 %v1057
      %v1852 = vunpack.c.h.b16 %v1057
      %v1853 = vunpack.c.l.b16 %v1058
      %v1854 = vunpack.c.h.b16 %v1058
      %v1855 = vunpack.c.l.b16 %v1059
      %v1856 = vunpack.c.h.b16 %v1059
      %v1857 = vunpack.c.l.b16 %v1060
      %v1858 = vunpack.c.h.b16 %v1060
      %v1859 = vunpack.c.l.b16 %v1061
      %v1860 = vunpack.c.h.b16 %v1061
      %v1861 = vunpack.c.l.b16 %v1062
      %v1862 = vunpack.c.h.b16 %v1062
      %v1863 = vunpack.c.l.b16 %v1063
      %v1864 = vunpack.c.h.b16 %v1063
      %v1865 = vunpack.c.l.b16 %v1064
      %v1866 = vunpack.c.h.b16 %v1064
      %v1867 = vunpack.c.l.b16 %v1065
      %v1868 = vunpack.c.h.b16 %v1065
      %v1869 = vunpack.c.l.b16 %v1066
      %v1870 = vunpack.c.h.b16 %v1066
      %v1871 = vunpack.c.l.b16 %v1067
      %v1872 = vunpack.c.h.b16 %v1067
      %v1873 = vunpack.c.l.b16 %v1068
      %v1874 = vunpack.c.h.b16 %v1068
      %v1875 = vunpack.c.l.b16 %v1069
      %v1876 = vunpack.c.h.b16 %v1069
      %v1877 = vunpack.c.l.b16 %v1070
      %v1878 = vunpack.c.h.b16 %v1070
      %v1879 = vunpack.c.l.b16 %v1071
      %v1880 = vunpack.c.h.b16 %v1071
      %v1881 = vunpack.c.l.b16 %v1072
      %v1882 = vunpack.c.h.b16 %v1072
      %v1883 = vunpack.c.l.b16 %v1073
      %v1884 = vunpack.c.h.b16 %v1073
      %v1885 = vunpack.c.l.b16 %v1074
      %v1886 = vunpack.c.h.b16 %v1074
      %v1887 = vunpack.c.l.b16 %v1075
      %v1888 = vunpack.c.h.b16 %v1075
      %v1889 = vunpack.c.l.b16 %v1076
      %v1890 = vunpack.c.h.b16 %v1076
      %v1891 = vunpack.c.l.b16 %v1077
      %v1892 = vunpack.c.h.b16 %v1077
      %v1893 = vunpack.c.l.b16 %v1078
      %v1894 = vunpack.c.h.b16 %v1078
      %v1895 = vunpack.c.l.b16 %v1079
      %v1896 = vunpack.c.h.b16 %v1079
      %v1897 = vunpack.c.l.b16 %v1080
      %v1898 = vunpack.c.h.b16 %v1080
      %v1899 = vunpack.c.l.b16 %v1081
      %v1900 = vunpack.c.h.b16 %v1081
      %v1901 = vunpack.c.l.b16 %v1082
      %v1902 = vunpack.c.h.b16 %v1082
      %v1903 = vunpack.c.l.b16 %v1083
      %v1904 = vunpack.c.h.b16 %v1083
      %v1905 = vunpack.c.l.b16 %v1084
      %v1906 = vunpack.c.h.b16 %v1084
      %v1907 = vunpack.c.l.b16 %v1085
      %v1908 = vunpack.c.h.b16 %v1085
      %v1909 = vunpack.c.l.b16 %v1086
      %v1910 = vunpack.c.h.b16 %v1086
      %v1911 = vunpack.c.l.b16 %v1087
      %v1912 = vunpack.c.h.b16 %v1087
      %v1913 = vunpack.c.l.b16 %v1088
      %v1914 = vunpack.c.h.b16 %v1088
      %v1915 = vunpack.c.l.b16 %v1089
      %v1916 = vunpack.c.h.b16 %v1089
      %v1917 = vunpack.c.l.b16 %v1090
      %v1918 = vunpack.c.h.b16 %v1090
      %v1919 = vunpack.c.l.b16 %v1091
      %v1920 = vunpack.c.h.b16 %v1091
      %v1921 = vunpack.c.l.b16 %v1092
      %v1922 = vunpack.c.h.b16 %v1092
      %v1923 = vunpack.c.l.b16 %v1093
      %v1924 = vunpack.c.h.b16 %v1093
      %v1925 = vunpack.c.l.b16 %v1094
      %v1926 = vunpack.c.h.b16 %v1094
      %v1927 = vunpack.c.l.b16 %v1095
      %v1928 = vunpack.c.h.b16 %v1095
      %v1929 = vunpack.c.l.b16 %v1096
      %v1930 = vunpack.c.h.b16 %v1096
      %v1931 = vunpack.c.l.b16 %v1097
      %v1932 = vunpack.c.h.b16 %v1097
      %v1933 = vunpack.c.l.b16 %v1098
      %v1934 = vunpack.c.h.b16 %v1098
      %v1935 = vunpack.c.l.b16 %v1099
      %v1936 = vunpack.c.h.b16 %v1099
      %v1937 = vunpack.c.l.b16 %v1100
      %v1938 = vunpack.c.h.b16 %v1100
      %v1939 = vunpack.c.l.b16 %v1101
      %v1940 = vunpack.c.h.b16 %v1101
      %v1941 = vunpack.c.l.b16 %v1102
      %v1942 = vunpack.c.h.b16 %v1102
      %v1943 = vunpack.c.l.b16 %v1103
      %v1944 = vunpack.c.h.b16 %v1103
      %v1945 = vunpack.c.l.b16 %v1104
      %v1946 = vunpack.c.h.b16 %v1104
      %v1947 = vunpack.c.l.b16 %v1105
      %v1948 = vunpack.c.h.b16 %v1105
      %v1949 = vunpack.c.l.b16 %v1106
      %v1950 = vunpack.c.h.b16 %v1106
      %v1951 = vunpack.c.l.b16 %v1107
      %v1952 = vunpack.c.h.b16 %v1107
      %v1953 = vunpack.c.l.b16 %v1108
      %v1954 = vunpack.c.h.b16 %v1108
      %v1955 = vunpack.c.l.b16 %v1109
      %v1956 = vunpack.c.h.b16 %v1109
      %v1957 = vunpack.c.l.b16 %v1110
      %v1958 = vunpack.c.h.b16 %v1110
      %v1959 = vunpack.c.l.b16 %v1111
      %v1960 = vunpack.c.h.b16 %v1111
      %v1961 = vunpack.c.l.b16 %v1112
      %v1962 = vunpack.c.h.b16 %v1112
      %v1963 = vunpack.c.l.b16 %v1113
      %v1964 = vunpack.c.h.b16 %v1113
      %v1965 = vunpack.c.l.b16 %v1114
      %v1966 = vunpack.c.h.b16 %v1114
      %v1967 = vunpack.c.l.b16 %v1115
      %v1968 = vunpack.c.h.b16 %v1115
      %v1969 = vunpack.c.l.b16 %v1116
      %v1970 = vunpack.c.h.b16 %v1116
      %v1971 = vunpack.c.l.b16 %v1117
      %v1972 = vunpack.c.h.b16 %v1117
      %v1973 = vunpack.c.l.b16 %v1118
      %v1974 = vunpack.c.h.b16 %v1118
      %v1975 = vunpack.c.l.b16 %v1119
      %v1976 = vunpack.c.h.b16 %v1119
      %v1977 = vunpack.c.l.b16 %v1120
      %v1978 = vunpack.c.h.b16 %v1120
      %v1979 = vunpack.c.l.b16 %v1121
      %v1980 = vunpack.c.h.b16 %v1121
      %v1981 = vunpack.c.l.b16 %v1122
      %v1982 = vunpack.c.h.b16 %v1122
      %v1983 = vunpack.c.l.b16 %v1123
      %v1984 = vunpack.c.h.b16 %v1123
      %v1985 = vunpack.c.l.b16 %v1124
      %v1986 = vunpack.c.h.b16 %v1124
      %v1987 = vunpack.c.l.b16 %v1125
      %v1988 = vunpack.c.h.b16 %v1125
      %v1989 = vunpack.c.l.b16 %v1126
      %v1990 = vunpack.c.h.b16 %v1126
      %v1991 = vunpack.c.l.b16 %v1127
      %v1992 = vunpack.c.h.b16 %v1127
      %v1993 = vunpack.c.l.b16 %v1128
      %v1994 = vunpack.c.h.b16 %v1128
      %v1995 = vunpack.c.l.b16 %v1129
      %v1996 = vunpack.c.h.b16 %v1129
      %v1997 = vunpack.c.l.b16 %v1130
      %v1998 = vunpack.c.h.b16 %v1130
      %v1999 = vunpack.c.l.b16 %v1131
      %v2000 = vunpack.c.h.b16 %v1131
      %v2001 = vunpack.c.l.b16 %v1132
      %v2002 = vunpack.c.h.b16 %v1132
      %v2003 = vunpack.c.l.b16 %v1133
      %v2004 = vunpack.c.h.b16 %v1133
      %v2005 = vunpack.c.l.b16 %v1134
      %v2006 = vunpack.c.h.b16 %v1134
      %v2007 = vunpack.c.l.b16 %v1135
      %v2008 = vunpack.c.h.b16 %v1135
      %v2009 = vunpack.c.l.b16 %v1136
      %v2010 = vunpack.c.h.b16 %v1136
      %v2011 = vunpack.c.l.b16 %v1137
      %v2012 = vunpack.c.h.b16 %v1137
      %v2013 = vunpack.c.l.b16 %v1138
      %v2014 = vunpack.c.h.b16 %v1138
      %v2015 = vunpack.c.l.b16 %v1139
      %v2016 = vunpack.c.h.b16 %v1139
      %v2017 = vunpack.c.l.b16 %v1140
      %v2018 = vunpack.c.h.b16 %v1140
      %v2019 = vunpack.c.l.b16 %v1141
      %v2020 = vunpack.c.h.b16 %v1141
      %v2021 = vunpack.c.l.b16 %v1142
      %v2022 = vunpack.c.h.b16 %v1142
      %v2023 = vunpack.c.l.b16 %v1143
      %v2024 = vunpack.c.h.b16 %v1143
      %v2025 = vunpack.c.l.b16 %v1144
      %v2026 = vunpack.c.h.b16 %v1144
      %v2027 = vunpack.c.l.b16 %v1145
      %v2028 = vunpack.c.h.b16 %v1145
      %v2029 = vunpack.c.l.b16 %v1146
      %v2030 = vunpack.c.h.b16 %v1146
      %v2031 = vunpack.c.l.b16 %v1147
      %v2032 = vunpack.c.h.b16 %v1147
      %v2033 = vunpack.c.l.b16 %v1148
      %v2034 = vunpack.c.h.b16 %v1148
      %v2035 = vunpack.c.l.b16 %v1149
      %v2036 = vunpack.c.h.b16 %v1149
      %v2037 = vunpack.c.l.b16 %v1150
      %v2038 = vunpack.c.h.b16 %v1150
      %v2039 = vunpack.c.l.b16 %v1151
      %v2040 = vunpack.c.h.b16 %v1151
      %v2041 = vunpack.c.l.b16 %v1152
      %v2042 = vunpack.c.h.b16 %v1152
      %v2043 = vunpack.c.l.b16 %v1153
      %v2044 = vunpack.c.h.b16 %v1153
      %v2045 = vunpack.c.l.b16 %v1154
      %v2046 = vunpack.c.h.b16 %v1154
      %v2047 = vunpack.c.l.b16 %v1155
      %v2048 = vunpack.c.h.b16 %v1155
      %v2049 = vunpack.c.l.b16 %v1156
      %v2050 = vunpack.c.h.b16 %v1156
      %v2051 = vunpack.c.l.b16 %v1157
      %v2052 = vunpack.c.h.b16 %v1157
      %v2053 = vunpack.c.l.b16 %v1158
      %v2054 = vunpack.c.h.b16 %v1158
      %v2055 = vunpack.c.l.b16 %v1159
      %v2056 = vunpack.c.h.b16 %v1159
      %v2057 = vunpack.c.l.b16 %v1160
      %v2058 = vunpack.c.h.b16 %v1160
      %v2059 = vunpack.c.l.b16 %v1161
      %v2060 = vunpack.c.h.b16 %v1161
      %v2061 = vunpack.c.l.b16 %v1162
      %v2062 = vunpack.c.h.b16 %v1162
      %v2063 = vunpack.c.l.b16 %v1163
      %v2064 = vunpack.c.h.b16 %v1163
      %v2065 = vunpack.c.l.b16 %v1164
      %v2066 = vunpack.c.h.b16 %v1164
      %v2067 = vunpack.c.l.b16 %v1165
      %v2068 = vunpack.c.h.b16 %v1165
      %v2069 = vunpack.c.l.b16 %v1166
      %v2070 = vunpack.c.h.b16 %v1166
      %v2071 = vunpack.c.l.b16 %v1167
      %v2072 = vunpack.c.h.b16 %v1167
      %v2073 = vunpack.c.l.b16 %v1168
      %v2074 = vunpack.c.h.b16 %v1168
      %v2075 = vunpack.c.l.b16 %v1169
      %v2076 = vunpack.c.h.b16 %v1169
      %v2077 = vunpack.c.l.b16 %v1170
      %v2078 = vunpack.c.h.b16 %v1170
      %v2079 = vunpack.c.l.b16 %v1171
      %v2080 = vunpack.c.h.b16 %v1171
      %v2081 = vunpack.c.l.b16 %v1172
      %v2082 = vunpack.c.h.b16 %v1172
      %v2083 = vunpack.c.l.b16 %v1173
      %v2084 = vunpack.c.h.b16 %v1173
      %v2085 = vunpack.c.l.b16 %v1174
      %v2086 = vunpack.c.h.b16 %v1174
      %v2087 = vunpack.c.l.b16 %v1175
      %v2088 = vunpack.c.h.b16 %v1175
      %v2089 = vunpack.c.l.b16 %v1176
      %v2090 = vunpack.c.h.b16 %v1176
      %v2091 = vunpack.c.l.b16 %v1177
      %v2092 = vunpack.c.h.b16 %v1177
      %v2093 = vunpack.c.l.b16 %v1178
      %v2094 = vunpack.c.h.b16 %v1178
      %v2095 = vunpack.c.l.b16 %v1179
      %v2096 = vunpack.c.h.b16 %v1179
      %v2097 = vunpack.c.l.b16 %v1180
      %v2098 = vunpack.c.h.b16 %v1180
      %v2099 = vunpack.c.l.b16 %v1181
      %v2100 = vunpack.c.h.b16 %v1181
      %v2101 = vunpack.c.l.b16 %v1182
      %v2102 = vunpack.c.h.b16 %v1182
      %v2103 = vunpack.c.l.b16 %v1183
      %v2104 = vunpack.c.h.b16 %v1183
      %v2105 = vunpack.c.l.b16 %v1184
      %v2106 = vunpack.c.h.b16 %v1184
      %v2107 = vunpack.c.l.b16 %v1185
      %v2108 = vunpack.c.h.b16 %v1185
      %v2109 = vunpack.c.l.b16 %v1186
      %v2110 = vunpack.c.h.b16 %v1186
      %v2111 = vunpack.c.l.b16 %v1187
      %v2112 = vunpack.c.h.b16 %v1187
      %v2113 = vunpack.c.l.b16 %v1188
      %v2114 = vunpack.c.h.b16 %v1188
      %v2115 = vunpack.c.l.b16 %v1189
      %v2116 = vunpack.c.h.b16 %v1189
      %v2117 = vunpack.c.l.b16 %v1190
      %v2118 = vunpack.c.h.b16 %v1190
      %v2119 = vunpack.c.l.b16 %v1191
      %v2120 = vunpack.c.h.b16 %v1191
      %v2121 = vunpack.c.l.b16 %v1192
      %v2122 = vunpack.c.h.b16 %v1192
      %v2123 = vunpack.c.l.b16 %v1193
      %v2124 = vunpack.c.h.b16 %v1193
      %v2125 = vunpack.c.l.b16 %v1194
      %v2126 = vunpack.c.h.b16 %v1194
      %v2127 = vunpack.c.l.b16 %v1195
      %v2128 = vunpack.c.h.b16 %v1195
      %v2129 = vunpack.c.l.b16 %v1196
      %v2130 = vunpack.c.h.b16 %v1196
      %v2131 = vunpack.c.l.b16 %v1197
      %v2132 = vunpack.c.h.b16 %v1197
      %v2133 = vunpack.c.l.b16 %v1198
      %v2134 = vunpack.c.h.b16 %v1198
      %v2135 = vunpack.c.l.b16 %v1199
      %v2136 = vunpack.c.h.b16 %v1199
      %v2137 = vunpack.c.l.b16 %v1200
      %v2138 = vunpack.c.h.b16 %v1200
      %v2139 = vunpack.c.l.b16 %v1201
      %v2140 = vunpack.c.h.b16 %v1201
      %v2141 = vunpack.c.l.b16 %v1202
      %v2142 = vunpack.c.h.b16 %v1202
      %v2143 = vunpack.c.l.b16 %v1203
      %v2144 = vunpack.c.h.b16 %v1203
      %v2145 = vunpack.c.l.b16 %v1204
      %v2146 = vunpack.c.h.b16 %v1204
      %v2147 = vunpack.c.l.b16 %v1205
      %v2148 = vunpack.c.h.b16 %v1205
      %v2149 = vunpack.c.l.b16 %v1206
      %v2150 = vunpack.c.h.b16 %v1206
      %v2151 = vunpack.c.l.b16 %v1207
      %v2152 = vunpack.c.h.b16 %v1207
      %v2153 = vunpack.c.l.b16 %v1208
      %v2154 = vunpack.c.h.b16 %v1208
      %v2155 = vunpack.c.l.b16 %v1209
      %v2156 = vunpack.c.h.b16 %v1209
      %v2157 = vunpack.c.l.b16 %v1210
      %v2158 = vunpack.c.h.b16 %v1210
      %v2159 = vunpack.c.l.b16 %v1211
      %v2160 = vunpack.c.h.b16 %v1211
      %v2161 = vunpack.c.l.b16 %v1212
      %v2162 = vunpack.c.h.b16 %v1212
      %v2163 = vunpack.c.l.b16 %v1213
      %v2164 = vunpack.c.h.b16 %v1213
      %v2165 = vunpack.c.l.b16 %v1214
      %v2166 = vunpack.c.h.b16 %v1214
      %v2167 = vunpack.c.l.b16 %v1215
      %v2168 = vunpack.c.h.b16 %v1215
      %v2169 = vunpack.c.l.b16 %v1216
      %v2170 = vunpack.c.h.b16 %v1216
      %v2171 = vunpack.c.l.b16 %v1217
      %v2172 = vunpack.c.h.b16 %v1217
      %v2173 = vunpack.c.l.b16 %v1218
      %v2174 = vunpack.c.h.b16 %v1218
      %v2175 = vunpack.c.l.b16 %v1219
      %v2176 = vunpack.c.h.b16 %v1219
      %v2177 = vunpack.c.l.b16 %v1220
      %v2178 = vunpack.c.h.b16 %v1220
      %v2179 = vunpack.c.l.b16 %v1221
      %v2180 = vunpack.c.h.b16 %v1221
      %v2181 = vunpack.c.l.b16 %v1222
      %v2182 = vunpack.c.h.b16 %v1222
      %v2183 = vunpack.c.l.b16 %v1223
      %v2184 = vunpack.c.h.b16 %v1223
      %v2185 = vunpack.c.l.b16 %v1224
      %v2186 = vunpack.c.h.b16 %v1224
      %v2187 = vunpack.c.l.b16 %v1225
      %v2188 = vunpack.c.h.b16 %v1225
      %v2189 = vunpack.c.l.b16 %v1226
      %v2190 = vunpack.c.h.b16 %v1226
      %v2191 = vunpack.c.l.b16 %v1227
      %v2192 = vunpack.c.h.b16 %v1227
      %v2193 = vunpack.c.l.b16 %v1228
      %v2194 = vunpack.c.h.b16 %v1228
      %v2195 = vunpack.c.l.b16 %v1229
      %v2196 = vunpack.c.h.b16 %v1229
      %v2197 = vunpack.c.l.b16 %v1230
      %v2198 = vunpack.c.h.b16 %v1230
      %v2199 = vunpack.c.l.b16 %v1231
      %v2200 = vunpack.c.h.b16 %v1231
      %v2201 = vunpack.c.l.b16 %v1232
      %v2202 = vunpack.c.h.b16 %v1232
      %v2203 = vunpack.c.l.b16 %v1233
      %v2204 = vunpack.c.h.b16 %v1233
      %v2205 = vunpack.c.l.b16 %v1234
      %v2206 = vunpack.c.h.b16 %v1234
      %v2207 = vpack.c.b16 %v1607, %v1599
      %v2208 = vpack.c.b16 %v1608, %v1600
      %v2209 = vpack.c.b16 %v1609, %v1601
      %v2210 = vpack.c.b16 %v1610, %v1602
      %v2211 = vpack.c.b16 %v1611, %v1603
      %v2212 = vpack.c.b16 %v1612, %v1604
      %v2213 = vpack.c.b16 %v1613, %v1605
      %v2214 = vpack.c.b16 %v1614, %v1606
      %v2215 = vpack.c.b16 %v1623, %v1615
      %v2216 = vpack.c.b16 %v1624, %v1616
      %v2217 = vpack.c.b16 %v1625, %v1617
      %v2218 = vpack.c.b16 %v1626, %v1618
      %v2219 = vpack.c.b16 %v1627, %v1619
      %v2220 = vpack.c.b16 %v1628, %v1620
      %v2221 = vpack.c.b16 %v1629, %v1621
      %v2222 = vpack.c.b16 %v1630, %v1622
      %v2223 = vpack.c.b16 %v1639, %v1631
      %v2224 = vpack.c.b16 %v1640, %v1632
      %v2225 = vpack.c.b16 %v1641, %v1633
      %v2226 = vpack.c.b16 %v1642, %v1634
      %v2227 = vpack.c.b16 %v1643, %v1635
      %v2228 = vpack.c.b16 %v1644, %v1636
      %v2229 = vpack.c.b16 %v1645, %v1637
      %v2230 = vpack.c.b16 %v1646, %v1638
      %v2231 = vpack.c.b16 %v1655, %v1647
      %v2232 = vpack.c.b16 %v1656, %v1648
      %v2233 = vpack.c.b16 %v1657, %v1649
      %v2234 = vpack.c.b16 %v1658, %v1650
      %v2235 = vpack.c.b16 %v1659, %v1651
      %v2236 = vpack.c.b16 %v1660, %v1652
      %v2237 = vpack.c.b16 %v1661, %v1653
      %v2238 = vpack.c.b16 %v1662, %v1654
      %v2239 = vpack.c.b16 %v1671, %v1663
      %v2240 = vpack.c.b16 %v1672, %v1664
      %v2241 = vpack.c.b16 %v1673, %v1665
      %v2242 = vpack.c.b16 %v1674, %v1666
      %v2243 = vpack.c.b16 %v1675, %v1667
      %v2244 = vpack.c.b16 %v1676, %v1668
      %v2245 = vpack.c.b16 %v1677, %v1669
      %v2246 = vpack.c.b16 %v1678, %v1670
      %v2247 = vpack.c.b16 %v1687, %v1679
      %v2248 = vpack.c.b16 %v1688, %v1680
      %v2249 = vpack.c.b16 %v1689, %v1681
      %v2250 = vpack.c.b16 %v1690, %v1682
      %v2251 = vpack.c.b16 %v1691, %v1683
      %v2252 = vpack.c.b16 %v1692, %v1684
      %v2253 = vpack.c.b16 %v1693, %v1685
      %v2254 = vpack.c.b16 %v1694, %v1686
      %v2255 = vpack.c.b16 %v1703, %v1695
      %v2256 = vpack.c.b16 %v1704, %v1696
      %v2257 = vpack.c.b16 %v1705, %v1697
      %v2258 = vpack.c.b16 %v1706, %v1698
      %v2259 = vpack.c.b16 %v1707, %v1699
      %v2260 = vpack.c.b16 %v1708, %v1700
      %v2261 = vpack.c.b16 %v1709, %v1701
      %v2262 = vpack.c.b16 %v1710, %v1702
      %v2263 = vpack.c.b16 %v1719, %v1711
      %v2264 = vpack.c.b16 %v1720, %v1712
      %v2265 = vpack.c.b16 %v1721, %v1713
      %v2266 = vpack.c.b16 %v1722, %v1714
      %v2267 = vpack.c.b16 %v1723, %v1715
      %v2268 = vpack.c.b16 %v1724, %v1716
      %v2269 = vpack.c.b16 %v1725, %v1717
      %v2270 = vpack.c.b16 %v1726, %v1718
      %v2271 = vpack.c.b16 %v1735, %v1727
      %v2272 = vpack.c.b16 %v1736, %v1728
      %v2273 = vpack.c.b16 %v1737, %v1729
      %v2274 = vpack.c.b16 %v1738, %v1730
      %v2275 = vpack.c.b16 %v1739, %v1731
      %v2276 = vpack.c.b16 %v1740, %v1732
      %v2277 = vpack.c.b16 %v1741, %v1733
      %v2278 = vpack.c.b16 %v1742, %v1734
      %v2279 = vpack.c.b16 %v1751, %v1743
      %v2280 = vpack.c.b16 %v1752, %v1744
      %v2281 = vpack.c.b16 %v1753, %v1745
      %v2282 = vpack.c.b16 %v1754, %v1746
      %v2283 = vpack.c.b16 %v1755, %v1747
      %v2284 = vpack.c.b16 %v1756, %v1748
      %v2285 = vpack.c.b16 %v1757, %v1749
      %v2286 = vpack.c.b16 %v1758, %v1750
      %v2287 = vpack.c.b16 %v1767, %v1759
      %v2288 = vpack.c.b16 %v1768, %v1760
      %v2289 = vpack.c.b16 %v1769, %v1761
      %v2290 = vpack.c.b16 %v1770, %v1762
      %v2291 = vpack.c.b16 %v1771, %v1763
      %v2292 = vpack.c.b16 %v1772, %v1764
      %v2293 = vpack.c.b16 %v1773, %v1765
      %v2294 = vpack.c.b16 %v1774, %v1766
      %v2295 = vpack.c.b16 %v1783, %v1775
      %v2296 = vpack.c.b16 %v1784, %v1776
      %v2297 = vpack.c.b16 %v1785, %v1777
      %v2298 = vpack.c.b16 %v1786, %v1778
      %v2299 = vpack.c.b16 %v1787, %v1779
      %v2300 = vpack.c.b16 %v1788, %v1780
      %v2301 = vpack.c.b16 %v1789, %v1781
      %v2302 = vpack.c.b16 %v1790, %v1782
      %v2303 = vpack.c.b16 %v1799, %v1791
      %v2304 = vpack.c.b16 %v1800, %v1792
      %v2305 = vpack.c.b16 %v1801, %v1793
      %v2306 = vpack.c.b16 %v1802, %v1794
      %v2307 = vpack.c.b16 %v1803, %v1795
      %v2308 = vpack.c.b16 %v1804, %v1796
      %v2309 = vpack.c.b16 %v1805, %v1797
      %v2310 = vpack.c.b16 %v1806, %v1798
      %v2311 = vpack.c.b16 %v1815, %v1807
      %v2312 = vpack.c.b16 %v1816, %v1808
      %v2313 = vpack.c.b16 %v1817, %v1809
      %v2314 = vpack.c.b16 %v1818, %v1810
      %v2315 = vpack.c.b16 %v1819, %v1811
      %v2316 = vpack.c.b16 %v1820, %v1812
      %v2317 = vpack.c.b16 %v1821, %v1813
      %v2318 = vpack.c.b16 %v1822, %v1814
      %v2319 = vpack.c.b16 %v1831, %v1823
      %v2320 = vpack.c.b16 %v1832, %v1824
      %v2321 = vpack.c.b16 %v1833, %v1825
      %v2322 = vpack.c.b16 %v1834, %v1826
      %v2323 = vpack.c.b16 %v1835, %v1827
      %v2324 = vpack.c.b16 %v1836, %v1828
      %v2325 = vpack.c.b16 %v1837, %v1829
      %v2326 = vpack.c.b16 %v1838, %v1830
      %v2327 = vpack.c.b16 %v1847, %v1839
      %v2328 = vpack.c.b16 %v1848, %v1840
      %v2329 = vpack.c.b16 %v1849, %v1841
      %v2330 = vpack.c.b16 %v1850, %v1842
      %v2331 = vpack.c.b16 %v1851, %v1843
      %v2332 = vpack.c.b16 %v1852, %v1844
      %v2333 = vpack.c.b16 %v1853, %v1845
      %v2334 = vpack.c.b16 %v1854, %v1846
      %v2335 = vpack.c.b16 %v1863, %v1855
      %v2336 = vpack.c.b16 %v1864, %v1856
      %v2337 = vpack.c.b16 %v1865, %v1857
      %v2338 = vpack.c.b16 %v1866, %v1858
      %v2339 = vpack.c.b16 %v1867, %v1859
      %v2340 = vpack.c.b16 %v1868, %v1860
      %v2341 = vpack.c.b16 %v1869, %v1861
      %v2342 = vpack.c.b16 %v1870, %v1862
      %v2343 = vpack.c.b16 %v1879, %v1871
      %v2344 = vpack.c.b16 %v1880, %v1872
      %v2345 = vpack.c.b16 %v1881, %v1873
      %v2346 = vpack.c.b16 %v1882, %v1874
      %v2347 = vpack.c.b16 %v1883, %v1875
      %v2348 = vpack.c.b16 %v1884, %v1876
      %v2349 = vpack.c.b16 %v1885, %v1877
      %v2350 = vpack.c.b16 %v1886, %v1878
      %v2351 = vpack.c.b16 %v1895, %v1887
      %v2352 = vpack.c.b16 %v1896, %v1888
      %v2353 = vpack.c.b16 %v1897, %v1889
      %v2354 = vpack.c.b16 %v1898, %v1890
      %v2355 = vpack.c.b16 %v1899, %v1891
      %v2356 = vpack.c.b16 %v1900, %v1892
      %v2357 = vpack.c.b16 %v1901, %v1893
      %v2358 = vpack.c.b16 %v1902, %v1894
      %v2359 = vpack.c.b16 %v1911, %v1903
      %v2360 = vpack.c.b16 %v1912, %v1904
      %v2361 = vpack.c.b16 %v1913, %v1905
      %v2362 = vpack.c.b16 %v1914, %v1906
      %v2363 = vpack.c.b16 %v1915, %v1907
      %v2364 = vpack.c.b16 %v1916, %v1908
      %v2365 = vpack.c.b16 %v1917, %v1909
      %v2366 = vpack.c.b16 %v1918, %v1910
      %v2367 = vpack.c.b16 %v1927, %v1919
      %v2368 = vpack.c.b16 %v1928, %v1920
      %v2369 = vpack.c.b16 %v1929, %v1921
      %v2370 = vpack.c.b16 %v1930, %v1922
      %v2371 = vpack.c.b16 %v1931, %v1923
      %v2372 = vpack.c.b16 %v1932, %v1924
      %v2373 = vpack.c.b16 %v1933, %v1925
      %v2374 = vpack.c.b16 %v1934, %v1926
      %v2375 = vpack.c.b16 %v1943, %v1935
      %v2376 = vpack.c.b16 %v1944, %v1936
      %v2377 = vpack.c.b16 %v1945, %v1937
      %v2378 = vpack.c.b16 %v1946, %v1938
      %v2379 = vpack.c.b16 %v1947, %v1939
      %v2380 = vpack.c.b16 %v1948, %v1940
      %v2381 = vpack.c.b16 %v1949, %v1941
      %v2382 = vpack.c.b16 %v1950, %v1942
      %v2383 = vpack.c.b16 %v1959, %v1951
      %v2384 = vpack.c.b16 %v1960, %v1952
      %v2385 = vpack.c.b16 %v1961, %v1953
      %v2386 = vpack.c.b16 %v1962, %v1954
      %v2387 = vpack.c.b16 %v1963, %v1955
      %v2388 = vpack.c.b16 %v1964, %v1956
      %v2389 = vpack.c.b16 %v1965, %v1957
      %v2390 = vpack.c.b16 %v1966, %v1958
      %v2391 = vpack.c.b16 %v1975, %v1967
      %v2392 = vpack.c.b16 %v1976, %v1968
      %v2393 = vpack.c.b16 %v1977, %v1969
      %v2394 = vpack.c.b16 %v1978, %v1970
      %v2395 = vpack.c.b16 %v1979, %v1971
      %v2396 = vpack.c.b16 %v1980, %v1972
      %v2397 = vpack.c.b16 %v1981, %v1973
      %v2398 = vpack.c.b16 %v1982, %v1974
      %v2399 = vpack.c.b16 %v1991, %v1983
      %v2400 = vpack.c.b16 %v1992, %v1984
      %v2401 = vpack.c.b16 %v1993, %v1985
      %v2402 = vpack.c.b16 %v1994, %v1986
      %v2403 = vpack.c.b16 %v1995, %v1987
      %v2404 = vpack.c.b16 %v1996, %v1988
      %v2405 = vpack.c.b16 %v1997, %v1989
      %v2406 = vpack.c.b16 %v1998, %v1990
      %v2407 = vpack.c.b16 %v2007, %v1999
      %v2408 = vpack.c.b16 %v2008, %v2000
      %v2409 = vpack.c.b16 %v2009, %v2001
      %v2410 = vpack.c.b16 %v2010, %v2002
      %v2411 = vpack.c.b16 %v2011, %v2003
      %v2412 = vpack.c.b16 %v2012, %v2004
      %v2413 = vpack.c.b16 %v2013, %v2005
      %v2414 = vpack.c.b16 %v2014, %v2006
      %v2415 = vpack.c.b16 %v2023, %v2015
      %v2416 = vpack.c.b16 %v2024, %v2016
      %v2417 = vpack.c.b16 %v2025, %v2017
      %v2418 = vpack.c.b16 %v2026, %v2018
      %v2419 = vpack.c.b16 %v2027, %v2019
      %v2420 = vpack.c.b16 %v2028, %v2020
      %v2421 = vpack.c.b16 %v2029, %v2021
      %v2422 = vpack.c.b16 %v2030, %v2022
      %v2423 = vpack.c.b16 %v2039, %v2031
      %v2424 = vpack.c.b16 %v2040, %v2032
      %v2425 = vpack.c.b16 %v2041, %v2033
      %v2426 = vpack.c.b16 %v2042, %v2034
      %v2427 = vpack.c.b16 %v2043, %v2035
      %v2428 = vpack.c.b16 %v2044, %v2036
      %v2429 = vpack.c.b16 %v2045, %v2037
      %v2430 = vpack.c.b16 %v2046, %v2038
      %v2431 = vpack.c.b16 %v2055, %v2047
      %v2432 = vpack.c.b16 %v2056, %v2048
      %v2433 = vpack.c.b16 %v2057, %v2049
      %v2434 = vpack.c.b16 %v2058, %v2050
      %v2435 = vpack.c.b16 %v2059, %v2051
      %v2436 = vpack.c.b16 %v2060, %v2052
      %v2437 = vpack.c.b16 %v2061, %v2053
      %v2438 = vpack.c.b16 %v2062, %v2054
      %v2439 = vpack.c.b16 %v2071, %v2063
      %v2440 = vpack.c.b16 %v2072, %v2064
      %v2441 = vpack.c.b16 %v2073, %v2065
      %v2442 = vpack.c.b16 %v2074, %v2066
      %v2443 = vpack.c.b16 %v2075, %v2067
      %v2444 = vpack.c.b16 %v2076, %v2068
      %v2445 = vpack.c.b16 %v2077, %v2069
      %v2446 = vpack.c.b16 %v2078, %v2070
      %v2447 = vpack.c.b16 %v2087, %v2079
      %v2448 = vpack.c.b16 %v2088, %v2080
      %v2449 = vpack.c.b16 %v2089, %v2081
      %v2450 = vpack.c.b16 %v2090, %v2082
      %v2451 = vpack.c.b16 %v2091, %v2083
      %v2452 = vpack.c.b16 %v2092, %v2084
      %v2453 = vpack.c.b16 %v2093, %v2085
      %v2454 = vpack.c.b16 %v2094, %v2086
      %v2455 = vpack.c.b16 %v2103, %v2095
      %v2456 = vpack.c.b16 %v2104, %v2096
      %v2457 = vpack.c.b16 %v2105, %v2097
      %v2458 = vpack.c.b16 %v2106, %v2098
      %v2459 = vpack.c.b16 %v2107, %v2099
      %v2460 = vpack.c.b16 %v2108, %v2100
      %v2461 = vpack.c.b16 %v2109, %v2101
      %v2462 = vpack.c.b16 %v2110, %v2102
      %v2463 = vpack.c.b16 %v2119, %v2111
      %v2464 = vpack.c.b16 %v2120, %v2112
      %v2465 = vpack.c.b16 %v2121, %v2113
      %v2466 = vpack.c.b16 %v2122, %v2114
      %v2467 = vpack.c.b16 %v2123, %v2115
      %v2468 = vpack.c.b16 %v2124, %v2116
      %v2469 = vpack.c.b16 %v2125, %v2117
      %v2470 = vpack.c.b16 %v2126, %v2118
      %v2471 = vpack.c.b16 %v2135, %v2127
      %v2472 = vpack.c.b16 %v2136, %v2128
      %v2473 = vpack.c.b16 %v2137, %v2129
      %v2474 = vpack.c.b16 %v2138, %v2130
      %v2475 = vpack.c.b16 %v2139, %v2131
      %v2476 = vpack.c.b16 %v2140, %v2132
      %v2477 = vpack.c.b16 %v2141, %v2133
      %v2478 = vpack.c.b16 %v2142, %v2134
      %v2479 = vpack.c.b16 %v2151, %v2143
      %v2480 = vpack.c.b16 %v2152, %v2144
      %v2481 = vpack.c.b16 %v2153, %v2145
      %v2482 = vpack.c.b16 %v2154, %v2146
      %v2483 = vpack.c.b16 %v2155, %v2147
      %v2484 = vpack.c.b16 %v2156, %v2148
      %v2485 = vpack.c.b16 %v2157, %v2149
      %v2486 = vpack.c.b16 %v2158, %v2150
      %v2487 = vpack.c.b16 %v2167, %v2159
      %v2488 = vpack.c.b16 %v2168, %v2160
      %v2489 = vpack.c.b16 %v2169, %v2161
      %v2490 = vpack.c.b16 %v2170, %v2162
      %v2491 = vpack.c.b16 %v2171, %v2163
      %v2492 = vpack.c.b16 %v2172, %v2164
      %v2493 = vpack.c.b16 %v2173, %v2165
      %v2494 = vpack.c.b16 %v2174, %v2166
      %v2495 = vpack.c.b16 %v2183, %v2175
      %v2496 = vpack.c.b16 %v2184, %v2176
      %v2497 = vpack.c.b16 %v2185, %v2177
      %v2498 = vpack.c.b16 %v2186, %v2178
      %v2499 = vpack.c.b16 %v2187, %v2179
      %v2500 = vpack.c.b16 %v2188, %v2180
      %v2501 = vpack.c.b16 %v2189, %v2181
      %v2502 = vpack.c.b16 %v2190, %v2182
      %v2503 = vpack.c.b16 %v2199, %v2191
      %v2504 = vpack.c.b16 %v2200, %v2192
      %v2505 = vpack.c.b16 %v2201, %v2193
      %v2506 = vpack.c.b16 %v2202, %v2194
      %v2507 = vpack.c.b16 %v2203, %v2195
      %v2508 = vpack.c.b16 %v2204, %v2196
      %v2509 = vpack.c.b16 %v2205, %v2197
      %v2510 = vpack.c.b16 %v2206, %v2198
      %vm2815 = vcmask 785408
      %v2817 = vsel %vm2815, %v1290, 0
      %2819 = vmatpush.bf16.msra.mxu0 %v2263
      %2820 = vmatpush.bf16.msra.mxu0 %v2255
      %2821 = vmatpush.bf16.msra.mxu0 %v2247
      %2822 = vmatpush.bf16.msra.mxu0 %v2239
      %2823 = vmatpush.bf16.msra.mxu0 %v2231
      %2824 = vmatpush.bf16.msra.mxu0 %v2223
      %2825 = vmatpush.bf16.msra.mxu0 %v2215
      %2826 = vmatpush.bf16.msra.mxu0 %v2207
      %2827 = vmatmul.bf16.gmra.mxu0 %v1262
      %v2828 = vpop.f32.mrf.mxu0
      %v2829 = vadd.f32 0.0, %v2828
      %v2830 = vpop.f32.mrf.mxu0
      %v2831 = vadd.f32 0.0, %v2830
      %2832 = vdwg.mxu0
      %2833 = vmatpush.bf16.msra.mxu0 %v2327
      %2834 = vmatpush.bf16.msra.mxu0 %v2319
      %2835 = vmatpush.bf16.msra.mxu0 %v2311
      %2836 = vmatpush.bf16.msra.mxu0 %v2303
      %2837 = vmatpush.bf16.msra.mxu0 %v2295
      %2838 = vmatpush.bf16.msra.mxu0 %v2287
      %2839 = vmatpush.bf16.msra.mxu0 %v2279
      %2840 = vmatpush.bf16.msra.mxu0 %v2271
      %2841 = vmatmul.bf16.gmra.mxu0 %v1269
      %v2842 = vpop.f32.mrf.mxu0
      %v2843 = vadd.f32 %v2829, %v2842
      %v2844 = vpop.f32.mrf.mxu0
      %v2845 = vadd.f32 %v2831, %v2844
      %2846 = vdwg.mxu0
      %2847 = vmatpush.bf16.msra.mxu0 %v2391
      %2848 = vmatpush.bf16.msra.mxu0 %v2383
      %2849 = vmatpush.bf16.msra.mxu0 %v2375
      %2850 = vmatpush.bf16.msra.mxu0 %v2367
      %2851 = vmatpush.bf16.msra.mxu0 %v2359
      %2852 = vmatpush.bf16.msra.mxu0 %v2351
      %2853 = vmatpush.bf16.msra.mxu0 %v2343
      %2854 = vmatpush.bf16.msra.mxu0 %v2335
      %2855 = vmatmul.bf16.gmra.mxu0 %v1276
      %v2856 = vpop.f32.mrf.mxu0
      %v2857 = vadd.f32 %v2843, %v2856
      %v2858 = vpop.f32.mrf.mxu0
      %v2859 = vadd.f32 %v2845, %v2858
      %2860 = vdwg.mxu0
      %2861 = vmatpush.bf16.msra.mxu0 %v2455
      %2862 = vmatpush.bf16.msra.mxu0 %v2447
      %2863 = vmatpush.bf16.msra.mxu0 %v2439
      %2864 = vmatpush.bf16.msra.mxu0 %v2431
      %2865 = vmatpush.bf16.msra.mxu0 %v2423
      %2866 = vmatpush.bf16.msra.mxu0 %v2415
      %2867 = vmatpush.bf16.msra.mxu0 %v2407
      %2868 = vmatpush.bf16.msra.mxu0 %v2399
      %2869 = vmatmul.bf16.gmra.mxu0 %v1283
      %v2870 = vpop.f32.mrf.mxu0
      %v2871 = vadd.f32 %v2857, %v2870
      %v2872 = vpop.f32.mrf.mxu0
      %v2873 = vadd.f32 %v2859, %v2872
      %2874 = vdwg.mxu0
      %2875 = vmatpush.bf16.msra.mxu0 0
      %2876 = vmatpush.bf16.msra.mxu0 0
      %2877 = vmatpush.bf16.msra.mxu0 %v2503
      %2878 = vmatpush.bf16.msra.mxu0 %v2495
      %2879 = vmatpush.bf16.msra.mxu0 %v2487
      %2880 = vmatpush.bf16.msra.mxu0 %v2479
      %2881 = vmatpush.bf16.msra.mxu0 %v2471
      %2882 = vmatpush.bf16.msra.mxu0 %v2463
      %2883 = vmatmul.bf16.gmra.mxu0 %v2817
      %v2884 = vpop.f32.mrf.mxu0
      %v2885 = vadd.f32 %v2871, %v2884
      %v2886 = vpop.f32.mrf.mxu0
      %v2887 = vadd.f32 %v2873, %v2886
      %2888 = vdwg.mxu0
      %2889 = vmatpush.bf16.msra.mxu0 %v2264
      %2890 = vmatpush.bf16.msra.mxu0 %v2256
      %2891 = vmatpush.bf16.msra.mxu0 %v2248
      %2892 = vmatpush.bf16.msra.mxu0 %v2240
      %2893 = vmatpush.bf16.msra.mxu0 %v2232
      %2894 = vmatpush.bf16.msra.mxu0 %v2224
      %2895 = vmatpush.bf16.msra.mxu0 %v2216
      %2896 = vmatpush.bf16.msra.mxu0 %v2208
      %2897 = vmatmul.bf16.gmra.mxu0 %v1262
      %v2898 = vpop.f32.mrf.mxu0
      %v2899 = vadd.f32 0.0, %v2898
      %v2900 = vpop.f32.mrf.mxu0
      %v2901 = vadd.f32 0.0, %v2900
      %2902 = vdwg.mxu0
      %2903 = vmatpush.bf16.msra.mxu0 %v2328
      %2904 = vmatpush.bf16.msra.mxu0 %v2320
      %2905 = vmatpush.bf16.msra.mxu0 %v2312
      %2906 = vmatpush.bf16.msra.mxu0 %v2304
      %2907 = vmatpush.bf16.msra.mxu0 %v2296
      %2908 = vmatpush.bf16.msra.mxu0 %v2288
      %2909 = vmatpush.bf16.msra.mxu0 %v2280
      %2910 = vmatpush.bf16.msra.mxu0 %v2272
      %2911 = vmatmul.bf16.gmra.mxu0 %v1269
      %v2912 = vpop.f32.mrf.mxu0
      %v2913 = vadd.f32 %v2899, %v2912
      %v2914 = vpop.f32.mrf.mxu0
      %v2915 = vadd.f32 %v2901, %v2914
      %2916 = vdwg.mxu0
      %2917 = vmatpush.bf16.msra.mxu0 %v2392
      %2918 = vmatpush.bf16.msra.mxu0 %v2384
      %2919 = vmatpush.bf16.msra.mxu0 %v2376
      %2920 = vmatpush.bf16.msra.mxu0 %v2368
      %2921 = vmatpush.bf16.msra.mxu0 %v2360
      %2922 = vmatpush.bf16.msra.mxu0 %v2352
      %2923 = vmatpush.bf16.msra.mxu0 %v2344
      %2924 = vmatpush.bf16.msra.mxu0 %v2336
      %2925 = vmatmul.bf16.gmra.mxu0 %v1276
      %v2926 = vpop.f32.mrf.mxu0
      %v2927 = vadd.f32 %v2913, %v2926
      %v2928 = vpop.f32.mrf.mxu0
      %v2929 = vadd.f32 %v2915, %v2928
      %2930 = vdwg.mxu0
      %2931 = vmatpush.bf16.msra.mxu0 %v2456
      %2932 = vmatpush.bf16.msra.mxu0 %v2448
      %2933 = vmatpush.bf16.msra.mxu0 %v2440
      %2934 = vmatpush.bf16.msra.mxu0 %v2432
      %2935 = vmatpush.bf16.msra.mxu0 %v2424
      %2936 = vmatpush.bf16.msra.mxu0 %v2416
      %2937 = vmatpush.bf16.msra.mxu0 %v2408
      %2938 = vmatpush.bf16.msra.mxu0 %v2400
      %2939 = vmatmul.bf16.gmra.mxu0 %v1283
      %v2940 = vpop.f32.mrf.mxu0
      %v2941 = vadd.f32 %v2927, %v2940
      %v2942 = vpop.f32.mrf.mxu0
      %v2943 = vadd.f32 %v2929, %v2942
      %2944 = vdwg.mxu0
      %2945 = vmatpush.bf16.msra.mxu0 0
      %2946 = vmatpush.bf16.msra.mxu0 0
      %2947 = vmatpush.bf16.msra.mxu0 %v2504
      %2948 = vmatpush.bf16.msra.mxu0 %v2496
      %2949 = vmatpush.bf16.msra.mxu0 %v2488
      %2950 = vmatpush.bf16.msra.mxu0 %v2480
      %2951 = vmatpush.bf16.msra.mxu0 %v2472
      %2952 = vmatpush.bf16.msra.mxu0 %v2464
      %2953 = vmatmul.bf16.gmra.mxu0 %v2817
      %v2954 = vpop.f32.mrf.mxu0
      %v2955 = vadd.f32 %v2941, %v2954
      %v2956 = vpop.f32.mrf.mxu0
      %v2957 = vadd.f32 %v2943, %v2956
      %2958 = vdwg.mxu0
      %2959 = vmatpush.bf16.msra.mxu0 %v2265
      %2960 = vmatpush.bf16.msra.mxu0 %v2257
      %2961 = vmatpush.bf16.msra.mxu0 %v2249
      %2962 = vmatpush.bf16.msra.mxu0 %v2241
      %2963 = vmatpush.bf16.msra.mxu0 %v2233
      %2964 = vmatpush.bf16.msra.mxu0 %v2225
      %2965 = vmatpush.bf16.msra.mxu0 %v2217
      %2966 = vmatpush.bf16.msra.mxu0 %v2209
      %2967 = vmatmul.bf16.gmra.mxu0 %v1262
      %v2968 = vpop.f32.mrf.mxu0
      %v2969 = vadd.f32 0.0, %v2968
      %v2970 = vpop.f32.mrf.mxu0
      %v2971 = vadd.f32 0.0, %v2970
      %2972 = vdwg.mxu0
      %2973 = vmatpush.bf16.msra.mxu0 %v2329
      %2974 = vmatpush.bf16.msra.mxu0 %v2321
      %2975 = vmatpush.bf16.msra.mxu0 %v2313
      %2976 = vmatpush.bf16.msra.mxu0 %v2305
      %2977 = vmatpush.bf16.msra.mxu0 %v2297
      %2978 = vmatpush.bf16.msra.mxu0 %v2289
      %2979 = vmatpush.bf16.msra.mxu0 %v2281
      %2980 = vmatpush.bf16.msra.mxu0 %v2273
      %2981 = vmatmul.bf16.gmra.mxu0 %v1269
      %v2982 = vpop.f32.mrf.mxu0
      %v2983 = vadd.f32 %v2969, %v2982
      %v2984 = vpop.f32.mrf.mxu0
      %v2985 = vadd.f32 %v2971, %v2984
      %2986 = vdwg.mxu0
      %2987 = vmatpush.bf16.msra.mxu0 %v2393
      %2988 = vmatpush.bf16.msra.mxu0 %v2385
      %2989 = vmatpush.bf16.msra.mxu0 %v2377
      %2990 = vmatpush.bf16.msra.mxu0 %v2369
      %2991 = vmatpush.bf16.msra.mxu0 %v2361
      %2992 = vmatpush.bf16.msra.mxu0 %v2353
      %2993 = vmatpush.bf16.msra.mxu0 %v2345
      %2994 = vmatpush.bf16.msra.mxu0 %v2337
      %2995 = vmatmul.bf16.gmra.mxu0 %v1276
      %v2996 = vpop.f32.mrf.mxu0
      %v2997 = vadd.f32 %v2983, %v2996
      %v2998 = vpop.f32.mrf.mxu0
      %v2999 = vadd.f32 %v2985, %v2998
      %3000 = vdwg.mxu0
      %3001 = vmatpush.bf16.msra.mxu0 %v2457
      %3002 = vmatpush.bf16.msra.mxu0 %v2449
      %3003 = vmatpush.bf16.msra.mxu0 %v2441
      %3004 = vmatpush.bf16.msra.mxu0 %v2433
      %3005 = vmatpush.bf16.msra.mxu0 %v2425
      %3006 = vmatpush.bf16.msra.mxu0 %v2417
      %3007 = vmatpush.bf16.msra.mxu0 %v2409
      %3008 = vmatpush.bf16.msra.mxu0 %v2401
      %3009 = vmatmul.bf16.gmra.mxu0 %v1283
      %v3010 = vpop.f32.mrf.mxu0
      %v3011 = vadd.f32 %v2997, %v3010
      %v3012 = vpop.f32.mrf.mxu0
      %v3013 = vadd.f32 %v2999, %v3012
      %3014 = vdwg.mxu0
      %3015 = vmatpush.bf16.msra.mxu0 0
      %3016 = vmatpush.bf16.msra.mxu0 0
      %3017 = vmatpush.bf16.msra.mxu0 %v2505
      %3018 = vmatpush.bf16.msra.mxu0 %v2497
      %3019 = vmatpush.bf16.msra.mxu0 %v2489
      %3020 = vmatpush.bf16.msra.mxu0 %v2481
      %3021 = vmatpush.bf16.msra.mxu0 %v2473
      %3022 = vmatpush.bf16.msra.mxu0 %v2465
      %3023 = vmatmul.bf16.gmra.mxu0 %v2817
      %v3024 = vpop.f32.mrf.mxu0
      %v3025 = vadd.f32 %v3011, %v3024
      %v3026 = vpop.f32.mrf.mxu0
      %v3027 = vadd.f32 %v3013, %v3026
      %3028 = vdwg.mxu0
      %3029 = vmatpush.bf16.msra.mxu0 %v2266
      %3030 = vmatpush.bf16.msra.mxu0 %v2258
      %3031 = vmatpush.bf16.msra.mxu0 %v2250
      %3032 = vmatpush.bf16.msra.mxu0 %v2242
      %3033 = vmatpush.bf16.msra.mxu0 %v2234
      %3034 = vmatpush.bf16.msra.mxu0 %v2226
      %3035 = vmatpush.bf16.msra.mxu0 %v2218
      %3036 = vmatpush.bf16.msra.mxu0 %v2210
      %3037 = vmatmul.bf16.gmra.mxu0 %v1262
      %v3038 = vpop.f32.mrf.mxu0
      %v3039 = vadd.f32 0.0, %v3038
      %v3040 = vpop.f32.mrf.mxu0
      %v3041 = vadd.f32 0.0, %v3040
      %3042 = vdwg.mxu0
      %3043 = vmatpush.bf16.msra.mxu0 %v2330
      %3044 = vmatpush.bf16.msra.mxu0 %v2322
      %3045 = vmatpush.bf16.msra.mxu0 %v2314
      %3046 = vmatpush.bf16.msra.mxu0 %v2306
      %3047 = vmatpush.bf16.msra.mxu0 %v2298
      %3048 = vmatpush.bf16.msra.mxu0 %v2290
      %3049 = vmatpush.bf16.msra.mxu0 %v2282
      %3050 = vmatpush.bf16.msra.mxu0 %v2274
      %3051 = vmatmul.bf16.gmra.mxu0 %v1269
      %v3052 = vpop.f32.mrf.mxu0
      %v3053 = vadd.f32 %v3039, %v3052
      %v3054 = vpop.f32.mrf.mxu0
      %v3055 = vadd.f32 %v3041, %v3054
      %3056 = vdwg.mxu0
      %3057 = vmatpush.bf16.msra.mxu0 %v2394
      %3058 = vmatpush.bf16.msra.mxu0 %v2386
      %3059 = vmatpush.bf16.msra.mxu0 %v2378
      %3060 = vmatpush.bf16.msra.mxu0 %v2370
      %3061 = vmatpush.bf16.msra.mxu0 %v2362
      %3062 = vmatpush.bf16.msra.mxu0 %v2354
      %3063 = vmatpush.bf16.msra.mxu0 %v2346
      %3064 = vmatpush.bf16.msra.mxu0 %v2338
      %3065 = vmatmul.bf16.gmra.mxu0 %v1276
      %v3066 = vpop.f32.mrf.mxu0
      %v3067 = vadd.f32 %v3053, %v3066
      %v3068 = vpop.f32.mrf.mxu0
      %v3069 = vadd.f32 %v3055, %v3068
      %3070 = vdwg.mxu0
      %3071 = vmatpush.bf16.msra.mxu0 %v2458
      %3072 = vmatpush.bf16.msra.mxu0 %v2450
      %3073 = vmatpush.bf16.msra.mxu0 %v2442
      %3074 = vmatpush.bf16.msra.mxu0 %v2434
      %3075 = vmatpush.bf16.msra.mxu0 %v2426
      %3076 = vmatpush.bf16.msra.mxu0 %v2418
      %3077 = vmatpush.bf16.msra.mxu0 %v2410
      %3078 = vmatpush.bf16.msra.mxu0 %v2402
      %3079 = vmatmul.bf16.gmra.mxu0 %v1283
      %v3080 = vpop.f32.mrf.mxu0
      %v3081 = vadd.f32 %v3067, %v3080
      %v3082 = vpop.f32.mrf.mxu0
      %v3083 = vadd.f32 %v3069, %v3082
      %3084 = vdwg.mxu0
      %3085 = vmatpush.bf16.msra.mxu0 0
      %3086 = vmatpush.bf16.msra.mxu0 0
      %3087 = vmatpush.bf16.msra.mxu0 %v2506
      %3088 = vmatpush.bf16.msra.mxu0 %v2498
      %3089 = vmatpush.bf16.msra.mxu0 %v2490
      %3090 = vmatpush.bf16.msra.mxu0 %v2482
      %3091 = vmatpush.bf16.msra.mxu0 %v2474
      %3092 = vmatpush.bf16.msra.mxu0 %v2466
      %3093 = vmatmul.bf16.gmra.mxu0 %v2817
      %v3094 = vpop.f32.mrf.mxu0
      %v3095 = vadd.f32 %v3081, %v3094
      %v3096 = vpop.f32.mrf.mxu0
      %v3097 = vadd.f32 %v3083, %v3096
      %3098 = vdwg.mxu0
      %3099 = vmatpush.bf16.msra.mxu0 %v2267
      %3100 = vmatpush.bf16.msra.mxu0 %v2259
      %3101 = vmatpush.bf16.msra.mxu0 %v2251
      %3102 = vmatpush.bf16.msra.mxu0 %v2243
      %3103 = vmatpush.bf16.msra.mxu0 %v2235
      %3104 = vmatpush.bf16.msra.mxu0 %v2227
      %3105 = vmatpush.bf16.msra.mxu0 %v2219
      %3106 = vmatpush.bf16.msra.mxu0 %v2211
      %3107 = vmatmul.bf16.gmra.mxu0 %v1262
      %v3108 = vpop.f32.mrf.mxu0
      %v3109 = vadd.f32 0.0, %v3108
      %v3110 = vpop.f32.mrf.mxu0
      %v3111 = vadd.f32 0.0, %v3110
      %3112 = vdwg.mxu0
      %3113 = vmatpush.bf16.msra.mxu0 %v2331
      %3114 = vmatpush.bf16.msra.mxu0 %v2323
      %3115 = vmatpush.bf16.msra.mxu0 %v2315
      %3116 = vmatpush.bf16.msra.mxu0 %v2307
      %3117 = vmatpush.bf16.msra.mxu0 %v2299
      %3118 = vmatpush.bf16.msra.mxu0 %v2291
      %3119 = vmatpush.bf16.msra.mxu0 %v2283
      %3120 = vmatpush.bf16.msra.mxu0 %v2275
      %3121 = vmatmul.bf16.gmra.mxu0 %v1269
      %v3122 = vpop.f32.mrf.mxu0
      %v3123 = vadd.f32 %v3109, %v3122
      %v3124 = vpop.f32.mrf.mxu0
      %v3125 = vadd.f32 %v3111, %v3124
      %3126 = vdwg.mxu0
      %3127 = vmatpush.bf16.msra.mxu0 %v2395
      %3128 = vmatpush.bf16.msra.mxu0 %v2387
      %3129 = vmatpush.bf16.msra.mxu0 %v2379
      %3130 = vmatpush.bf16.msra.mxu0 %v2371
      %3131 = vmatpush.bf16.msra.mxu0 %v2363
      %3132 = vmatpush.bf16.msra.mxu0 %v2355
      %3133 = vmatpush.bf16.msra.mxu0 %v2347
      %3134 = vmatpush.bf16.msra.mxu0 %v2339
      %3135 = vmatmul.bf16.gmra.mxu0 %v1276
      %v3136 = vpop.f32.mrf.mxu0
      %v3137 = vadd.f32 %v3123, %v3136
      %v3138 = vpop.f32.mrf.mxu0
      %v3139 = vadd.f32 %v3125, %v3138
      %3140 = vdwg.mxu0
      %3141 = vmatpush.bf16.msra.mxu0 %v2459
      %3142 = vmatpush.bf16.msra.mxu0 %v2451
      %3143 = vmatpush.bf16.msra.mxu0 %v2443
      %3144 = vmatpush.bf16.msra.mxu0 %v2435
      %3145 = vmatpush.bf16.msra.mxu0 %v2427
      %3146 = vmatpush.bf16.msra.mxu0 %v2419
      %3147 = vmatpush.bf16.msra.mxu0 %v2411
      %3148 = vmatpush.bf16.msra.mxu0 %v2403
      %3149 = vmatmul.bf16.gmra.mxu0 %v1283
      %v3150 = vpop.f32.mrf.mxu0
      %v3151 = vadd.f32 %v3137, %v3150
      %v3152 = vpop.f32.mrf.mxu0
      %v3153 = vadd.f32 %v3139, %v3152
      %3154 = vdwg.mxu0
      %3155 = vmatpush.bf16.msra.mxu0 0
      %3156 = vmatpush.bf16.msra.mxu0 0
      %3157 = vmatpush.bf16.msra.mxu0 %v2507
      %3158 = vmatpush.bf16.msra.mxu0 %v2499
      %3159 = vmatpush.bf16.msra.mxu0 %v2491
      %3160 = vmatpush.bf16.msra.mxu0 %v2483
      %3161 = vmatpush.bf16.msra.mxu0 %v2475
      %3162 = vmatpush.bf16.msra.mxu0 %v2467
      %3163 = vmatmul.bf16.gmra.mxu0 %v2817
      %v3164 = vpop.f32.mrf.mxu0
      %v3165 = vadd.f32 %v3151, %v3164
      %v3166 = vpop.f32.mrf.mxu0
      %v3167 = vadd.f32 %v3153, %v3166
      %3168 = vdwg.mxu0
      %3169 = vmatpush.bf16.msra.mxu0 %v2268
      %3170 = vmatpush.bf16.msra.mxu0 %v2260
      %3171 = vmatpush.bf16.msra.mxu0 %v2252
      %3172 = vmatpush.bf16.msra.mxu0 %v2244
      %3173 = vmatpush.bf16.msra.mxu0 %v2236
      %3174 = vmatpush.bf16.msra.mxu0 %v2228
      %3175 = vmatpush.bf16.msra.mxu0 %v2220
      %3176 = vmatpush.bf16.msra.mxu0 %v2212
      %3177 = vmatmul.bf16.gmra.mxu0 %v1262
      %v3178 = vpop.f32.mrf.mxu0
      %v3179 = vadd.f32 0.0, %v3178
      %v3180 = vpop.f32.mrf.mxu0
      %v3181 = vadd.f32 0.0, %v3180
      %3182 = vdwg.mxu0
      %3183 = vmatpush.bf16.msra.mxu0 %v2332
      %3184 = vmatpush.bf16.msra.mxu0 %v2324
      %3185 = vmatpush.bf16.msra.mxu0 %v2316
      %3186 = vmatpush.bf16.msra.mxu0 %v2308
      %3187 = vmatpush.bf16.msra.mxu0 %v2300
      %3188 = vmatpush.bf16.msra.mxu0 %v2292
      %3189 = vmatpush.bf16.msra.mxu0 %v2284
      %3190 = vmatpush.bf16.msra.mxu0 %v2276
      %3191 = vmatmul.bf16.gmra.mxu0 %v1269
      %v3192 = vpop.f32.mrf.mxu0
      %v3193 = vadd.f32 %v3179, %v3192
      %v3194 = vpop.f32.mrf.mxu0
      %v3195 = vadd.f32 %v3181, %v3194
      %3196 = vdwg.mxu0
      %3197 = vmatpush.bf16.msra.mxu0 %v2396
      %3198 = vmatpush.bf16.msra.mxu0 %v2388
      %3199 = vmatpush.bf16.msra.mxu0 %v2380
      %3200 = vmatpush.bf16.msra.mxu0 %v2372
      %3201 = vmatpush.bf16.msra.mxu0 %v2364
      %3202 = vmatpush.bf16.msra.mxu0 %v2356
      %3203 = vmatpush.bf16.msra.mxu0 %v2348
      %3204 = vmatpush.bf16.msra.mxu0 %v2340
      %3205 = vmatmul.bf16.gmra.mxu0 %v1276
      %v3206 = vpop.f32.mrf.mxu0
      %v3207 = vadd.f32 %v3193, %v3206
      %v3208 = vpop.f32.mrf.mxu0
      %v3209 = vadd.f32 %v3195, %v3208
      %3210 = vdwg.mxu0
      %3211 = vmatpush.bf16.msra.mxu0 %v2460
      %3212 = vmatpush.bf16.msra.mxu0 %v2452
      %3213 = vmatpush.bf16.msra.mxu0 %v2444
      %3214 = vmatpush.bf16.msra.mxu0 %v2436
      %3215 = vmatpush.bf16.msra.mxu0 %v2428
      %3216 = vmatpush.bf16.msra.mxu0 %v2420
      %3217 = vmatpush.bf16.msra.mxu0 %v2412
      %3218 = vmatpush.bf16.msra.mxu0 %v2404
      %3219 = vmatmul.bf16.gmra.mxu0 %v1283
      %v3220 = vpop.f32.mrf.mxu0
      %v3221 = vadd.f32 %v3207, %v3220
      %v3222 = vpop.f32.mrf.mxu0
      %v3223 = vadd.f32 %v3209, %v3222
      %3224 = vdwg.mxu0
      %3225 = vmatpush.bf16.msra.mxu0 0
      %3226 = vmatpush.bf16.msra.mxu0 0
      %3227 = vmatpush.bf16.msra.mxu0 %v2508
      %3228 = vmatpush.bf16.msra.mxu0 %v2500
      %3229 = vmatpush.bf16.msra.mxu0 %v2492
      %3230 = vmatpush.bf16.msra.mxu0 %v2484
      %3231 = vmatpush.bf16.msra.mxu0 %v2476
      %3232 = vmatpush.bf16.msra.mxu0 %v2468
      %3233 = vmatmul.bf16.gmra.mxu0 %v2817
      %v3234 = vpop.f32.mrf.mxu0
      %v3235 = vadd.f32 %v3221, %v3234
      %v3236 = vpop.f32.mrf.mxu0
      %v3237 = vadd.f32 %v3223, %v3236
      %3238 = vdwg.mxu0
      %3239 = vmatpush.bf16.msra.mxu0 %v2269
      %3240 = vmatpush.bf16.msra.mxu0 %v2261
      %3241 = vmatpush.bf16.msra.mxu0 %v2253
      %3242 = vmatpush.bf16.msra.mxu0 %v2245
      %3243 = vmatpush.bf16.msra.mxu0 %v2237
      %3244 = vmatpush.bf16.msra.mxu0 %v2229
      %3245 = vmatpush.bf16.msra.mxu0 %v2221
      %3246 = vmatpush.bf16.msra.mxu0 %v2213
      %3247 = vmatmul.bf16.gmra.mxu0 %v1262
      %v3248 = vpop.f32.mrf.mxu0
      %v3249 = vadd.f32 0.0, %v3248
      %v3250 = vpop.f32.mrf.mxu0
      %v3251 = vadd.f32 0.0, %v3250
      %3252 = vdwg.mxu0
      %3253 = vmatpush.bf16.msra.mxu0 %v2333
      %3254 = vmatpush.bf16.msra.mxu0 %v2325
      %3255 = vmatpush.bf16.msra.mxu0 %v2317
      %3256 = vmatpush.bf16.msra.mxu0 %v2309
      %3257 = vmatpush.bf16.msra.mxu0 %v2301
      %3258 = vmatpush.bf16.msra.mxu0 %v2293
      %3259 = vmatpush.bf16.msra.mxu0 %v2285
      %3260 = vmatpush.bf16.msra.mxu0 %v2277
      %3261 = vmatmul.bf16.gmra.mxu0 %v1269
      %v3262 = vpop.f32.mrf.mxu0
      %v3263 = vadd.f32 %v3249, %v3262
      %v3264 = vpop.f32.mrf.mxu0
      %v3265 = vadd.f32 %v3251, %v3264
      %3266 = vdwg.mxu0
      %3267 = vmatpush.bf16.msra.mxu0 %v2397
      %3268 = vmatpush.bf16.msra.mxu0 %v2389
      %3269 = vmatpush.bf16.msra.mxu0 %v2381
      %3270 = vmatpush.bf16.msra.mxu0 %v2373
      %3271 = vmatpush.bf16.msra.mxu0 %v2365
      %3272 = vmatpush.bf16.msra.mxu0 %v2357
      %3273 = vmatpush.bf16.msra.mxu0 %v2349
      %3274 = vmatpush.bf16.msra.mxu0 %v2341
      %3275 = vmatmul.bf16.gmra.mxu0 %v1276
      %v3276 = vpop.f32.mrf.mxu0
      %v3277 = vadd.f32 %v3263, %v3276
      %v3278 = vpop.f32.mrf.mxu0
      %v3279 = vadd.f32 %v3265, %v3278
      %3280 = vdwg.mxu0
      %3281 = vmatpush.bf16.msra.mxu0 %v2461
      %3282 = vmatpush.bf16.msra.mxu0 %v2453
      %3283 = vmatpush.bf16.msra.mxu0 %v2445
      %3284 = vmatpush.bf16.msra.mxu0 %v2437
      %3285 = vmatpush.bf16.msra.mxu0 %v2429
      %3286 = vmatpush.bf16.msra.mxu0 %v2421
      %3287 = vmatpush.bf16.msra.mxu0 %v2413
      %3288 = vmatpush.bf16.msra.mxu0 %v2405
      %3289 = vmatmul.bf16.gmra.mxu0 %v1283
      %v3290 = vpop.f32.mrf.mxu0
      %v3291 = vadd.f32 %v3277, %v3290
      %v3292 = vpop.f32.mrf.mxu0
      %v3293 = vadd.f32 %v3279, %v3292
      %3294 = vdwg.mxu0
      %3295 = vmatpush.bf16.msra.mxu0 0
      %3296 = vmatpush.bf16.msra.mxu0 0
      %3297 = vmatpush.bf16.msra.mxu0 %v2509
      %3298 = vmatpush.bf16.msra.mxu0 %v2501
      %3299 = vmatpush.bf16.msra.mxu0 %v2493
      %3300 = vmatpush.bf16.msra.mxu0 %v2485
      %3301 = vmatpush.bf16.msra.mxu0 %v2477
      %3302 = vmatpush.bf16.msra.mxu0 %v2469
      %3303 = vmatmul.bf16.gmra.mxu0 %v2817
      %v3304 = vpop.f32.mrf.mxu0
      %v3305 = vadd.f32 %v3291, %v3304
      %v3306 = vpop.f32.mrf.mxu0
      %v3307 = vadd.f32 %v3293, %v3306
      %3308 = vdwg.mxu0
      %3309 = vmatpush.bf16.msra.mxu0 %v2270
      %3310 = vmatpush.bf16.msra.mxu0 %v2262
      %3311 = vmatpush.bf16.msra.mxu0 %v2254
      %3312 = vmatpush.bf16.msra.mxu0 %v2246
      %3313 = vmatpush.bf16.msra.mxu0 %v2238
      %3314 = vmatpush.bf16.msra.mxu0 %v2230
      %3315 = vmatpush.bf16.msra.mxu0 %v2222
      %3316 = vmatpush.bf16.msra.mxu0 %v2214
      %3317 = vmatmul.bf16.gmra.mxu0 %v1262
      %v3318 = vpop.f32.mrf.mxu0
      %v3319 = vadd.f32 0.0, %v3318
      %v3320 = vpop.f32.mrf.mxu0
      %v3321 = vadd.f32 0.0, %v3320
      %3322 = vdwg.mxu0
      %3323 = vmatpush.bf16.msra.mxu0 %v2334
      %3324 = vmatpush.bf16.msra.mxu0 %v2326
      %3325 = vmatpush.bf16.msra.mxu0 %v2318
      %3326 = vmatpush.bf16.msra.mxu0 %v2310
      %3327 = vmatpush.bf16.msra.mxu0 %v2302
      %3328 = vmatpush.bf16.msra.mxu0 %v2294
      %3329 = vmatpush.bf16.msra.mxu0 %v2286
      %3330 = vmatpush.bf16.msra.mxu0 %v2278
      %3331 = vmatmul.bf16.gmra.mxu0 %v1269
      %v3332 = vpop.f32.mrf.mxu0
      %v3333 = vadd.f32 %v3319, %v3332
      %v3334 = vpop.f32.mrf.mxu0
      %v3335 = vadd.f32 %v3321, %v3334
      %3336 = vdwg.mxu0
      %3337 = vmatpush.bf16.msra.mxu0 %v2398
      %3338 = vmatpush.bf16.msra.mxu0 %v2390
      %3339 = vmatpush.bf16.msra.mxu0 %v2382
      %3340 = vmatpush.bf16.msra.mxu0 %v2374
      %3341 = vmatpush.bf16.msra.mxu0 %v2366
      %3342 = vmatpush.bf16.msra.mxu0 %v2358
      %3343 = vmatpush.bf16.msra.mxu0 %v2350
      %3344 = vmatpush.bf16.msra.mxu0 %v2342
      %3345 = vmatmul.bf16.gmra.mxu0 %v1276
      %v3346 = vpop.f32.mrf.mxu0
      %v3347 = vadd.f32 %v3333, %v3346
      %v3348 = vpop.f32.mrf.mxu0
      %v3349 = vadd.f32 %v3335, %v3348
      %3350 = vdwg.mxu0
      %3351 = vmatpush.bf16.msra.mxu0 %v2462
      %3352 = vmatpush.bf16.msra.mxu0 %v2454
      %3353 = vmatpush.bf16.msra.mxu0 %v2446
      %3354 = vmatpush.bf16.msra.mxu0 %v2438
      %3355 = vmatpush.bf16.msra.mxu0 %v2430
      %3356 = vmatpush.bf16.msra.mxu0 %v2422
      %3357 = vmatpush.bf16.msra.mxu0 %v2414
      %3358 = vmatpush.bf16.msra.mxu0 %v2406
      %3359 = vmatmul.bf16.gmra.mxu0 %v1283
      %v3360 = vpop.f32.mrf.mxu0
      %v3361 = vadd.f32 %v3347, %v3360
      %v3362 = vpop.f32.mrf.mxu0
      %v3363 = vadd.f32 %v3349, %v3362
      %3364 = vdwg.mxu0
      %3365 = vmatpush.bf16.msra.mxu0 0
      %3366 = vmatpush.bf16.msra.mxu0 0
      %3367 = vmatpush.bf16.msra.mxu0 %v2510
      %3368 = vmatpush.bf16.msra.mxu0 %v2502
      %3369 = vmatpush.bf16.msra.mxu0 %v2494
      %3370 = vmatpush.bf16.msra.mxu0 %v2486
      %3371 = vmatpush.bf16.msra.mxu0 %v2478
      %3372 = vmatpush.bf16.msra.mxu0 %v2470
      %3373 = vmatmul.bf16.gmra.mxu0 %v2817
      %v3374 = vpop.f32.mrf.mxu0
      %v3375 = vadd.f32 %v3361, %v3374
      %v3376 = vpop.f32.mrf.mxu0
      %v3377 = vadd.f32 %v3363, %v3376
      %3378 = vdwg.mxu0
      %v3687 = vunpack.c.l.b16 %v626
      %v3688 = vunpack.c.h.b16 %v626
      %v3689 = vunpack.c.l.b16 %v627
      %v3690 = vunpack.c.h.b16 %v627
      %v3691 = vunpack.c.l.b16 %v628
      %v3692 = vunpack.c.h.b16 %v628
      %v3693 = vunpack.c.l.b16 %v629
      %v3694 = vunpack.c.h.b16 %v629
      %v3695 = vunpack.c.l.b16 %v630
      %v3696 = vunpack.c.h.b16 %v630
      %v3697 = vunpack.c.l.b16 %v631
      %v3698 = vunpack.c.h.b16 %v631
      %v3699 = vunpack.c.l.b16 %v632
      %v3700 = vunpack.c.h.b16 %v632
      %v3701 = vunpack.c.l.b16 %v633
      %v3702 = vunpack.c.h.b16 %v633
      %v3703 = vunpack.c.l.b16 %v634
      %v3704 = vunpack.c.h.b16 %v634
      %v3705 = vunpack.c.l.b16 %v635
      %v3706 = vunpack.c.h.b16 %v635
      %v3707 = vunpack.c.l.b16 %v636
      %v3708 = vunpack.c.h.b16 %v636
      %v3709 = vunpack.c.l.b16 %v637
      %v3710 = vunpack.c.h.b16 %v637
      %v3711 = vunpack.c.l.b16 %v638
      %v3712 = vunpack.c.h.b16 %v638
      %v3713 = vunpack.c.l.b16 %v639
      %v3714 = vunpack.c.h.b16 %v639
      %v3715 = vunpack.c.l.b16 %v640
      %v3716 = vunpack.c.h.b16 %v640
      %v3717 = vunpack.c.l.b16 %v641
      %v3718 = vunpack.c.h.b16 %v641
      %v3719 = vunpack.c.l.b16 %v642
      %v3720 = vunpack.c.h.b16 %v642
      %v3721 = vunpack.c.l.b16 %v643
      %v3722 = vunpack.c.h.b16 %v643
      %v3723 = vunpack.c.l.b16 %v644
      %v3724 = vunpack.c.h.b16 %v644
      %v3725 = vunpack.c.l.b16 %v645
      %v3726 = vunpack.c.h.b16 %v645
      %v3727 = vunpack.c.l.b16 %v646
      %v3728 = vunpack.c.h.b16 %v646
      %v3729 = vunpack.c.l.b16 %v647
      %v3730 = vunpack.c.h.b16 %v647
      %v3731 = vunpack.c.l.b16 %v648
      %v3732 = vunpack.c.h.b16 %v648
      %v3733 = vunpack.c.l.b16 %v649
      %v3734 = vunpack.c.h.b16 %v649
      %v3735 = vunpack.c.l.b16 %v650
      %v3736 = vunpack.c.h.b16 %v650
      %v3737 = vunpack.c.l.b16 %v651
      %v3738 = vunpack.c.h.b16 %v651
      %v3739 = vunpack.c.l.b16 %v652
      %v3740 = vunpack.c.h.b16 %v652
      %v3741 = vunpack.c.l.b16 %v653
      %v3742 = vunpack.c.h.b16 %v653
      %v3743 = vunpack.c.l.b16 %v654
      %v3744 = vunpack.c.h.b16 %v654
      %v3745 = vunpack.c.l.b16 %v655
      %v3746 = vunpack.c.h.b16 %v655
      %v3747 = vunpack.c.l.b16 %v656
      %v3748 = vunpack.c.h.b16 %v656
      %v3749 = vunpack.c.l.b16 %v657
      %v3750 = vunpack.c.h.b16 %v657
      %v3751 = vunpack.c.l.b16 %v658
      %v3752 = vunpack.c.h.b16 %v658
      %v3753 = vunpack.c.l.b16 %v659
      %v3754 = vunpack.c.h.b16 %v659
      %v3755 = vunpack.c.l.b16 %v660
      %v3756 = vunpack.c.h.b16 %v660
      %v3757 = vunpack.c.l.b16 %v661
      %v3758 = vunpack.c.h.b16 %v661
      %v3759 = vunpack.c.l.b16 %v662
      %v3760 = vunpack.c.h.b16 %v662
      %v3761 = vunpack.c.l.b16 %v663
      %v3762 = vunpack.c.h.b16 %v663
      %v3763 = vunpack.c.l.b16 %v664
      %v3764 = vunpack.c.h.b16 %v664
      %v3765 = vunpack.c.l.b16 %v665
      %v3766 = vunpack.c.h.b16 %v665
      %v3767 = vunpack.c.l.b16 %v666
      %v3768 = vunpack.c.h.b16 %v666
      %v3769 = vunpack.c.l.b16 %v667
      %v3770 = vunpack.c.h.b16 %v667
      %v3771 = vunpack.c.l.b16 %v668
      %v3772 = vunpack.c.h.b16 %v668
      %v3773 = vunpack.c.l.b16 %v669
      %v3774 = vunpack.c.h.b16 %v669
      %v3775 = vunpack.c.l.b16 %v670
      %v3776 = vunpack.c.h.b16 %v670
      %v3777 = vunpack.c.l.b16 %v671
      %v3778 = vunpack.c.h.b16 %v671
      %v3779 = vunpack.c.l.b16 %v672
      %v3780 = vunpack.c.h.b16 %v672
      %v3781 = vunpack.c.l.b16 %v673
      %v3782 = vunpack.c.h.b16 %v673
      %v3783 = vunpack.c.l.b16 %v674
      %v3784 = vunpack.c.h.b16 %v674
      %v3785 = vunpack.c.l.b16 %v675
      %v3786 = vunpack.c.h.b16 %v675
      %v3787 = vunpack.c.l.b16 %v676
      %v3788 = vunpack.c.h.b16 %v676
      %v3789 = vunpack.c.l.b16 %v677
      %v3790 = vunpack.c.h.b16 %v677
      %v3791 = vunpack.c.l.b16 %v678
      %v3792 = vunpack.c.h.b16 %v678
      %v3793 = vunpack.c.l.b16 %v679
      %v3794 = vunpack.c.h.b16 %v679
      %v3795 = vunpack.c.l.b16 %v680
      %v3796 = vunpack.c.h.b16 %v680
      %v3797 = vunpack.c.l.b16 %v681
      %v3798 = vunpack.c.h.b16 %v681
      %v3799 = vunpack.c.l.b16 %v682
      %v3800 = vunpack.c.h.b16 %v682
      %v3801 = vunpack.c.l.b16 %v683
      %v3802 = vunpack.c.h.b16 %v683
      %v3803 = vunpack.c.l.b16 %v684
      %v3804 = vunpack.c.h.b16 %v684
      %v3805 = vunpack.c.l.b16 %v685
      %v3806 = vunpack.c.h.b16 %v685
      %v3807 = vunpack.c.l.b16 %v686
      %v3808 = vunpack.c.h.b16 %v686
      %v3809 = vunpack.c.l.b16 %v687
      %v3810 = vunpack.c.h.b16 %v687
      %v3811 = vunpack.c.l.b16 %v688
      %v3812 = vunpack.c.h.b16 %v688
      %v3813 = vunpack.c.l.b16 %v689
      %v3814 = vunpack.c.h.b16 %v689
      %v3815 = vunpack.c.l.b16 %v690
      %v3816 = vunpack.c.h.b16 %v690
      %v3817 = vunpack.c.l.b16 %v691
      %v3818 = vunpack.c.h.b16 %v691
      %v3819 = vunpack.c.l.b16 %v692
      %v3820 = vunpack.c.h.b16 %v692
      %v3821 = vunpack.c.l.b16 %v693
      %v3822 = vunpack.c.h.b16 %v693
      %v3823 = vunpack.c.l.b16 %v694
      %v3824 = vunpack.c.h.b16 %v694
      %v3825 = vunpack.c.l.b16 %v695
      %v3826 = vunpack.c.h.b16 %v695
      %v3827 = vunpack.c.l.b16 %v696
      %v3828 = vunpack.c.h.b16 %v696
      %v3829 = vunpack.c.l.b16 %v697
      %v3830 = vunpack.c.h.b16 %v697
      %v3831 = vunpack.c.l.b16 %v698
      %v3832 = vunpack.c.h.b16 %v698
      %v3833 = vunpack.c.l.b16 %v699
      %v3834 = vunpack.c.h.b16 %v699
      %v3835 = vunpack.c.l.b16 %v700
      %v3836 = vunpack.c.h.b16 %v700
      %v3837 = vunpack.c.l.b16 %v701
      %v3838 = vunpack.c.h.b16 %v701
      %v3839 = vunpack.c.l.b16 %v702
      %v3840 = vunpack.c.h.b16 %v702
      %v3841 = vunpack.c.l.b16 %v703
      %v3842 = vunpack.c.h.b16 %v703
      %v3843 = vunpack.c.l.b16 %v704
      %v3844 = vunpack.c.h.b16 %v704
      %v3845 = vunpack.c.l.b16 %v705
      %v3846 = vunpack.c.h.b16 %v705
      %v3847 = vunpack.c.l.b16 %v706
      %v3848 = vunpack.c.h.b16 %v706
      %v3849 = vunpack.c.l.b16 %v707
      %v3850 = vunpack.c.h.b16 %v707
      %v3851 = vunpack.c.l.b16 %v708
      %v3852 = vunpack.c.h.b16 %v708
      %v3853 = vunpack.c.l.b16 %v709
      %v3854 = vunpack.c.h.b16 %v709
      %v3855 = vunpack.c.l.b16 %v710
      %v3856 = vunpack.c.h.b16 %v710
      %v3857 = vunpack.c.l.b16 %v711
      %v3858 = vunpack.c.h.b16 %v711
      %v3859 = vunpack.c.l.b16 %v712
      %v3860 = vunpack.c.h.b16 %v712
      %v3861 = vunpack.c.l.b16 %v713
      %v3862 = vunpack.c.h.b16 %v713
      %v3863 = vunpack.c.l.b16 %v714
      %v3864 = vunpack.c.h.b16 %v714
      %v3865 = vunpack.c.l.b16 %v715
      %v3866 = vunpack.c.h.b16 %v715
      %v3867 = vunpack.c.l.b16 %v716
      %v3868 = vunpack.c.h.b16 %v716
      %v3869 = vunpack.c.l.b16 %v717
      %v3870 = vunpack.c.h.b16 %v717
      %v3871 = vunpack.c.l.b16 %v718
      %v3872 = vunpack.c.h.b16 %v718
      %v3873 = vunpack.c.l.b16 %v719
      %v3874 = vunpack.c.h.b16 %v719
      %v3875 = vunpack.c.l.b16 %v720
      %v3876 = vunpack.c.h.b16 %v720
      %v3877 = vunpack.c.l.b16 %v721
      %v3878 = vunpack.c.h.b16 %v721
      %v3879 = vunpack.c.l.b16 %v722
      %v3880 = vunpack.c.h.b16 %v722
      %v3881 = vunpack.c.l.b16 %v723
      %v3882 = vunpack.c.h.b16 %v723
      %v3883 = vunpack.c.l.b16 %v724
      %v3884 = vunpack.c.h.b16 %v724
      %v3885 = vunpack.c.l.b16 %v725
      %v3886 = vunpack.c.h.b16 %v725
      %v3887 = vunpack.c.l.b16 %v726
      %v3888 = vunpack.c.h.b16 %v726
      %v3889 = vunpack.c.l.b16 %v727
      %v3890 = vunpack.c.h.b16 %v727
      %v3891 = vunpack.c.l.b16 %v728
      %v3892 = vunpack.c.h.b16 %v728
      %v3893 = vunpack.c.l.b16 %v729
      %v3894 = vunpack.c.h.b16 %v729
      %v3895 = vunpack.c.l.b16 %v730
      %v3896 = vunpack.c.h.b16 %v730
      %v3897 = vunpack.c.l.b16 %v731
      %v3898 = vunpack.c.h.b16 %v731
      %v3899 = vunpack.c.l.b16 %v732
      %v3900 = vunpack.c.h.b16 %v732
      %v3901 = vunpack.c.l.b16 %v733
      %v3902 = vunpack.c.h.b16 %v733
      %v3903 = vunpack.c.l.b16 %v734
      %v3904 = vunpack.c.h.b16 %v734
      %v3905 = vunpack.c.l.b16 %v735
      %v3906 = vunpack.c.h.b16 %v735
      %v3907 = vunpack.c.l.b16 %v736
      %v3908 = vunpack.c.h.b16 %v736
      %v3909 = vunpack.c.l.b16 %v737
      %v3910 = vunpack.c.h.b16 %v737
      %v3911 = vunpack.c.l.b16 %v738
      %v3912 = vunpack.c.h.b16 %v738
      %v3913 = vunpack.c.l.b16 %v739
      %v3914 = vunpack.c.h.b16 %v739
      %v3915 = vunpack.c.l.b16 %v740
      %v3916 = vunpack.c.h.b16 %v740
      %v3917 = vunpack.c.l.b16 %v741
      %v3918 = vunpack.c.h.b16 %v741
      %v3919 = vunpack.c.l.b16 %v742
      %v3920 = vunpack.c.h.b16 %v742
      %v3921 = vunpack.c.l.b16 %v743
      %v3922 = vunpack.c.h.b16 %v743
      %v3923 = vunpack.c.l.b16 %v744
      %v3924 = vunpack.c.h.b16 %v744
      %v3925 = vunpack.c.l.b16 %v745
      %v3926 = vunpack.c.h.b16 %v745
      %v3927 = vunpack.c.l.b16 %v746
      %v3928 = vunpack.c.h.b16 %v746
      %v3929 = vunpack.c.l.b16 %v747
      %v3930 = vunpack.c.h.b16 %v747
      %v3931 = vunpack.c.l.b16 %v748
      %v3932 = vunpack.c.h.b16 %v748
      %v3933 = vunpack.c.l.b16 %v749
      %v3934 = vunpack.c.h.b16 %v749
      %v3935 = vunpack.c.l.b16 %v750
      %v3936 = vunpack.c.h.b16 %v750
      %v3937 = vunpack.c.l.b16 %v751
      %v3938 = vunpack.c.h.b16 %v751
      %v3939 = vunpack.c.l.b16 %v752
      %v3940 = vunpack.c.h.b16 %v752
      %v3941 = vunpack.c.l.b16 %v753
      %v3942 = vunpack.c.h.b16 %v753
      %v3943 = vunpack.c.l.b16 %v754
      %v3944 = vunpack.c.h.b16 %v754
      %v3945 = vunpack.c.l.b16 %v755
      %v3946 = vunpack.c.h.b16 %v755
      %v3947 = vunpack.c.l.b16 %v756
      %v3948 = vunpack.c.h.b16 %v756
      %v3949 = vunpack.c.l.b16 %v757
      %v3950 = vunpack.c.h.b16 %v757
      %v3951 = vunpack.c.l.b16 %v758
      %v3952 = vunpack.c.h.b16 %v758
      %v3953 = vunpack.c.l.b16 %v759
      %v3954 = vunpack.c.h.b16 %v759
      %v3955 = vunpack.c.l.b16 %v760
      %v3956 = vunpack.c.h.b16 %v760
      %v3957 = vunpack.c.l.b16 %v761
      %v3958 = vunpack.c.h.b16 %v761
      %v3959 = vunpack.c.l.b16 %v762
      %v3960 = vunpack.c.h.b16 %v762
      %v3961 = vunpack.c.l.b16 %v763
      %v3962 = vunpack.c.h.b16 %v763
      %v3963 = vunpack.c.l.b16 %v764
      %v3964 = vunpack.c.h.b16 %v764
      %v3965 = vunpack.c.l.b16 %v765
      %v3966 = vunpack.c.h.b16 %v765
      %v3967 = vunpack.c.l.b16 %v766
      %v3968 = vunpack.c.h.b16 %v766
      %v3969 = vunpack.c.l.b16 %v767
      %v3970 = vunpack.c.h.b16 %v767
      %v3971 = vunpack.c.l.b16 %v768
      %v3972 = vunpack.c.h.b16 %v768
      %v3973 = vunpack.c.l.b16 %v769
      %v3974 = vunpack.c.h.b16 %v769
      %v3975 = vunpack.c.l.b16 %v770
      %v3976 = vunpack.c.h.b16 %v770
      %v3977 = vunpack.c.l.b16 %v771
      %v3978 = vunpack.c.h.b16 %v771
      %v3979 = vunpack.c.l.b16 %v772
      %v3980 = vunpack.c.h.b16 %v772
      %v3981 = vunpack.c.l.b16 %v773
      %v3982 = vunpack.c.h.b16 %v773
      %v3983 = vunpack.c.l.b16 %v774
      %v3984 = vunpack.c.h.b16 %v774
      %v3985 = vunpack.c.l.b16 %v775
      %v3986 = vunpack.c.h.b16 %v775
      %v3987 = vunpack.c.l.b16 %v776
      %v3988 = vunpack.c.h.b16 %v776
      %v3989 = vunpack.c.l.b16 %v777
      %v3990 = vunpack.c.h.b16 %v777
      %v3991 = vunpack.c.l.b16 %v778
      %v3992 = vunpack.c.h.b16 %v778
      %v3993 = vunpack.c.l.b16 %v779
      %v3994 = vunpack.c.h.b16 %v779
      %v3995 = vunpack.c.l.b16 %v780
      %v3996 = vunpack.c.h.b16 %v780
      %v3997 = vunpack.c.l.b16 %v781
      %v3998 = vunpack.c.h.b16 %v781
      %v3999 = vunpack.c.l.b16 %v782
      %v4000 = vunpack.c.h.b16 %v782
      %v4001 = vunpack.c.l.b16 %v783
      %v4002 = vunpack.c.h.b16 %v783
      %v4003 = vunpack.c.l.b16 %v784
      %v4004 = vunpack.c.h.b16 %v784
      %v4005 = vunpack.c.l.b16 %v785
      %v4006 = vunpack.c.h.b16 %v785
      %v4007 = vunpack.c.l.b16 %v786
      %v4008 = vunpack.c.h.b16 %v786
      %v4009 = vunpack.c.l.b16 %v787
      %v4010 = vunpack.c.h.b16 %v787
      %v4011 = vunpack.c.l.b16 %v788
      %v4012 = vunpack.c.h.b16 %v788
      %v4013 = vunpack.c.l.b16 %v789
      %v4014 = vunpack.c.h.b16 %v789
      %v4015 = vunpack.c.l.b16 %v790
      %v4016 = vunpack.c.h.b16 %v790
      %v4017 = vunpack.c.l.b16 %v791
      %v4018 = vunpack.c.h.b16 %v791
      %v4019 = vunpack.c.l.b16 %v792
      %v4020 = vunpack.c.h.b16 %v792
      %v4021 = vunpack.c.l.b16 %v793
      %v4022 = vunpack.c.h.b16 %v793
      %v4023 = vunpack.c.l.b16 %v794
      %v4024 = vunpack.c.h.b16 %v794
      %v4025 = vunpack.c.l.b16 %v795
      %v4026 = vunpack.c.h.b16 %v795
      %v4027 = vunpack.c.l.b16 %v796
      %v4028 = vunpack.c.h.b16 %v796
      %v4029 = vunpack.c.l.b16 %v797
      %v4030 = vunpack.c.h.b16 %v797
      %v4031 = vunpack.c.l.b16 %v798
      %v4032 = vunpack.c.h.b16 %v798
      %v4033 = vunpack.c.l.b16 %v799
      %v4034 = vunpack.c.h.b16 %v799
      %v4035 = vunpack.c.l.b16 %v800
      %v4036 = vunpack.c.h.b16 %v800
      %v4037 = vunpack.c.l.b16 %v801
      %v4038 = vunpack.c.h.b16 %v801
      %v4039 = vunpack.c.l.b16 %v802
      %v4040 = vunpack.c.h.b16 %v802
      %v4041 = vunpack.c.l.b16 %v803
      %v4042 = vunpack.c.h.b16 %v803
      %v4043 = vunpack.c.l.b16 %v804
      %v4044 = vunpack.c.h.b16 %v804
      %v4045 = vunpack.c.l.b16 %v805
      %v4046 = vunpack.c.h.b16 %v805
      %v4047 = vunpack.c.l.b16 %v806
      %v4048 = vunpack.c.h.b16 %v806
      %v4049 = vunpack.c.l.b16 %v807
      %v4050 = vunpack.c.h.b16 %v807
      %v4051 = vunpack.c.l.b16 %v808
      %v4052 = vunpack.c.h.b16 %v808
      %v4053 = vunpack.c.l.b16 %v809
      %v4054 = vunpack.c.h.b16 %v809
      %v4055 = vunpack.c.l.b16 %v810
      %v4056 = vunpack.c.h.b16 %v810
      %v4057 = vunpack.c.l.b16 %v811
      %v4058 = vunpack.c.h.b16 %v811
      %v4059 = vunpack.c.l.b16 %v812
      %v4060 = vunpack.c.h.b16 %v812
      %v4061 = vunpack.c.l.b16 %v813
      %v4062 = vunpack.c.h.b16 %v813
      %v4063 = vunpack.c.l.b16 %v814
      %v4064 = vunpack.c.h.b16 %v814
      %v4065 = vunpack.c.l.b16 %v815
      %v4066 = vunpack.c.h.b16 %v815
      %v4067 = vunpack.c.l.b16 %v816
      %v4068 = vunpack.c.h.b16 %v816
      %v4069 = vunpack.c.l.b16 %v817
      %v4070 = vunpack.c.h.b16 %v817
      %v4071 = vunpack.c.l.b16 %v818
      %v4072 = vunpack.c.h.b16 %v818
      %v4073 = vunpack.c.l.b16 %v819
      %v4074 = vunpack.c.h.b16 %v819
      %v4075 = vunpack.c.l.b16 %v820
      %v4076 = vunpack.c.h.b16 %v820
      %v4077 = vunpack.c.l.b16 %v821
      %v4078 = vunpack.c.h.b16 %v821
      %v4079 = vunpack.c.l.b16 %v822
      %v4080 = vunpack.c.h.b16 %v822
      %v4081 = vunpack.c.l.b16 %v823
      %v4082 = vunpack.c.h.b16 %v823
      %v4083 = vunpack.c.l.b16 %v824
      %v4084 = vunpack.c.h.b16 %v824
      %v4085 = vunpack.c.l.b16 %v825
      %v4086 = vunpack.c.h.b16 %v825
      %v4087 = vunpack.c.l.b16 %v826
      %v4088 = vunpack.c.h.b16 %v826
      %v4089 = vunpack.c.l.b16 %v827
      %v4090 = vunpack.c.h.b16 %v827
      %v4091 = vunpack.c.l.b16 %v828
      %v4092 = vunpack.c.h.b16 %v828
      %v4093 = vunpack.c.l.b16 %v829
      %v4094 = vunpack.c.h.b16 %v829
      %v4095 = vunpack.c.l.b16 %v830
      %v4096 = vunpack.c.h.b16 %v830
      %v4097 = vunpack.c.l.b16 %v831
      %v4098 = vunpack.c.h.b16 %v831
      %v4099 = vunpack.c.l.b16 %v832
      %v4100 = vunpack.c.h.b16 %v832
      %v4101 = vunpack.c.l.b16 %v833
      %v4102 = vunpack.c.h.b16 %v833
      %v4103 = vunpack.c.l.b16 %v834
      %v4104 = vunpack.c.h.b16 %v834
      %v4105 = vunpack.c.l.b16 %v835
      %v4106 = vunpack.c.h.b16 %v835
      %v4107 = vunpack.c.l.b16 %v836
      %v4108 = vunpack.c.h.b16 %v836
      %v4109 = vunpack.c.l.b16 %v837
      %v4110 = vunpack.c.h.b16 %v837
      %v4111 = vunpack.c.l.b16 %v838
      %v4112 = vunpack.c.h.b16 %v838
      %v4113 = vunpack.c.l.b16 %v839
      %v4114 = vunpack.c.h.b16 %v839
      %v4115 = vunpack.c.l.b16 %v840
      %v4116 = vunpack.c.h.b16 %v840
      %v4117 = vunpack.c.l.b16 %v841
      %v4118 = vunpack.c.h.b16 %v841
      %v4119 = vunpack.c.l.b16 %v842
      %v4120 = vunpack.c.h.b16 %v842
      %v4121 = vunpack.c.l.b16 %v843
      %v4122 = vunpack.c.h.b16 %v843
      %v4123 = vunpack.c.l.b16 %v844
      %v4124 = vunpack.c.h.b16 %v844
      %v4125 = vunpack.c.l.b16 %v845
      %v4126 = vunpack.c.h.b16 %v845
      %v4127 = vunpack.c.l.b16 %v846
      %v4128 = vunpack.c.h.b16 %v846
      %v4129 = vunpack.c.l.b16 %v847
      %v4130 = vunpack.c.h.b16 %v847
      %v4131 = vunpack.c.l.b16 %v848
      %v4132 = vunpack.c.h.b16 %v848
      %v4133 = vunpack.c.l.b16 %v849
      %v4134 = vunpack.c.h.b16 %v849
      %v4135 = vunpack.c.l.b16 %v850
      %v4136 = vunpack.c.h.b16 %v850
      %v4137 = vunpack.c.l.b16 %v851
      %v4138 = vunpack.c.h.b16 %v851
      %v4139 = vunpack.c.l.b16 %v852
      %v4140 = vunpack.c.h.b16 %v852
      %v4141 = vunpack.c.l.b16 %v853
      %v4142 = vunpack.c.h.b16 %v853
      %v4143 = vunpack.c.l.b16 %v854
      %v4144 = vunpack.c.h.b16 %v854
      %v4145 = vunpack.c.l.b16 %v855
      %v4146 = vunpack.c.h.b16 %v855
      %v4147 = vunpack.c.l.b16 %v856
      %v4148 = vunpack.c.h.b16 %v856
      %v4149 = vunpack.c.l.b16 %v857
      %v4150 = vunpack.c.h.b16 %v857
      %v4151 = vunpack.c.l.b16 %v858
      %v4152 = vunpack.c.h.b16 %v858
      %v4153 = vunpack.c.l.b16 %v859
      %v4154 = vunpack.c.h.b16 %v859
      %v4155 = vunpack.c.l.b16 %v860
      %v4156 = vunpack.c.h.b16 %v860
      %v4157 = vunpack.c.l.b16 %v861
      %v4158 = vunpack.c.h.b16 %v861
      %v4159 = vunpack.c.l.b16 %v862
      %v4160 = vunpack.c.h.b16 %v862
      %v4161 = vunpack.c.l.b16 %v863
      %v4162 = vunpack.c.h.b16 %v863
      %v4163 = vunpack.c.l.b16 %v864
      %v4164 = vunpack.c.h.b16 %v864
      %v4165 = vunpack.c.l.b16 %v865
      %v4166 = vunpack.c.h.b16 %v865
      %v4167 = vunpack.c.l.b16 %v866
      %v4168 = vunpack.c.h.b16 %v866
      %v4169 = vunpack.c.l.b16 %v867
      %v4170 = vunpack.c.h.b16 %v867
      %v4171 = vunpack.c.l.b16 %v868
      %v4172 = vunpack.c.h.b16 %v868
      %v4173 = vunpack.c.l.b16 %v869
      %v4174 = vunpack.c.h.b16 %v869
      %v4175 = vunpack.c.l.b16 %v870
      %v4176 = vunpack.c.h.b16 %v870
      %v4177 = vunpack.c.l.b16 %v871
      %v4178 = vunpack.c.h.b16 %v871
      %v4179 = vunpack.c.l.b16 %v872
      %v4180 = vunpack.c.h.b16 %v872
      %v4181 = vunpack.c.l.b16 %v873
      %v4182 = vunpack.c.h.b16 %v873
      %v4183 = vunpack.c.l.b16 %v874
      %v4184 = vunpack.c.h.b16 %v874
      %v4185 = vunpack.c.l.b16 %v875
      %v4186 = vunpack.c.h.b16 %v875
      %v4187 = vunpack.c.l.b16 %v876
      %v4188 = vunpack.c.h.b16 %v876
      %v4189 = vunpack.c.l.b16 %v877
      %v4190 = vunpack.c.h.b16 %v877
      %v4191 = vunpack.c.l.b16 %v878
      %v4192 = vunpack.c.h.b16 %v878
      %v4193 = vunpack.c.l.b16 %v879
      %v4194 = vunpack.c.h.b16 %v879
      %v4195 = vunpack.c.l.b16 %v880
      %v4196 = vunpack.c.h.b16 %v880
      %v4197 = vunpack.c.l.b16 %v881
      %v4198 = vunpack.c.h.b16 %v881
      %v4199 = vunpack.c.l.b16 %v882
      %v4200 = vunpack.c.h.b16 %v882
      %v4201 = vunpack.c.l.b16 %v883
      %v4202 = vunpack.c.h.b16 %v883
      %v4203 = vunpack.c.l.b16 %v884
      %v4204 = vunpack.c.h.b16 %v884
      %v4205 = vunpack.c.l.b16 %v885
      %v4206 = vunpack.c.h.b16 %v885
      %v4207 = vunpack.c.l.b16 %v886
      %v4208 = vunpack.c.h.b16 %v886
      %v4209 = vunpack.c.l.b16 %v887
      %v4210 = vunpack.c.h.b16 %v887
      %v4211 = vunpack.c.l.b16 %v888
      %v4212 = vunpack.c.h.b16 %v888
      %v4213 = vunpack.c.l.b16 %v889
      %v4214 = vunpack.c.h.b16 %v889
      %v4215 = vunpack.c.l.b16 %v890
      %v4216 = vunpack.c.h.b16 %v890
      %v4217 = vunpack.c.l.b16 %v891
      %v4218 = vunpack.c.h.b16 %v891
      %v4219 = vunpack.c.l.b16 %v892
      %v4220 = vunpack.c.h.b16 %v892
      %v4221 = vunpack.c.l.b16 %v893
      %v4222 = vunpack.c.h.b16 %v893
      %v4223 = vunpack.c.l.b16 %v894
      %v4224 = vunpack.c.h.b16 %v894
      %v4225 = vunpack.c.l.b16 %v895
      %v4226 = vunpack.c.h.b16 %v895
      %v4227 = vunpack.c.l.b16 %v896
      %v4228 = vunpack.c.h.b16 %v896
      %v4229 = vunpack.c.l.b16 %v897
      %v4230 = vunpack.c.h.b16 %v897
      %v4231 = vunpack.c.l.b16 %v898
      %v4232 = vunpack.c.h.b16 %v898
      %v4233 = vunpack.c.l.b16 %v899
      %v4234 = vunpack.c.h.b16 %v899
      %v4235 = vunpack.c.l.b16 %v900
      %v4236 = vunpack.c.h.b16 %v900
      %v4237 = vunpack.c.l.b16 %v901
      %v4238 = vunpack.c.h.b16 %v901
      %v4239 = vunpack.c.l.b16 %v902
      %v4240 = vunpack.c.h.b16 %v902
      %v4241 = vunpack.c.l.b16 %v903
      %v4242 = vunpack.c.h.b16 %v903
      %v4243 = vunpack.c.l.b16 %v904
      %v4244 = vunpack.c.h.b16 %v904
      %v4245 = vunpack.c.l.b16 %v905
      %v4246 = vunpack.c.h.b16 %v905
      %v4247 = vunpack.c.l.b16 %v906
      %v4248 = vunpack.c.h.b16 %v906
      %v4249 = vunpack.c.l.b16 %v907
      %v4250 = vunpack.c.h.b16 %v907
      %v4251 = vunpack.c.l.b16 %v908
      %v4252 = vunpack.c.h.b16 %v908
      %v4253 = vunpack.c.l.b16 %v909
      %v4254 = vunpack.c.h.b16 %v909
      %v4255 = vunpack.c.l.b16 %v910
      %v4256 = vunpack.c.h.b16 %v910
      %v4257 = vunpack.c.l.b16 %v911
      %v4258 = vunpack.c.h.b16 %v911
      %v4259 = vunpack.c.l.b16 %v912
      %v4260 = vunpack.c.h.b16 %v912
      %v4261 = vunpack.c.l.b16 %v913
      %v4262 = vunpack.c.h.b16 %v913
      %v4263 = vunpack.c.l.b16 %v914
      %v4264 = vunpack.c.h.b16 %v914
      %v4265 = vunpack.c.l.b16 %v915
      %v4266 = vunpack.c.h.b16 %v915
      %v4267 = vunpack.c.l.b16 %v916
      %v4268 = vunpack.c.h.b16 %v916
      %v4269 = vunpack.c.l.b16 %v917
      %v4270 = vunpack.c.h.b16 %v917
      %v4271 = vunpack.c.l.b16 %v918
      %v4272 = vunpack.c.h.b16 %v918
      %v4273 = vunpack.c.l.b16 %v919
      %v4274 = vunpack.c.h.b16 %v919
      %v4275 = vunpack.c.l.b16 %v920
      %v4276 = vunpack.c.h.b16 %v920
      %v4277 = vunpack.c.l.b16 %v921
      %v4278 = vunpack.c.h.b16 %v921
      %v4279 = vunpack.c.l.b16 %v922
      %v4280 = vunpack.c.h.b16 %v922
      %v4281 = vunpack.c.l.b16 %v923
      %v4282 = vunpack.c.h.b16 %v923
      %v4283 = vunpack.c.l.b16 %v924
      %v4284 = vunpack.c.h.b16 %v924
      %v4285 = vunpack.c.l.b16 %v925
      %v4286 = vunpack.c.h.b16 %v925
      %v4287 = vunpack.c.l.b16 %v926
      %v4288 = vunpack.c.h.b16 %v926
      %v4289 = vunpack.c.l.b16 %v927
      %v4290 = vunpack.c.h.b16 %v927
      %v4291 = vunpack.c.l.b16 %v928
      %v4292 = vunpack.c.h.b16 %v928
      %v4293 = vunpack.c.l.b16 %v929
      %v4294 = vunpack.c.h.b16 %v929
      %v4295 = vpack.c.b16 %v3695, %v3687
      %v4296 = vpack.c.b16 %v3696, %v3688
      %v4297 = vpack.c.b16 %v3697, %v3689
      %v4298 = vpack.c.b16 %v3698, %v3690
      %v4299 = vpack.c.b16 %v3699, %v3691
      %v4300 = vpack.c.b16 %v3700, %v3692
      %v4301 = vpack.c.b16 %v3701, %v3693
      %v4302 = vpack.c.b16 %v3702, %v3694
      %v4303 = vpack.c.b16 %v3711, %v3703
      %v4304 = vpack.c.b16 %v3712, %v3704
      %v4305 = vpack.c.b16 %v3713, %v3705
      %v4306 = vpack.c.b16 %v3714, %v3706
      %v4307 = vpack.c.b16 %v3715, %v3707
      %v4308 = vpack.c.b16 %v3716, %v3708
      %v4309 = vpack.c.b16 %v3717, %v3709
      %v4310 = vpack.c.b16 %v3718, %v3710
      %v4311 = vpack.c.b16 %v3727, %v3719
      %v4312 = vpack.c.b16 %v3728, %v3720
      %v4313 = vpack.c.b16 %v3729, %v3721
      %v4314 = vpack.c.b16 %v3730, %v3722
      %v4315 = vpack.c.b16 %v3731, %v3723
      %v4316 = vpack.c.b16 %v3732, %v3724
      %v4317 = vpack.c.b16 %v3733, %v3725
      %v4318 = vpack.c.b16 %v3734, %v3726
      %v4319 = vpack.c.b16 %v3743, %v3735
      %v4320 = vpack.c.b16 %v3744, %v3736
      %v4321 = vpack.c.b16 %v3745, %v3737
      %v4322 = vpack.c.b16 %v3746, %v3738
      %v4323 = vpack.c.b16 %v3747, %v3739
      %v4324 = vpack.c.b16 %v3748, %v3740
      %v4325 = vpack.c.b16 %v3749, %v3741
      %v4326 = vpack.c.b16 %v3750, %v3742
      %v4327 = vpack.c.b16 %v3759, %v3751
      %v4328 = vpack.c.b16 %v3760, %v3752
      %v4329 = vpack.c.b16 %v3761, %v3753
      %v4330 = vpack.c.b16 %v3762, %v3754
      %v4331 = vpack.c.b16 %v3763, %v3755
      %v4332 = vpack.c.b16 %v3764, %v3756
      %v4333 = vpack.c.b16 %v3765, %v3757
      %v4334 = vpack.c.b16 %v3766, %v3758
      %v4335 = vpack.c.b16 %v3775, %v3767
      %v4336 = vpack.c.b16 %v3776, %v3768
      %v4337 = vpack.c.b16 %v3777, %v3769
      %v4338 = vpack.c.b16 %v3778, %v3770
      %v4339 = vpack.c.b16 %v3779, %v3771
      %v4340 = vpack.c.b16 %v3780, %v3772
      %v4341 = vpack.c.b16 %v3781, %v3773
      %v4342 = vpack.c.b16 %v3782, %v3774
      %v4343 = vpack.c.b16 %v3791, %v3783
      %v4344 = vpack.c.b16 %v3792, %v3784
      %v4345 = vpack.c.b16 %v3793, %v3785
      %v4346 = vpack.c.b16 %v3794, %v3786
      %v4347 = vpack.c.b16 %v3795, %v3787
      %v4348 = vpack.c.b16 %v3796, %v3788
      %v4349 = vpack.c.b16 %v3797, %v3789
      %v4350 = vpack.c.b16 %v3798, %v3790
      %v4351 = vpack.c.b16 %v3807, %v3799
      %v4352 = vpack.c.b16 %v3808, %v3800
      %v4353 = vpack.c.b16 %v3809, %v3801
      %v4354 = vpack.c.b16 %v3810, %v3802
      %v4355 = vpack.c.b16 %v3811, %v3803
      %v4356 = vpack.c.b16 %v3812, %v3804
      %v4357 = vpack.c.b16 %v3813, %v3805
      %v4358 = vpack.c.b16 %v3814, %v3806
      %v4359 = vpack.c.b16 %v3823, %v3815
      %v4360 = vpack.c.b16 %v3824, %v3816
      %v4361 = vpack.c.b16 %v3825, %v3817
      %v4362 = vpack.c.b16 %v3826, %v3818
      %v4363 = vpack.c.b16 %v3827, %v3819
      %v4364 = vpack.c.b16 %v3828, %v3820
      %v4365 = vpack.c.b16 %v3829, %v3821
      %v4366 = vpack.c.b16 %v3830, %v3822
      %v4367 = vpack.c.b16 %v3839, %v3831
      %v4368 = vpack.c.b16 %v3840, %v3832
      %v4369 = vpack.c.b16 %v3841, %v3833
      %v4370 = vpack.c.b16 %v3842, %v3834
      %v4371 = vpack.c.b16 %v3843, %v3835
      %v4372 = vpack.c.b16 %v3844, %v3836
      %v4373 = vpack.c.b16 %v3845, %v3837
      %v4374 = vpack.c.b16 %v3846, %v3838
      %v4375 = vpack.c.b16 %v3855, %v3847
      %v4376 = vpack.c.b16 %v3856, %v3848
      %v4377 = vpack.c.b16 %v3857, %v3849
      %v4378 = vpack.c.b16 %v3858, %v3850
      %v4379 = vpack.c.b16 %v3859, %v3851
      %v4380 = vpack.c.b16 %v3860, %v3852
      %v4381 = vpack.c.b16 %v3861, %v3853
      %v4382 = vpack.c.b16 %v3862, %v3854
      %v4383 = vpack.c.b16 %v3871, %v3863
      %v4384 = vpack.c.b16 %v3872, %v3864
      %v4385 = vpack.c.b16 %v3873, %v3865
      %v4386 = vpack.c.b16 %v3874, %v3866
      %v4387 = vpack.c.b16 %v3875, %v3867
      %v4388 = vpack.c.b16 %v3876, %v3868
      %v4389 = vpack.c.b16 %v3877, %v3869
      %v4390 = vpack.c.b16 %v3878, %v3870
      %v4391 = vpack.c.b16 %v3887, %v3879
      %v4392 = vpack.c.b16 %v3888, %v3880
      %v4393 = vpack.c.b16 %v3889, %v3881
      %v4394 = vpack.c.b16 %v3890, %v3882
      %v4395 = vpack.c.b16 %v3891, %v3883
      %v4396 = vpack.c.b16 %v3892, %v3884
      %v4397 = vpack.c.b16 %v3893, %v3885
      %v4398 = vpack.c.b16 %v3894, %v3886
      %v4399 = vpack.c.b16 %v3903, %v3895
      %v4400 = vpack.c.b16 %v3904, %v3896
      %v4401 = vpack.c.b16 %v3905, %v3897
      %v4402 = vpack.c.b16 %v3906, %v3898
      %v4403 = vpack.c.b16 %v3907, %v3899
      %v4404 = vpack.c.b16 %v3908, %v3900
      %v4405 = vpack.c.b16 %v3909, %v3901
      %v4406 = vpack.c.b16 %v3910, %v3902
      %v4407 = vpack.c.b16 %v3919, %v3911
      %v4408 = vpack.c.b16 %v3920, %v3912
      %v4409 = vpack.c.b16 %v3921, %v3913
      %v4410 = vpack.c.b16 %v3922, %v3914
      %v4411 = vpack.c.b16 %v3923, %v3915
      %v4412 = vpack.c.b16 %v3924, %v3916
      %v4413 = vpack.c.b16 %v3925, %v3917
      %v4414 = vpack.c.b16 %v3926, %v3918
      %v4415 = vpack.c.b16 %v3935, %v3927
      %v4416 = vpack.c.b16 %v3936, %v3928
      %v4417 = vpack.c.b16 %v3937, %v3929
      %v4418 = vpack.c.b16 %v3938, %v3930
      %v4419 = vpack.c.b16 %v3939, %v3931
      %v4420 = vpack.c.b16 %v3940, %v3932
      %v4421 = vpack.c.b16 %v3941, %v3933
      %v4422 = vpack.c.b16 %v3942, %v3934
      %v4423 = vpack.c.b16 %v3951, %v3943
      %v4424 = vpack.c.b16 %v3952, %v3944
      %v4425 = vpack.c.b16 %v3953, %v3945
      %v4426 = vpack.c.b16 %v3954, %v3946
      %v4427 = vpack.c.b16 %v3955, %v3947
      %v4428 = vpack.c.b16 %v3956, %v3948
      %v4429 = vpack.c.b16 %v3957, %v3949
      %v4430 = vpack.c.b16 %v3958, %v3950
      %v4431 = vpack.c.b16 %v3967, %v3959
      %v4432 = vpack.c.b16 %v3968, %v3960
      %v4433 = vpack.c.b16 %v3969, %v3961
      %v4434 = vpack.c.b16 %v3970, %v3962
      %v4435 = vpack.c.b16 %v3971, %v3963
      %v4436 = vpack.c.b16 %v3972, %v3964
      %v4437 = vpack.c.b16 %v3973, %v3965
      %v4438 = vpack.c.b16 %v3974, %v3966
      %v4439 = vpack.c.b16 %v3983, %v3975
      %v4440 = vpack.c.b16 %v3984, %v3976
      %v4441 = vpack.c.b16 %v3985, %v3977
      %v4442 = vpack.c.b16 %v3986, %v3978
      %v4443 = vpack.c.b16 %v3987, %v3979
      %v4444 = vpack.c.b16 %v3988, %v3980
      %v4445 = vpack.c.b16 %v3989, %v3981
      %v4446 = vpack.c.b16 %v3990, %v3982
      %v4447 = vpack.c.b16 %v3999, %v3991
      %v4448 = vpack.c.b16 %v4000, %v3992
      %v4449 = vpack.c.b16 %v4001, %v3993
      %v4450 = vpack.c.b16 %v4002, %v3994
      %v4451 = vpack.c.b16 %v4003, %v3995
      %v4452 = vpack.c.b16 %v4004, %v3996
      %v4453 = vpack.c.b16 %v4005, %v3997
      %v4454 = vpack.c.b16 %v4006, %v3998
      %v4455 = vpack.c.b16 %v4015, %v4007
      %v4456 = vpack.c.b16 %v4016, %v4008
      %v4457 = vpack.c.b16 %v4017, %v4009
      %v4458 = vpack.c.b16 %v4018, %v4010
      %v4459 = vpack.c.b16 %v4019, %v4011
      %v4460 = vpack.c.b16 %v4020, %v4012
      %v4461 = vpack.c.b16 %v4021, %v4013
      %v4462 = vpack.c.b16 %v4022, %v4014
      %v4463 = vpack.c.b16 %v4031, %v4023
      %v4464 = vpack.c.b16 %v4032, %v4024
      %v4465 = vpack.c.b16 %v4033, %v4025
      %v4466 = vpack.c.b16 %v4034, %v4026
      %v4467 = vpack.c.b16 %v4035, %v4027
      %v4468 = vpack.c.b16 %v4036, %v4028
      %v4469 = vpack.c.b16 %v4037, %v4029
      %v4470 = vpack.c.b16 %v4038, %v4030
      %v4471 = vpack.c.b16 %v4047, %v4039
      %v4472 = vpack.c.b16 %v4048, %v4040
      %v4473 = vpack.c.b16 %v4049, %v4041
      %v4474 = vpack.c.b16 %v4050, %v4042
      %v4475 = vpack.c.b16 %v4051, %v4043
      %v4476 = vpack.c.b16 %v4052, %v4044
      %v4477 = vpack.c.b16 %v4053, %v4045
      %v4478 = vpack.c.b16 %v4054, %v4046
      %v4479 = vpack.c.b16 %v4063, %v4055
      %v4480 = vpack.c.b16 %v4064, %v4056
      %v4481 = vpack.c.b16 %v4065, %v4057
      %v4482 = vpack.c.b16 %v4066, %v4058
      %v4483 = vpack.c.b16 %v4067, %v4059
      %v4484 = vpack.c.b16 %v4068, %v4060
      %v4485 = vpack.c.b16 %v4069, %v4061
      %v4486 = vpack.c.b16 %v4070, %v4062
      %v4487 = vpack.c.b16 %v4079, %v4071
      %v4488 = vpack.c.b16 %v4080, %v4072
      %v4489 = vpack.c.b16 %v4081, %v4073
      %v4490 = vpack.c.b16 %v4082, %v4074
      %v4491 = vpack.c.b16 %v4083, %v4075
      %v4492 = vpack.c.b16 %v4084, %v4076
      %v4493 = vpack.c.b16 %v4085, %v4077
      %v4494 = vpack.c.b16 %v4086, %v4078
      %v4495 = vpack.c.b16 %v4095, %v4087
      %v4496 = vpack.c.b16 %v4096, %v4088
      %v4497 = vpack.c.b16 %v4097, %v4089
      %v4498 = vpack.c.b16 %v4098, %v4090
      %v4499 = vpack.c.b16 %v4099, %v4091
      %v4500 = vpack.c.b16 %v4100, %v4092
      %v4501 = vpack.c.b16 %v4101, %v4093
      %v4502 = vpack.c.b16 %v4102, %v4094
      %v4503 = vpack.c.b16 %v4111, %v4103
      %v4504 = vpack.c.b16 %v4112, %v4104
      %v4505 = vpack.c.b16 %v4113, %v4105
      %v4506 = vpack.c.b16 %v4114, %v4106
      %v4507 = vpack.c.b16 %v4115, %v4107
      %v4508 = vpack.c.b16 %v4116, %v4108
      %v4509 = vpack.c.b16 %v4117, %v4109
      %v4510 = vpack.c.b16 %v4118, %v4110
      %v4511 = vpack.c.b16 %v4127, %v4119
      %v4512 = vpack.c.b16 %v4128, %v4120
      %v4513 = vpack.c.b16 %v4129, %v4121
      %v4514 = vpack.c.b16 %v4130, %v4122
      %v4515 = vpack.c.b16 %v4131, %v4123
      %v4516 = vpack.c.b16 %v4132, %v4124
      %v4517 = vpack.c.b16 %v4133, %v4125
      %v4518 = vpack.c.b16 %v4134, %v4126
      %v4519 = vpack.c.b16 %v4143, %v4135
      %v4520 = vpack.c.b16 %v4144, %v4136
      %v4521 = vpack.c.b16 %v4145, %v4137
      %v4522 = vpack.c.b16 %v4146, %v4138
      %v4523 = vpack.c.b16 %v4147, %v4139
      %v4524 = vpack.c.b16 %v4148, %v4140
      %v4525 = vpack.c.b16 %v4149, %v4141
      %v4526 = vpack.c.b16 %v4150, %v4142
      %v4527 = vpack.c.b16 %v4159, %v4151
      %v4528 = vpack.c.b16 %v4160, %v4152
      %v4529 = vpack.c.b16 %v4161, %v4153
      %v4530 = vpack.c.b16 %v4162, %v4154
      %v4531 = vpack.c.b16 %v4163, %v4155
      %v4532 = vpack.c.b16 %v4164, %v4156
      %v4533 = vpack.c.b16 %v4165, %v4157
      %v4534 = vpack.c.b16 %v4166, %v4158
      %v4535 = vpack.c.b16 %v4175, %v4167
      %v4536 = vpack.c.b16 %v4176, %v4168
      %v4537 = vpack.c.b16 %v4177, %v4169
      %v4538 = vpack.c.b16 %v4178, %v4170
      %v4539 = vpack.c.b16 %v4179, %v4171
      %v4540 = vpack.c.b16 %v4180, %v4172
      %v4541 = vpack.c.b16 %v4181, %v4173
      %v4542 = vpack.c.b16 %v4182, %v4174
      %v4543 = vpack.c.b16 %v4191, %v4183
      %v4544 = vpack.c.b16 %v4192, %v4184
      %v4545 = vpack.c.b16 %v4193, %v4185
      %v4546 = vpack.c.b16 %v4194, %v4186
      %v4547 = vpack.c.b16 %v4195, %v4187
      %v4548 = vpack.c.b16 %v4196, %v4188
      %v4549 = vpack.c.b16 %v4197, %v4189
      %v4550 = vpack.c.b16 %v4198, %v4190
      %v4551 = vpack.c.b16 %v4207, %v4199
      %v4552 = vpack.c.b16 %v4208, %v4200
      %v4553 = vpack.c.b16 %v4209, %v4201
      %v4554 = vpack.c.b16 %v4210, %v4202
      %v4555 = vpack.c.b16 %v4211, %v4203
      %v4556 = vpack.c.b16 %v4212, %v4204
      %v4557 = vpack.c.b16 %v4213, %v4205
      %v4558 = vpack.c.b16 %v4214, %v4206
      %v4559 = vpack.c.b16 %v4223, %v4215
      %v4560 = vpack.c.b16 %v4224, %v4216
      %v4561 = vpack.c.b16 %v4225, %v4217
      %v4562 = vpack.c.b16 %v4226, %v4218
      %v4563 = vpack.c.b16 %v4227, %v4219
      %v4564 = vpack.c.b16 %v4228, %v4220
      %v4565 = vpack.c.b16 %v4229, %v4221
      %v4566 = vpack.c.b16 %v4230, %v4222
      %v4567 = vpack.c.b16 %v4239, %v4231
      %v4568 = vpack.c.b16 %v4240, %v4232
      %v4569 = vpack.c.b16 %v4241, %v4233
      %v4570 = vpack.c.b16 %v4242, %v4234
      %v4571 = vpack.c.b16 %v4243, %v4235
      %v4572 = vpack.c.b16 %v4244, %v4236
      %v4573 = vpack.c.b16 %v4245, %v4237
      %v4574 = vpack.c.b16 %v4246, %v4238
      %v4575 = vpack.c.b16 %v4255, %v4247
      %v4576 = vpack.c.b16 %v4256, %v4248
      %v4577 = vpack.c.b16 %v4257, %v4249
      %v4578 = vpack.c.b16 %v4258, %v4250
      %v4579 = vpack.c.b16 %v4259, %v4251
      %v4580 = vpack.c.b16 %v4260, %v4252
      %v4581 = vpack.c.b16 %v4261, %v4253
      %v4582 = vpack.c.b16 %v4262, %v4254
      %v4583 = vpack.c.b16 %v4271, %v4263
      %v4584 = vpack.c.b16 %v4272, %v4264
      %v4585 = vpack.c.b16 %v4273, %v4265
      %v4586 = vpack.c.b16 %v4274, %v4266
      %v4587 = vpack.c.b16 %v4275, %v4267
      %v4588 = vpack.c.b16 %v4276, %v4268
      %v4589 = vpack.c.b16 %v4277, %v4269
      %v4590 = vpack.c.b16 %v4278, %v4270
      %v4591 = vpack.c.b16 %v4287, %v4279
      %v4592 = vpack.c.b16 %v4288, %v4280
      %v4593 = vpack.c.b16 %v4289, %v4281
      %v4594 = vpack.c.b16 %v4290, %v4282
      %v4595 = vpack.c.b16 %v4291, %v4283
      %v4596 = vpack.c.b16 %v4292, %v4284
      %v4597 = vpack.c.b16 %v4293, %v4285
      %v4598 = vpack.c.b16 %v4294, %v4286
      %v4903 = vsel %vm2815, %v1255, 0
      %4905 = vmatpush.bf16.msra.mxu0 %v4351
      %4906 = vmatpush.bf16.msra.mxu0 %v4343
      %4907 = vmatpush.bf16.msra.mxu0 %v4335
      %4908 = vmatpush.bf16.msra.mxu0 %v4327
      %4909 = vmatpush.bf16.msra.mxu0 %v4319
      %4910 = vmatpush.bf16.msra.mxu0 %v4311
      %4911 = vmatpush.bf16.msra.mxu0 %v4303
      %4912 = vmatpush.bf16.msra.mxu0 %v4295
      %4913 = vmatmul.bf16.gmra.mxu0 %v1251
      %v4914 = vpop.f32.mrf.mxu0
      %v4915 = vadd.f32 %v2885, %v4914
      %v4916 = vpop.f32.mrf.mxu0
      %v4917 = vadd.f32 %v2887, %v4916
      %4918 = vdwg.mxu0
      %4919 = vmatpush.bf16.msra.mxu0 %v4415
      %4920 = vmatpush.bf16.msra.mxu0 %v4407
      %4921 = vmatpush.bf16.msra.mxu0 %v4399
      %4922 = vmatpush.bf16.msra.mxu0 %v4391
      %4923 = vmatpush.bf16.msra.mxu0 %v4383
      %4924 = vmatpush.bf16.msra.mxu0 %v4375
      %4925 = vmatpush.bf16.msra.mxu0 %v4367
      %4926 = vmatpush.bf16.msra.mxu0 %v4359
      %4927 = vmatmul.bf16.gmra.mxu0 %v1252
      %v4928 = vpop.f32.mrf.mxu0
      %v4929 = vadd.f32 %v4915, %v4928
      %v4930 = vpop.f32.mrf.mxu0
      %v4931 = vadd.f32 %v4917, %v4930
      %4932 = vdwg.mxu0
      %4933 = vmatpush.bf16.msra.mxu0 %v4479
      %4934 = vmatpush.bf16.msra.mxu0 %v4471
      %4935 = vmatpush.bf16.msra.mxu0 %v4463
      %4936 = vmatpush.bf16.msra.mxu0 %v4455
      %4937 = vmatpush.bf16.msra.mxu0 %v4447
      %4938 = vmatpush.bf16.msra.mxu0 %v4439
      %4939 = vmatpush.bf16.msra.mxu0 %v4431
      %4940 = vmatpush.bf16.msra.mxu0 %v4423
      %4941 = vmatmul.bf16.gmra.mxu0 %v1253
      %v4942 = vpop.f32.mrf.mxu0
      %v4943 = vadd.f32 %v4929, %v4942
      %v4944 = vpop.f32.mrf.mxu0
      %v4945 = vadd.f32 %v4931, %v4944
      %4946 = vdwg.mxu0
      %4947 = vmatpush.bf16.msra.mxu0 %v4543
      %4948 = vmatpush.bf16.msra.mxu0 %v4535
      %4949 = vmatpush.bf16.msra.mxu0 %v4527
      %4950 = vmatpush.bf16.msra.mxu0 %v4519
      %4951 = vmatpush.bf16.msra.mxu0 %v4511
      %4952 = vmatpush.bf16.msra.mxu0 %v4503
      %4953 = vmatpush.bf16.msra.mxu0 %v4495
      %4954 = vmatpush.bf16.msra.mxu0 %v4487
      %4955 = vmatmul.bf16.gmra.mxu0 %v1254
      %v4956 = vpop.f32.mrf.mxu0
      %v4957 = vadd.f32 %v4943, %v4956
      %v4958 = vpop.f32.mrf.mxu0
      %v4959 = vadd.f32 %v4945, %v4958
      %4960 = vdwg.mxu0
      %4961 = vmatpush.bf16.msra.mxu0 0
      %4962 = vmatpush.bf16.msra.mxu0 0
      %4963 = vmatpush.bf16.msra.mxu0 %v4591
      %4964 = vmatpush.bf16.msra.mxu0 %v4583
      %4965 = vmatpush.bf16.msra.mxu0 %v4575
      %4966 = vmatpush.bf16.msra.mxu0 %v4567
      %4967 = vmatpush.bf16.msra.mxu0 %v4559
      %4968 = vmatpush.bf16.msra.mxu0 %v4551
      %4969 = vmatmul.bf16.gmra.mxu0 %v4903
      %v4970 = vpop.f32.mrf.mxu0
      %v4971 = vadd.f32 %v4957, %v4970
      %v4972 = vpop.f32.mrf.mxu0
      %v4973 = vadd.f32 %v4959, %v4972
      %4974 = vdwg.mxu0
      %4975 = vmatpush.bf16.msra.mxu0 %v4352
      %4976 = vmatpush.bf16.msra.mxu0 %v4344
      %4977 = vmatpush.bf16.msra.mxu0 %v4336
      %4978 = vmatpush.bf16.msra.mxu0 %v4328
      %4979 = vmatpush.bf16.msra.mxu0 %v4320
      %4980 = vmatpush.bf16.msra.mxu0 %v4312
      %4981 = vmatpush.bf16.msra.mxu0 %v4304
      %4982 = vmatpush.bf16.msra.mxu0 %v4296
      %4983 = vmatmul.bf16.gmra.mxu0 %v1251
      %v4984 = vpop.f32.mrf.mxu0
      %v4985 = vadd.f32 %v2955, %v4984
      %v4986 = vpop.f32.mrf.mxu0
      %v4987 = vadd.f32 %v2957, %v4986
      %4988 = vdwg.mxu0
      %4989 = vmatpush.bf16.msra.mxu0 %v4416
      %4990 = vmatpush.bf16.msra.mxu0 %v4408
      %4991 = vmatpush.bf16.msra.mxu0 %v4400
      %4992 = vmatpush.bf16.msra.mxu0 %v4392
      %4993 = vmatpush.bf16.msra.mxu0 %v4384
      %4994 = vmatpush.bf16.msra.mxu0 %v4376
      %4995 = vmatpush.bf16.msra.mxu0 %v4368
      %4996 = vmatpush.bf16.msra.mxu0 %v4360
      %4997 = vmatmul.bf16.gmra.mxu0 %v1252
      %v4998 = vpop.f32.mrf.mxu0
      %v4999 = vadd.f32 %v4985, %v4998
      %v5000 = vpop.f32.mrf.mxu0
      %v5001 = vadd.f32 %v4987, %v5000
      %5002 = vdwg.mxu0
      %5003 = vmatpush.bf16.msra.mxu0 %v4480
      %5004 = vmatpush.bf16.msra.mxu0 %v4472
      %5005 = vmatpush.bf16.msra.mxu0 %v4464
      %5006 = vmatpush.bf16.msra.mxu0 %v4456
      %5007 = vmatpush.bf16.msra.mxu0 %v4448
      %5008 = vmatpush.bf16.msra.mxu0 %v4440
      %5009 = vmatpush.bf16.msra.mxu0 %v4432
      %5010 = vmatpush.bf16.msra.mxu0 %v4424
      %5011 = vmatmul.bf16.gmra.mxu0 %v1253
      %v5012 = vpop.f32.mrf.mxu0
      %v5013 = vadd.f32 %v4999, %v5012
      %v5014 = vpop.f32.mrf.mxu0
      %v5015 = vadd.f32 %v5001, %v5014
      %5016 = vdwg.mxu0
      %5017 = vmatpush.bf16.msra.mxu0 %v4544
      %5018 = vmatpush.bf16.msra.mxu0 %v4536
      %5019 = vmatpush.bf16.msra.mxu0 %v4528
      %5020 = vmatpush.bf16.msra.mxu0 %v4520
      %5021 = vmatpush.bf16.msra.mxu0 %v4512
      %5022 = vmatpush.bf16.msra.mxu0 %v4504
      %5023 = vmatpush.bf16.msra.mxu0 %v4496
      %5024 = vmatpush.bf16.msra.mxu0 %v4488
      %5025 = vmatmul.bf16.gmra.mxu0 %v1254
      %v5026 = vpop.f32.mrf.mxu0
      %v5027 = vadd.f32 %v5013, %v5026
      %v5028 = vpop.f32.mrf.mxu0
      %v5029 = vadd.f32 %v5015, %v5028
      %5030 = vdwg.mxu0
      %5031 = vmatpush.bf16.msra.mxu0 0
      %5032 = vmatpush.bf16.msra.mxu0 0
      %5033 = vmatpush.bf16.msra.mxu0 %v4592
      %5034 = vmatpush.bf16.msra.mxu0 %v4584
      %5035 = vmatpush.bf16.msra.mxu0 %v4576
      %5036 = vmatpush.bf16.msra.mxu0 %v4568
      %5037 = vmatpush.bf16.msra.mxu0 %v4560
      %5038 = vmatpush.bf16.msra.mxu0 %v4552
      %5039 = vmatmul.bf16.gmra.mxu0 %v4903
      %v5040 = vpop.f32.mrf.mxu0
      %v5041 = vadd.f32 %v5027, %v5040
      %v5042 = vpop.f32.mrf.mxu0
      %v5043 = vadd.f32 %v5029, %v5042
      %5044 = vdwg.mxu0
      %5045 = vmatpush.bf16.msra.mxu0 %v4353
      %5046 = vmatpush.bf16.msra.mxu0 %v4345
      %5047 = vmatpush.bf16.msra.mxu0 %v4337
      %5048 = vmatpush.bf16.msra.mxu0 %v4329
      %5049 = vmatpush.bf16.msra.mxu0 %v4321
      %5050 = vmatpush.bf16.msra.mxu0 %v4313
      %5051 = vmatpush.bf16.msra.mxu0 %v4305
      %5052 = vmatpush.bf16.msra.mxu0 %v4297
      %5053 = vmatmul.bf16.gmra.mxu0 %v1251
      %v5054 = vpop.f32.mrf.mxu0
      %v5055 = vadd.f32 %v3025, %v5054
      %v5056 = vpop.f32.mrf.mxu0
      %v5057 = vadd.f32 %v3027, %v5056
      %5058 = vdwg.mxu0
      %5059 = vmatpush.bf16.msra.mxu0 %v4417
      %5060 = vmatpush.bf16.msra.mxu0 %v4409
      %5061 = vmatpush.bf16.msra.mxu0 %v4401
      %5062 = vmatpush.bf16.msra.mxu0 %v4393
      %5063 = vmatpush.bf16.msra.mxu0 %v4385
      %5064 = vmatpush.bf16.msra.mxu0 %v4377
      %5065 = vmatpush.bf16.msra.mxu0 %v4369
      %5066 = vmatpush.bf16.msra.mxu0 %v4361
      %5067 = vmatmul.bf16.gmra.mxu0 %v1252
      %v5068 = vpop.f32.mrf.mxu0
      %v5069 = vadd.f32 %v5055, %v5068
      %v5070 = vpop.f32.mrf.mxu0
      %v5071 = vadd.f32 %v5057, %v5070
      %5072 = vdwg.mxu0
      %5073 = vmatpush.bf16.msra.mxu0 %v4481
      %5074 = vmatpush.bf16.msra.mxu0 %v4473
      %5075 = vmatpush.bf16.msra.mxu0 %v4465
      %5076 = vmatpush.bf16.msra.mxu0 %v4457
      %5077 = vmatpush.bf16.msra.mxu0 %v4449
      %5078 = vmatpush.bf16.msra.mxu0 %v4441
      %5079 = vmatpush.bf16.msra.mxu0 %v4433
      %5080 = vmatpush.bf16.msra.mxu0 %v4425
      %5081 = vmatmul.bf16.gmra.mxu0 %v1253
      %v5082 = vpop.f32.mrf.mxu0
      %v5083 = vadd.f32 %v5069, %v5082
      %v5084 = vpop.f32.mrf.mxu0
      %v5085 = vadd.f32 %v5071, %v5084
      %5086 = vdwg.mxu0
      %5087 = vmatpush.bf16.msra.mxu0 %v4545
      %5088 = vmatpush.bf16.msra.mxu0 %v4537
      %5089 = vmatpush.bf16.msra.mxu0 %v4529
      %5090 = vmatpush.bf16.msra.mxu0 %v4521
      %5091 = vmatpush.bf16.msra.mxu0 %v4513
      %5092 = vmatpush.bf16.msra.mxu0 %v4505
      %5093 = vmatpush.bf16.msra.mxu0 %v4497
      %5094 = vmatpush.bf16.msra.mxu0 %v4489
      %5095 = vmatmul.bf16.gmra.mxu0 %v1254
      %v5096 = vpop.f32.mrf.mxu0
      %v5097 = vadd.f32 %v5083, %v5096
      %v5098 = vpop.f32.mrf.mxu0
      %v5099 = vadd.f32 %v5085, %v5098
      %5100 = vdwg.mxu0
      %5101 = vmatpush.bf16.msra.mxu0 0
      %5102 = vmatpush.bf16.msra.mxu0 0
      %5103 = vmatpush.bf16.msra.mxu0 %v4593
      %5104 = vmatpush.bf16.msra.mxu0 %v4585
      %5105 = vmatpush.bf16.msra.mxu0 %v4577
      %5106 = vmatpush.bf16.msra.mxu0 %v4569
      %5107 = vmatpush.bf16.msra.mxu0 %v4561
      %5108 = vmatpush.bf16.msra.mxu0 %v4553
      %5109 = vmatmul.bf16.gmra.mxu0 %v4903
      %v5110 = vpop.f32.mrf.mxu0
      %v5111 = vadd.f32 %v5097, %v5110
      %v5112 = vpop.f32.mrf.mxu0
      %v5113 = vadd.f32 %v5099, %v5112
      %5114 = vdwg.mxu0
      %5115 = vmatpush.bf16.msra.mxu0 %v4354
      %5116 = vmatpush.bf16.msra.mxu0 %v4346
      %5117 = vmatpush.bf16.msra.mxu0 %v4338
      %5118 = vmatpush.bf16.msra.mxu0 %v4330
      %5119 = vmatpush.bf16.msra.mxu0 %v4322
      %5120 = vmatpush.bf16.msra.mxu0 %v4314
      %5121 = vmatpush.bf16.msra.mxu0 %v4306
      %5122 = vmatpush.bf16.msra.mxu0 %v4298
      %5123 = vmatmul.bf16.gmra.mxu0 %v1251
      %v5124 = vpop.f32.mrf.mxu0
      %v5125 = vadd.f32 %v3095, %v5124
      %v5126 = vpop.f32.mrf.mxu0
      %v5127 = vadd.f32 %v3097, %v5126
      %5128 = vdwg.mxu0
      %5129 = vmatpush.bf16.msra.mxu0 %v4418
      %5130 = vmatpush.bf16.msra.mxu0 %v4410
      %5131 = vmatpush.bf16.msra.mxu0 %v4402
      %5132 = vmatpush.bf16.msra.mxu0 %v4394
      %5133 = vmatpush.bf16.msra.mxu0 %v4386
      %5134 = vmatpush.bf16.msra.mxu0 %v4378
      %5135 = vmatpush.bf16.msra.mxu0 %v4370
      %5136 = vmatpush.bf16.msra.mxu0 %v4362
      %5137 = vmatmul.bf16.gmra.mxu0 %v1252
      %v5138 = vpop.f32.mrf.mxu0
      %v5139 = vadd.f32 %v5125, %v5138
      %v5140 = vpop.f32.mrf.mxu0
      %v5141 = vadd.f32 %v5127, %v5140
      %5142 = vdwg.mxu0
      %5143 = vmatpush.bf16.msra.mxu0 %v4482
      %5144 = vmatpush.bf16.msra.mxu0 %v4474
      %5145 = vmatpush.bf16.msra.mxu0 %v4466
      %5146 = vmatpush.bf16.msra.mxu0 %v4458
      %5147 = vmatpush.bf16.msra.mxu0 %v4450
      %5148 = vmatpush.bf16.msra.mxu0 %v4442
      %5149 = vmatpush.bf16.msra.mxu0 %v4434
      %5150 = vmatpush.bf16.msra.mxu0 %v4426
      %5151 = vmatmul.bf16.gmra.mxu0 %v1253
      %v5152 = vpop.f32.mrf.mxu0
      %v5153 = vadd.f32 %v5139, %v5152
      %v5154 = vpop.f32.mrf.mxu0
      %v5155 = vadd.f32 %v5141, %v5154
      %5156 = vdwg.mxu0
      %5157 = vmatpush.bf16.msra.mxu0 %v4546
      %5158 = vmatpush.bf16.msra.mxu0 %v4538
      %5159 = vmatpush.bf16.msra.mxu0 %v4530
      %5160 = vmatpush.bf16.msra.mxu0 %v4522
      %5161 = vmatpush.bf16.msra.mxu0 %v4514
      %5162 = vmatpush.bf16.msra.mxu0 %v4506
      %5163 = vmatpush.bf16.msra.mxu0 %v4498
      %5164 = vmatpush.bf16.msra.mxu0 %v4490
      %5165 = vmatmul.bf16.gmra.mxu0 %v1254
      %v5166 = vpop.f32.mrf.mxu0
      %v5167 = vadd.f32 %v5153, %v5166
      %v5168 = vpop.f32.mrf.mxu0
      %v5169 = vadd.f32 %v5155, %v5168
      %5170 = vdwg.mxu0
      %5171 = vmatpush.bf16.msra.mxu0 0
      %5172 = vmatpush.bf16.msra.mxu0 0
      %5173 = vmatpush.bf16.msra.mxu0 %v4594
      %5174 = vmatpush.bf16.msra.mxu0 %v4586
      %5175 = vmatpush.bf16.msra.mxu0 %v4578
      %5176 = vmatpush.bf16.msra.mxu0 %v4570
      %5177 = vmatpush.bf16.msra.mxu0 %v4562
      %5178 = vmatpush.bf16.msra.mxu0 %v4554
      %5179 = vmatmul.bf16.gmra.mxu0 %v4903
      %v5180 = vpop.f32.mrf.mxu0
      %v5181 = vadd.f32 %v5167, %v5180
      %v5182 = vpop.f32.mrf.mxu0
      %v5183 = vadd.f32 %v5169, %v5182
      %5184 = vdwg.mxu0
      %5185 = vmatpush.bf16.msra.mxu0 %v4355
      %5186 = vmatpush.bf16.msra.mxu0 %v4347
      %5187 = vmatpush.bf16.msra.mxu0 %v4339
      %5188 = vmatpush.bf16.msra.mxu0 %v4331
      %5189 = vmatpush.bf16.msra.mxu0 %v4323
      %5190 = vmatpush.bf16.msra.mxu0 %v4315
      %5191 = vmatpush.bf16.msra.mxu0 %v4307
      %5192 = vmatpush.bf16.msra.mxu0 %v4299
      %5193 = vmatmul.bf16.gmra.mxu0 %v1251
      %v5194 = vpop.f32.mrf.mxu0
      %v5195 = vadd.f32 %v3165, %v5194
      %v5196 = vpop.f32.mrf.mxu0
      %v5197 = vadd.f32 %v3167, %v5196
      %5198 = vdwg.mxu0
      %5199 = vmatpush.bf16.msra.mxu0 %v4419
      %5200 = vmatpush.bf16.msra.mxu0 %v4411
      %5201 = vmatpush.bf16.msra.mxu0 %v4403
      %5202 = vmatpush.bf16.msra.mxu0 %v4395
      %5203 = vmatpush.bf16.msra.mxu0 %v4387
      %5204 = vmatpush.bf16.msra.mxu0 %v4379
      %5205 = vmatpush.bf16.msra.mxu0 %v4371
      %5206 = vmatpush.bf16.msra.mxu0 %v4363
      %5207 = vmatmul.bf16.gmra.mxu0 %v1252
      %v5208 = vpop.f32.mrf.mxu0
      %v5209 = vadd.f32 %v5195, %v5208
      %v5210 = vpop.f32.mrf.mxu0
      %v5211 = vadd.f32 %v5197, %v5210
      %5212 = vdwg.mxu0
      %5213 = vmatpush.bf16.msra.mxu0 %v4483
      %5214 = vmatpush.bf16.msra.mxu0 %v4475
      %5215 = vmatpush.bf16.msra.mxu0 %v4467
      %5216 = vmatpush.bf16.msra.mxu0 %v4459
      %5217 = vmatpush.bf16.msra.mxu0 %v4451
      %5218 = vmatpush.bf16.msra.mxu0 %v4443
      %5219 = vmatpush.bf16.msra.mxu0 %v4435
      %5220 = vmatpush.bf16.msra.mxu0 %v4427
      %5221 = vmatmul.bf16.gmra.mxu0 %v1253
      %v5222 = vpop.f32.mrf.mxu0
      %v5223 = vadd.f32 %v5209, %v5222
      %v5224 = vpop.f32.mrf.mxu0
      %v5225 = vadd.f32 %v5211, %v5224
      %5226 = vdwg.mxu0
      %5227 = vmatpush.bf16.msra.mxu0 %v4547
      %5228 = vmatpush.bf16.msra.mxu0 %v4539
      %5229 = vmatpush.bf16.msra.mxu0 %v4531
      %5230 = vmatpush.bf16.msra.mxu0 %v4523
      %5231 = vmatpush.bf16.msra.mxu0 %v4515
      %5232 = vmatpush.bf16.msra.mxu0 %v4507
      %5233 = vmatpush.bf16.msra.mxu0 %v4499
      %5234 = vmatpush.bf16.msra.mxu0 %v4491
      %5235 = vmatmul.bf16.gmra.mxu0 %v1254
      %v5236 = vpop.f32.mrf.mxu0
      %v5237 = vadd.f32 %v5223, %v5236
      %v5238 = vpop.f32.mrf.mxu0
      %v5239 = vadd.f32 %v5225, %v5238
      %5240 = vdwg.mxu0
      %5241 = vmatpush.bf16.msra.mxu0 0
      %5242 = vmatpush.bf16.msra.mxu0 0
      %5243 = vmatpush.bf16.msra.mxu0 %v4595
      %5244 = vmatpush.bf16.msra.mxu0 %v4587
      %5245 = vmatpush.bf16.msra.mxu0 %v4579
      %5246 = vmatpush.bf16.msra.mxu0 %v4571
      %5247 = vmatpush.bf16.msra.mxu0 %v4563
      %5248 = vmatpush.bf16.msra.mxu0 %v4555
      %5249 = vmatmul.bf16.gmra.mxu0 %v4903
      %v5250 = vpop.f32.mrf.mxu0
      %v5251 = vadd.f32 %v5237, %v5250
      %v5252 = vpop.f32.mrf.mxu0
      %v5253 = vadd.f32 %v5239, %v5252
      %5254 = vdwg.mxu0
      %5255 = vmatpush.bf16.msra.mxu0 %v4356
      %5256 = vmatpush.bf16.msra.mxu0 %v4348
      %5257 = vmatpush.bf16.msra.mxu0 %v4340
      %5258 = vmatpush.bf16.msra.mxu0 %v4332
      %5259 = vmatpush.bf16.msra.mxu0 %v4324
      %5260 = vmatpush.bf16.msra.mxu0 %v4316
      %5261 = vmatpush.bf16.msra.mxu0 %v4308
      %5262 = vmatpush.bf16.msra.mxu0 %v4300
      %5263 = vmatmul.bf16.gmra.mxu0 %v1251
      %v5264 = vpop.f32.mrf.mxu0
      %v5265 = vadd.f32 %v3235, %v5264
      %v5266 = vpop.f32.mrf.mxu0
      %v5267 = vadd.f32 %v3237, %v5266
      %5268 = vdwg.mxu0
      %5269 = vmatpush.bf16.msra.mxu0 %v4420
      %5270 = vmatpush.bf16.msra.mxu0 %v4412
      %5271 = vmatpush.bf16.msra.mxu0 %v4404
      %5272 = vmatpush.bf16.msra.mxu0 %v4396
      %5273 = vmatpush.bf16.msra.mxu0 %v4388
      %5274 = vmatpush.bf16.msra.mxu0 %v4380
      %5275 = vmatpush.bf16.msra.mxu0 %v4372
      %5276 = vmatpush.bf16.msra.mxu0 %v4364
      %5277 = vmatmul.bf16.gmra.mxu0 %v1252
      %v5278 = vpop.f32.mrf.mxu0
      %v5279 = vadd.f32 %v5265, %v5278
      %v5280 = vpop.f32.mrf.mxu0
      %v5281 = vadd.f32 %v5267, %v5280
      %5282 = vdwg.mxu0
      %5283 = vmatpush.bf16.msra.mxu0 %v4484
      %5284 = vmatpush.bf16.msra.mxu0 %v4476
      %5285 = vmatpush.bf16.msra.mxu0 %v4468
      %5286 = vmatpush.bf16.msra.mxu0 %v4460
      %5287 = vmatpush.bf16.msra.mxu0 %v4452
      %5288 = vmatpush.bf16.msra.mxu0 %v4444
      %5289 = vmatpush.bf16.msra.mxu0 %v4436
      %5290 = vmatpush.bf16.msra.mxu0 %v4428
      %5291 = vmatmul.bf16.gmra.mxu0 %v1253
      %v5292 = vpop.f32.mrf.mxu0
      %v5293 = vadd.f32 %v5279, %v5292
      %v5294 = vpop.f32.mrf.mxu0
      %v5295 = vadd.f32 %v5281, %v5294
      %5296 = vdwg.mxu0
      %5297 = vmatpush.bf16.msra.mxu0 %v4548
      %5298 = vmatpush.bf16.msra.mxu0 %v4540
      %5299 = vmatpush.bf16.msra.mxu0 %v4532
      %5300 = vmatpush.bf16.msra.mxu0 %v4524
      %5301 = vmatpush.bf16.msra.mxu0 %v4516
      %5302 = vmatpush.bf16.msra.mxu0 %v4508
      %5303 = vmatpush.bf16.msra.mxu0 %v4500
      %5304 = vmatpush.bf16.msra.mxu0 %v4492
      %5305 = vmatmul.bf16.gmra.mxu0 %v1254
      %v5306 = vpop.f32.mrf.mxu0
      %v5307 = vadd.f32 %v5293, %v5306
      %v5308 = vpop.f32.mrf.mxu0
      %v5309 = vadd.f32 %v5295, %v5308
      %5310 = vdwg.mxu0
      %5311 = vmatpush.bf16.msra.mxu0 0
      %5312 = vmatpush.bf16.msra.mxu0 0
      %5313 = vmatpush.bf16.msra.mxu0 %v4596
      %5314 = vmatpush.bf16.msra.mxu0 %v4588
      %5315 = vmatpush.bf16.msra.mxu0 %v4580
      %5316 = vmatpush.bf16.msra.mxu0 %v4572
      %5317 = vmatpush.bf16.msra.mxu0 %v4564
      %5318 = vmatpush.bf16.msra.mxu0 %v4556
      %5319 = vmatmul.bf16.gmra.mxu0 %v4903
      %v5320 = vpop.f32.mrf.mxu0
      %v5321 = vadd.f32 %v5307, %v5320
      %v5322 = vpop.f32.mrf.mxu0
      %v5323 = vadd.f32 %v5309, %v5322
      %5324 = vdwg.mxu0
      %5325 = vmatpush.bf16.msra.mxu0 %v4357
      %5326 = vmatpush.bf16.msra.mxu0 %v4349
      %5327 = vmatpush.bf16.msra.mxu0 %v4341
      %5328 = vmatpush.bf16.msra.mxu0 %v4333
      %5329 = vmatpush.bf16.msra.mxu0 %v4325
      %5330 = vmatpush.bf16.msra.mxu0 %v4317
      %5331 = vmatpush.bf16.msra.mxu0 %v4309
      %5332 = vmatpush.bf16.msra.mxu0 %v4301
      %5333 = vmatmul.bf16.gmra.mxu0 %v1251
      %v5334 = vpop.f32.mrf.mxu0
      %v5335 = vadd.f32 %v3305, %v5334
      %v5336 = vpop.f32.mrf.mxu0
      %v5337 = vadd.f32 %v3307, %v5336
      %5338 = vdwg.mxu0
      %5339 = vmatpush.bf16.msra.mxu0 %v4421
      %5340 = vmatpush.bf16.msra.mxu0 %v4413
      %5341 = vmatpush.bf16.msra.mxu0 %v4405
      %5342 = vmatpush.bf16.msra.mxu0 %v4397
      %5343 = vmatpush.bf16.msra.mxu0 %v4389
      %5344 = vmatpush.bf16.msra.mxu0 %v4381
      %5345 = vmatpush.bf16.msra.mxu0 %v4373
      %5346 = vmatpush.bf16.msra.mxu0 %v4365
      %5347 = vmatmul.bf16.gmra.mxu0 %v1252
      %v5348 = vpop.f32.mrf.mxu0
      %v5349 = vadd.f32 %v5335, %v5348
      %v5350 = vpop.f32.mrf.mxu0
      %v5351 = vadd.f32 %v5337, %v5350
      %5352 = vdwg.mxu0
      %5353 = vmatpush.bf16.msra.mxu0 %v4485
      %5354 = vmatpush.bf16.msra.mxu0 %v4477
      %5355 = vmatpush.bf16.msra.mxu0 %v4469
      %5356 = vmatpush.bf16.msra.mxu0 %v4461
      %5357 = vmatpush.bf16.msra.mxu0 %v4453
      %5358 = vmatpush.bf16.msra.mxu0 %v4445
      %5359 = vmatpush.bf16.msra.mxu0 %v4437
      %5360 = vmatpush.bf16.msra.mxu0 %v4429
      %5361 = vmatmul.bf16.gmra.mxu0 %v1253
      %v5362 = vpop.f32.mrf.mxu0
      %v5363 = vadd.f32 %v5349, %v5362
      %v5364 = vpop.f32.mrf.mxu0
      %v5365 = vadd.f32 %v5351, %v5364
      %5366 = vdwg.mxu0
      %5367 = vmatpush.bf16.msra.mxu0 %v4549
      %5368 = vmatpush.bf16.msra.mxu0 %v4541
      %5369 = vmatpush.bf16.msra.mxu0 %v4533
      %5370 = vmatpush.bf16.msra.mxu0 %v4525
      %5371 = vmatpush.bf16.msra.mxu0 %v4517
      %5372 = vmatpush.bf16.msra.mxu0 %v4509
      %5373 = vmatpush.bf16.msra.mxu0 %v4501
      %5374 = vmatpush.bf16.msra.mxu0 %v4493
      %5375 = vmatmul.bf16.gmra.mxu0 %v1254
      %v5376 = vpop.f32.mrf.mxu0
      %v5377 = vadd.f32 %v5363, %v5376
      %v5378 = vpop.f32.mrf.mxu0
      %v5379 = vadd.f32 %v5365, %v5378
      %5380 = vdwg.mxu0
      %5381 = vmatpush.bf16.msra.mxu0 0
      %5382 = vmatpush.bf16.msra.mxu0 0
      %5383 = vmatpush.bf16.msra.mxu0 %v4597
      %5384 = vmatpush.bf16.msra.mxu0 %v4589
      %5385 = vmatpush.bf16.msra.mxu0 %v4581
      %5386 = vmatpush.bf16.msra.mxu0 %v4573
      %5387 = vmatpush.bf16.msra.mxu0 %v4565
      %5388 = vmatpush.bf16.msra.mxu0 %v4557
      %5389 = vmatmul.bf16.gmra.mxu0 %v4903
      %v5390 = vpop.f32.mrf.mxu0
      %v5391 = vadd.f32 %v5377, %v5390
      %v5392 = vpop.f32.mrf.mxu0
      %v5393 = vadd.f32 %v5379, %v5392
      %5394 = vdwg.mxu0
      %5395 = vmatpush.bf16.msra.mxu0 %v4358
      %5396 = vmatpush.bf16.msra.mxu0 %v4350
      %5397 = vmatpush.bf16.msra.mxu0 %v4342
      %5398 = vmatpush.bf16.msra.mxu0 %v4334
      %5399 = vmatpush.bf16.msra.mxu0 %v4326
      %5400 = vmatpush.bf16.msra.mxu0 %v4318
      %5401 = vmatpush.bf16.msra.mxu0 %v4310
      %5402 = vmatpush.bf16.msra.mxu0 %v4302
      %5403 = vmatmul.bf16.gmra.mxu0 %v1251
      %v5404 = vpop.f32.mrf.mxu0
      %v5405 = vadd.f32 %v3375, %v5404
      %v5406 = vpop.f32.mrf.mxu0
      %v5407 = vadd.f32 %v3377, %v5406
      %5408 = vdwg.mxu0
      %5409 = vmatpush.bf16.msra.mxu0 %v4422
      %5410 = vmatpush.bf16.msra.mxu0 %v4414
      %5411 = vmatpush.bf16.msra.mxu0 %v4406
      %5412 = vmatpush.bf16.msra.mxu0 %v4398
      %5413 = vmatpush.bf16.msra.mxu0 %v4390
      %5414 = vmatpush.bf16.msra.mxu0 %v4382
      %5415 = vmatpush.bf16.msra.mxu0 %v4374
      %5416 = vmatpush.bf16.msra.mxu0 %v4366
      %5417 = vmatmul.bf16.gmra.mxu0 %v1252
      %v5418 = vpop.f32.mrf.mxu0
      %v5419 = vadd.f32 %v5405, %v5418
      %v5420 = vpop.f32.mrf.mxu0
      %v5421 = vadd.f32 %v5407, %v5420
      %5422 = vdwg.mxu0
      %5423 = vmatpush.bf16.msra.mxu0 %v4486
      %5424 = vmatpush.bf16.msra.mxu0 %v4478
      %5425 = vmatpush.bf16.msra.mxu0 %v4470
      %5426 = vmatpush.bf16.msra.mxu0 %v4462
      %5427 = vmatpush.bf16.msra.mxu0 %v4454
      %5428 = vmatpush.bf16.msra.mxu0 %v4446
      %5429 = vmatpush.bf16.msra.mxu0 %v4438
      %5430 = vmatpush.bf16.msra.mxu0 %v4430
      %5431 = vmatmul.bf16.gmra.mxu0 %v1253
      %v5432 = vpop.f32.mrf.mxu0
      %v5433 = vadd.f32 %v5419, %v5432
      %v5434 = vpop.f32.mrf.mxu0
      %v5435 = vadd.f32 %v5421, %v5434
      %5436 = vdwg.mxu0
      %5437 = vmatpush.bf16.msra.mxu0 %v4550
      %5438 = vmatpush.bf16.msra.mxu0 %v4542
      %5439 = vmatpush.bf16.msra.mxu0 %v4534
      %5440 = vmatpush.bf16.msra.mxu0 %v4526
      %5441 = vmatpush.bf16.msra.mxu0 %v4518
      %5442 = vmatpush.bf16.msra.mxu0 %v4510
      %5443 = vmatpush.bf16.msra.mxu0 %v4502
      %5444 = vmatpush.bf16.msra.mxu0 %v4494
      %5445 = vmatmul.bf16.gmra.mxu0 %v1254
      %v5446 = vpop.f32.mrf.mxu0
      %v5447 = vadd.f32 %v5433, %v5446
      %v5448 = vpop.f32.mrf.mxu0
      %v5449 = vadd.f32 %v5435, %v5448
      %5450 = vdwg.mxu0
      %5451 = vmatpush.bf16.msra.mxu0 0
      %5452 = vmatpush.bf16.msra.mxu0 0
      %5453 = vmatpush.bf16.msra.mxu0 %v4598
      %5454 = vmatpush.bf16.msra.mxu0 %v4590
      %5455 = vmatpush.bf16.msra.mxu0 %v4582
      %5456 = vmatpush.bf16.msra.mxu0 %v4574
      %5457 = vmatpush.bf16.msra.mxu0 %v4566
      %5458 = vmatpush.bf16.msra.mxu0 %v4558
      %5459 = vmatmul.bf16.gmra.mxu0 %v4903
      %v5460 = vpop.f32.mrf.mxu0
      %v5461 = vadd.f32 %v5447, %v5460
      %v5462 = vpop.f32.mrf.mxu0
      %v5463 = vadd.f32 %v5449, %v5462
      %5464 = vdwg.mxu0
      %s5465 = scalar_lea.vmem %s2, 4864
      %v5466 = vld [vmem:[%s5465] sm:$0xff]
      %v5467 = vld [vmem:[%s5465 + $0x8] sm:$0xff]
      %v5468 = vld [vmem:[%s5465 + $0x10] sm:$0xff]
      %v5469 = vld [vmem:[%s5465 + $0x18] sm:$0xff]
      %v5470 = vld [vmem:[%s5465 + $0x20] sm:$0xff]
      %v5471 = vld [vmem:[%s5465 + $0x28] sm:$0xff]
      %v5472 = vld [vmem:[%s5465 + $0x30] sm:$0xff]
      %v5473 = vld [vmem:[%s5465 + $0x38] sm:$0xff]
      %v5474 = vld [vmem:[%s5465 + $0x40] sm:$0xff]
      %v5475 = vld [vmem:[%s5465 + $0x48] sm:$0xff]
      %v5476 = vld [vmem:[%s5465 + $0x50] sm:$0xff]
      %v5477 = vld [vmem:[%s5465 + $0x58] sm:$0xff]
      %v5478 = vld [vmem:[%s5465 + $0x60] sm:$0xff]
      %v5479 = vld [vmem:[%s5465 + $0x68] sm:$0xff]
      %v5480 = vld [vmem:[%s5465 + $0x70] sm:$0xff]
      %v5481 = vld [vmem:[%s5465 + $0x78] sm:$0xff]
      %v5482 = vld [vmem:[%s5465 + $0x80] sm:$0xff]
      %v5483 = vld [vmem:[%s5465 + $0x88] sm:$0xff]
      %v5484 = vld [vmem:[%s5465 + $0x90] sm:$0xff]
      %v5485 = vld [vmem:[%s5465 + $0x98] sm:$0xff]
      %v5486 = vld [vmem:[%s5465 + $0xa0] sm:$0xff]
      %v5487 = vld [vmem:[%s5465 + $0xa8] sm:$0xff]
      %v5488 = vld [vmem:[%s5465 + $0xb0] sm:$0xff]
      %v5489 = vld [vmem:[%s5465 + $0xb8] sm:$0xff]
      %v5490 = vld [vmem:[%s5465 + $0xc0] sm:$0xff]
      %v5491 = vld [vmem:[%s5465 + $0xc8] sm:$0xff]
      %v5492 = vld [vmem:[%s5465 + $0xd0] sm:$0xff]
      %v5493 = vld [vmem:[%s5465 + $0xd8] sm:$0xff]
      %v5494 = vld [vmem:[%s5465 + $0xe0] sm:$0xff]
      %v5495 = vld [vmem:[%s5465 + $0xe8] sm:$0xff]
      %v5496 = vld [vmem:[%s5465 + $0xf0] sm:$0xff]
      %v5497 = vld [vmem:[%s5465 + $0xf8] sm:$0xff]
      %v5498 = vld [vmem:[%s5465 + $0x100] sm:$0xff]
      %v5499 = vld [vmem:[%s5465 + $0x108] sm:$0xff]
      %v5500 = vld [vmem:[%s5465 + $0x110] sm:$0xff]
      %v5501 = vld [vmem:[%s5465 + $0x118] sm:$0xff]
      %v5502 = vld [vmem:[%s5465 + $0x120] sm:$0xff]
      %v5503 = vld [vmem:[%s5465 + $0x128] sm:$0xff]
      %v5504 = vld [vmem:[%s5465 + $0x130] sm:$0xff]
      %v5505 = vld [vmem:[%s5465 + $0x138] sm:$0xff]
      %v5506 = vld [vmem:[%s5465 + $0x140] sm:$0xff]
      %v5507 = vld [vmem:[%s5465 + $0x148] sm:$0xff]
      %v5508 = vld [vmem:[%s5465 + $0x150] sm:$0xff]
      %v5509 = vld [vmem:[%s5465 + $0x158] sm:$0xff]
      %v5510 = vld [vmem:[%s5465 + $0x160] sm:$0xff]
      %v5511 = vld [vmem:[%s5465 + $0x168] sm:$0xff]
      %v5512 = vld [vmem:[%s5465 + $0x170] sm:$0xff]
      %v5513 = vld [vmem:[%s5465 + $0x178] sm:$0xff]
      %v5514 = vld [vmem:[%s5465 + $0x180] sm:$0xff]
      %v5515 = vld [vmem:[%s5465 + $0x188] sm:$0xff]
      %v5516 = vld [vmem:[%s5465 + $0x190] sm:$0xff]
      %v5517 = vld [vmem:[%s5465 + $0x198] sm:$0xff]
      %v5518 = vld [vmem:[%s5465 + $0x1a0] sm:$0xff]
      %v5519 = vld [vmem:[%s5465 + $0x1a8] sm:$0xff]
      %v5520 = vld [vmem:[%s5465 + $0x1b0] sm:$0xff]
      %v5521 = vld [vmem:[%s5465 + $0x1b8] sm:$0xff]
      %v5522 = vld [vmem:[%s5465 + $0x1c0] sm:$0xff]
      %v5523 = vld [vmem:[%s5465 + $0x1c8] sm:$0xff]
      %v5524 = vld [vmem:[%s5465 + $0x1d0] sm:$0xff]
      %v5525 = vld [vmem:[%s5465 + $0x1d8] sm:$0xff]
      %v5526 = vld [vmem:[%s5465 + $0x1e0] sm:$0xff]
      %v5527 = vld [vmem:[%s5465 + $0x1e8] sm:$0xff]
      %v5528 = vld [vmem:[%s5465 + $0x1f0] sm:$0xff]
      %v5529 = vld [vmem:[%s5465 + $0x1f8] sm:$0xff]
      %v5530 = vld [vmem:[%s5465 + $0x200] sm:$0xff]
      %v5531 = vld [vmem:[%s5465 + $0x208] sm:$0xff]
      %v5532 = vld [vmem:[%s5465 + $0x210] sm:$0xff]
      %v5533 = vld [vmem:[%s5465 + $0x218] sm:$0xff]
      %v5534 = vld [vmem:[%s5465 + $0x220] sm:$0xff]
      %v5535 = vld [vmem:[%s5465 + $0x228] sm:$0xff]
      %v5536 = vld [vmem:[%s5465 + $0x230] sm:$0xff]
      %v5537 = vld [vmem:[%s5465 + $0x238] sm:$0xff]
      %v5538 = vld [vmem:[%s5465 + $0x240] sm:$0xff]
      %v5539 = vld [vmem:[%s5465 + $0x248] sm:$0xff]
      %v5540 = vld [vmem:[%s5465 + $0x250] sm:$0xff]
      %v5541 = vld [vmem:[%s5465 + $0x258] sm:$0xff]
      %v5542 = vld [vmem:[%s5465 + $0x260] sm:$0xff]
      %v5543 = vld [vmem:[%s5465 + $0x268] sm:$0xff]
      %v5544 = vld [vmem:[%s5465 + $0x270] sm:$0xff]
      %v5545 = vld [vmem:[%s5465 + $0x278] sm:$0xff]
      %v5546 = vld [vmem:[%s5465 + $0x280] sm:$0xff]
      %v5547 = vld [vmem:[%s5465 + $0x288] sm:$0xff]
      %v5548 = vld [vmem:[%s5465 + $0x290] sm:$0xff]
      %v5549 = vld [vmem:[%s5465 + $0x298] sm:$0xff]
      %v5550 = vld [vmem:[%s5465 + $0x2a0] sm:$0xff]
      %v5551 = vld [vmem:[%s5465 + $0x2a8] sm:$0xff]
      %v5552 = vld [vmem:[%s5465 + $0x2b0] sm:$0xff]
      %v5553 = vld [vmem:[%s5465 + $0x2b8] sm:$0xff]
      %v5554 = vld [vmem:[%s5465 + $0x2c0] sm:$0xff]
      %v5555 = vld [vmem:[%s5465 + $0x2c8] sm:$0xff]
      %v5556 = vld [vmem:[%s5465 + $0x2d0] sm:$0xff]
      %v5557 = vld [vmem:[%s5465 + $0x2d8] sm:$0xff]
      %v5558 = vld [vmem:[%s5465 + $0x2e0] sm:$0xff]
      %v5559 = vld [vmem:[%s5465 + $0x2e8] sm:$0xff]
      %v5560 = vld [vmem:[%s5465 + $0x2f0] sm:$0xff]
      %v5561 = vld [vmem:[%s5465 + $0x2f8] sm:$0xff]
      %v5562 = vld [vmem:[%s5465 + $0x300] sm:$0xff]
      %v5563 = vld [vmem:[%s5465 + $0x308] sm:$0xff]
      %v5564 = vld [vmem:[%s5465 + $0x310] sm:$0xff]
      %v5565 = vld [vmem:[%s5465 + $0x318] sm:$0xff]
      %v5566 = vld [vmem:[%s5465 + $0x320] sm:$0xff]
      %v5567 = vld [vmem:[%s5465 + $0x328] sm:$0xff]
      %v5568 = vld [vmem:[%s5465 + $0x330] sm:$0xff]
      %v5569 = vld [vmem:[%s5465 + $0x338] sm:$0xff]
      %v5570 = vld [vmem:[%s5465 + $0x340] sm:$0xff]
      %v5571 = vld [vmem:[%s5465 + $0x348] sm:$0xff]
      %v5572 = vld [vmem:[%s5465 + $0x350] sm:$0xff]
      %v5573 = vld [vmem:[%s5465 + $0x358] sm:$0xff]
      %v5574 = vld [vmem:[%s5465 + $0x360] sm:$0xff]
      %v5575 = vld [vmem:[%s5465 + $0x368] sm:$0xff]
      %v5576 = vld [vmem:[%s5465 + $0x370] sm:$0xff]
      %v5577 = vld [vmem:[%s5465 + $0x378] sm:$0xff]
      %v5578 = vld [vmem:[%s5465 + $0x380] sm:$0xff]
      %v5579 = vld [vmem:[%s5465 + $0x388] sm:$0xff]
      %v5580 = vld [vmem:[%s5465 + $0x390] sm:$0xff]
      %v5581 = vld [vmem:[%s5465 + $0x398] sm:$0xff]
      %v5582 = vld [vmem:[%s5465 + $0x3a0] sm:$0xff]
      %v5583 = vld [vmem:[%s5465 + $0x3a8] sm:$0xff]
      %v5584 = vld [vmem:[%s5465 + $0x3b0] sm:$0xff]
      %v5585 = vld [vmem:[%s5465 + $0x3b8] sm:$0xff]
      %v5586 = vld [vmem:[%s5465 + $0x3c0] sm:$0xff]
      %v5587 = vld [vmem:[%s5465 + $0x3c8] sm:$0xff]
      %v5588 = vld [vmem:[%s5465 + $0x3d0] sm:$0xff]
      %v5589 = vld [vmem:[%s5465 + $0x3d8] sm:$0xff]
      %v5590 = vld [vmem:[%s5465 + $0x3e0] sm:$0xff]
      %v5591 = vld [vmem:[%s5465 + $0x3e8] sm:$0xff]
      %v5592 = vld [vmem:[%s5465 + $0x3f0] sm:$0xff]
      %v5593 = vld [vmem:[%s5465 + $0x3f8] sm:$0xff]
      %v5594 = vld [vmem:[%s5465 + $0x400] sm:$0xff]
      %v5595 = vld [vmem:[%s5465 + $0x408] sm:$0xff]
      %v5596 = vld [vmem:[%s5465 + $0x410] sm:$0xff]
      %v5597 = vld [vmem:[%s5465 + $0x418] sm:$0xff]
      %v5598 = vld [vmem:[%s5465 + $0x420] sm:$0xff]
      %v5599 = vld [vmem:[%s5465 + $0x428] sm:$0xff]
      %v5600 = vld [vmem:[%s5465 + $0x430] sm:$0xff]
      %v5601 = vld [vmem:[%s5465 + $0x438] sm:$0xff]
      %v5602 = vld [vmem:[%s5465 + $0x440] sm:$0xff]
      %v5603 = vld [vmem:[%s5465 + $0x448] sm:$0xff]
      %v5604 = vld [vmem:[%s5465 + $0x450] sm:$0xff]
      %v5605 = vld [vmem:[%s5465 + $0x458] sm:$0xff]
      %v5606 = vld [vmem:[%s5465 + $0x460] sm:$0xff]
      %v5607 = vld [vmem:[%s5465 + $0x468] sm:$0xff]
      %v5608 = vld [vmem:[%s5465 + $0x470] sm:$0xff]
      %v5609 = vld [vmem:[%s5465 + $0x478] sm:$0xff]
      %v5610 = vld [vmem:[%s5465 + $0x480] sm:$0xff]
      %v5611 = vld [vmem:[%s5465 + $0x488] sm:$0xff]
      %v5612 = vld [vmem:[%s5465 + $0x490] sm:$0xff]
      %v5613 = vld [vmem:[%s5465 + $0x498] sm:$0xff]
      %v5614 = vld [vmem:[%s5465 + $0x4a0] sm:$0xff]
      %v5615 = vld [vmem:[%s5465 + $0x4a8] sm:$0xff]
      %v5616 = vld [vmem:[%s5465 + $0x4b0] sm:$0xff]
      %v5617 = vld [vmem:[%s5465 + $0x4b8] sm:$0xff]
      %v5618 = vld [vmem:[%s5465 + $0x4c0] sm:$0xff]
      %v5619 = vld [vmem:[%s5465 + $0x4c8] sm:$0xff]
      %v5620 = vld [vmem:[%s5465 + $0x4d0] sm:$0xff]
      %v5621 = vld [vmem:[%s5465 + $0x4d8] sm:$0xff]
      %v5622 = vld [vmem:[%s5465 + $0x4e0] sm:$0xff]
      %v5623 = vld [vmem:[%s5465 + $0x4e8] sm:$0xff]
      %v5624 = vld [vmem:[%s5465 + $0x4f0] sm:$0xff]
      %v5625 = vld [vmem:[%s5465 + $0x4f8] sm:$0xff]
      %v5626 = vld [vmem:[%s5465 + $0x500] sm:$0xff]
      %v5627 = vld [vmem:[%s5465 + $0x508] sm:$0xff]
      %v5628 = vld [vmem:[%s5465 + $0x510] sm:$0xff]
      %v5629 = vld [vmem:[%s5465 + $0x518] sm:$0xff]
      %v5630 = vld [vmem:[%s5465 + $0x520] sm:$0xff]
      %v5631 = vld [vmem:[%s5465 + $0x528] sm:$0xff]
      %v5632 = vld [vmem:[%s5465 + $0x530] sm:$0xff]
      %v5633 = vld [vmem:[%s5465 + $0x538] sm:$0xff]
      %v5634 = vld [vmem:[%s5465 + $0x540] sm:$0xff]
      %v5635 = vld [vmem:[%s5465 + $0x548] sm:$0xff]
      %v5636 = vld [vmem:[%s5465 + $0x550] sm:$0xff]
      %v5637 = vld [vmem:[%s5465 + $0x558] sm:$0xff]
      %v5638 = vld [vmem:[%s5465 + $0x560] sm:$0xff]
      %v5639 = vld [vmem:[%s5465 + $0x568] sm:$0xff]
      %v5640 = vld [vmem:[%s5465 + $0x570] sm:$0xff]
      %v5641 = vld [vmem:[%s5465 + $0x578] sm:$0xff]
      %v5642 = vld [vmem:[%s5465 + $0x580] sm:$0xff]
      %v5643 = vld [vmem:[%s5465 + $0x588] sm:$0xff]
      %v5644 = vld [vmem:[%s5465 + $0x590] sm:$0xff]
      %v5645 = vld [vmem:[%s5465 + $0x598] sm:$0xff]
      %v5646 = vld [vmem:[%s5465 + $0x5a0] sm:$0xff]
      %v5647 = vld [vmem:[%s5465 + $0x5a8] sm:$0xff]
      %v5648 = vld [vmem:[%s5465 + $0x5b0] sm:$0xff]
      %v5649 = vld [vmem:[%s5465 + $0x5b8] sm:$0xff]
      %v5650 = vld [vmem:[%s5465 + $0x5c0] sm:$0xff]
      %v5651 = vld [vmem:[%s5465 + $0x5c8] sm:$0xff]
      %v5652 = vld [vmem:[%s5465 + $0x5d0] sm:$0xff]
      %v5653 = vld [vmem:[%s5465 + $0x5d8] sm:$0xff]
      %v5654 = vld [vmem:[%s5465 + $0x5e0] sm:$0xff]
      %v5655 = vld [vmem:[%s5465 + $0x5e8] sm:$0xff]
      %v5656 = vld [vmem:[%s5465 + $0x5f0] sm:$0xff]
      %v5657 = vld [vmem:[%s5465 + $0x5f8] sm:$0xff]
      %v5658 = vld [vmem:[%s5465 + $0x600] sm:$0xff]
      %v5659 = vld [vmem:[%s5465 + $0x608] sm:$0xff]
      %v5660 = vld [vmem:[%s5465 + $0x610] sm:$0xff]
      %v5661 = vld [vmem:[%s5465 + $0x618] sm:$0xff]
      %v5662 = vld [vmem:[%s5465 + $0x620] sm:$0xff]
      %v5663 = vld [vmem:[%s5465 + $0x628] sm:$0xff]
      %v5664 = vld [vmem:[%s5465 + $0x630] sm:$0xff]
      %v5665 = vld [vmem:[%s5465 + $0x638] sm:$0xff]
      %v5666 = vld [vmem:[%s5465 + $0x640] sm:$0xff]
      %v5667 = vld [vmem:[%s5465 + $0x648] sm:$0xff]
      %v5668 = vld [vmem:[%s5465 + $0x650] sm:$0xff]
      %v5669 = vld [vmem:[%s5465 + $0x658] sm:$0xff]
      %v5670 = vld [vmem:[%s5465 + $0x660] sm:$0xff]
      %v5671 = vld [vmem:[%s5465 + $0x668] sm:$0xff]
      %v5672 = vld [vmem:[%s5465 + $0x670] sm:$0xff]
      %v5673 = vld [vmem:[%s5465 + $0x678] sm:$0xff]
      %v5674 = vld [vmem:[%s5465 + $0x680] sm:$0xff]
      %v5675 = vld [vmem:[%s5465 + $0x688] sm:$0xff]
      %v5676 = vld [vmem:[%s5465 + $0x690] sm:$0xff]
      %v5677 = vld [vmem:[%s5465 + $0x698] sm:$0xff]
      %v5678 = vld [vmem:[%s5465 + $0x6a0] sm:$0xff]
      %v5679 = vld [vmem:[%s5465 + $0x6a8] sm:$0xff]
      %v5680 = vld [vmem:[%s5465 + $0x6b0] sm:$0xff]
      %v5681 = vld [vmem:[%s5465 + $0x6b8] sm:$0xff]
      %v5682 = vld [vmem:[%s5465 + $0x6c0] sm:$0xff]
      %v5683 = vld [vmem:[%s5465 + $0x6c8] sm:$0xff]
      %v5684 = vld [vmem:[%s5465 + $0x6d0] sm:$0xff]
      %v5685 = vld [vmem:[%s5465 + $0x6d8] sm:$0xff]
      %v5686 = vld [vmem:[%s5465 + $0x6e0] sm:$0xff]
      %v5687 = vld [vmem:[%s5465 + $0x6e8] sm:$0xff]
      %v5688 = vld [vmem:[%s5465 + $0x6f0] sm:$0xff]
      %v5689 = vld [vmem:[%s5465 + $0x6f8] sm:$0xff]
      %v5690 = vld [vmem:[%s5465 + $0x700] sm:$0xff]
      %v5691 = vld [vmem:[%s5465 + $0x708] sm:$0xff]
      %v5692 = vld [vmem:[%s5465 + $0x710] sm:$0xff]
      %v5693 = vld [vmem:[%s5465 + $0x718] sm:$0xff]
      %v5694 = vld [vmem:[%s5465 + $0x720] sm:$0xff]
      %v5695 = vld [vmem:[%s5465 + $0x728] sm:$0xff]
      %v5696 = vld [vmem:[%s5465 + $0x730] sm:$0xff]
      %v5697 = vld [vmem:[%s5465 + $0x738] sm:$0xff]
      %v5698 = vld [vmem:[%s5465 + $0x740] sm:$0xff]
      %v5699 = vld [vmem:[%s5465 + $0x748] sm:$0xff]
      %v5700 = vld [vmem:[%s5465 + $0x750] sm:$0xff]
      %v5701 = vld [vmem:[%s5465 + $0x758] sm:$0xff]
      %v5702 = vld [vmem:[%s5465 + $0x760] sm:$0xff]
      %v5703 = vld [vmem:[%s5465 + $0x768] sm:$0xff]
      %v5704 = vld [vmem:[%s5465 + $0x770] sm:$0xff]
      %v5705 = vld [vmem:[%s5465 + $0x778] sm:$0xff]
      %v5706 = vld [vmem:[%s5465 + $0x780] sm:$0xff]
      %v5707 = vld [vmem:[%s5465 + $0x788] sm:$0xff]
      %v5708 = vld [vmem:[%s5465 + $0x790] sm:$0xff]
      %v5709 = vld [vmem:[%s5465 + $0x798] sm:$0xff]
      %v5710 = vld [vmem:[%s5465 + $0x7a0] sm:$0xff]
      %v5711 = vld [vmem:[%s5465 + $0x7a8] sm:$0xff]
      %v5712 = vld [vmem:[%s5465 + $0x7b0] sm:$0xff]
      %v5713 = vld [vmem:[%s5465 + $0x7b8] sm:$0xff]
      %v5714 = vld [vmem:[%s5465 + $0x7c0] sm:$0xff]
      %v5715 = vld [vmem:[%s5465 + $0x7c8] sm:$0xff]
      %v5716 = vld [vmem:[%s5465 + $0x7d0] sm:$0xff]
      %v5717 = vld [vmem:[%s5465 + $0x7d8] sm:$0xff]
      %v5718 = vld [vmem:[%s5465 + $0x7e0] sm:$0xff]
      %v5719 = vld [vmem:[%s5465 + $0x7e8] sm:$0xff]
      %v5720 = vld [vmem:[%s5465 + $0x7f0] sm:$0xff]
      %v5721 = vld [vmem:[%s5465 + $0x7f8] sm:$0xff]
      %v5722 = vld [vmem:[%s5465 + $0x800] sm:$0xff]
      %v5723 = vld [vmem:[%s5465 + $0x808] sm:$0xff]
      %v5724 = vld [vmem:[%s5465 + $0x810] sm:$0xff]
      %v5725 = vld [vmem:[%s5465 + $0x818] sm:$0xff]
      %v5726 = vld [vmem:[%s5465 + $0x820] sm:$0xff]
      %v5727 = vld [vmem:[%s5465 + $0x828] sm:$0xff]
      %v5728 = vld [vmem:[%s5465 + $0x830] sm:$0xff]
      %v5729 = vld [vmem:[%s5465 + $0x838] sm:$0xff]
      %v5730 = vld [vmem:[%s5465 + $0x840] sm:$0xff]
      %v5731 = vld [vmem:[%s5465 + $0x848] sm:$0xff]
      %v5732 = vld [vmem:[%s5465 + $0x850] sm:$0xff]
      %v5733 = vld [vmem:[%s5465 + $0x858] sm:$0xff]
      %v5734 = vld [vmem:[%s5465 + $0x860] sm:$0xff]
      %v5735 = vld [vmem:[%s5465 + $0x868] sm:$0xff]
      %v5736 = vld [vmem:[%s5465 + $0x870] sm:$0xff]
      %v5737 = vld [vmem:[%s5465 + $0x878] sm:$0xff]
      %v5738 = vld [vmem:[%s5465 + $0x880] sm:$0xff]
      %v5739 = vld [vmem:[%s5465 + $0x888] sm:$0xff]
      %v5740 = vld [vmem:[%s5465 + $0x890] sm:$0xff]
      %v5741 = vld [vmem:[%s5465 + $0x898] sm:$0xff]
      %v5742 = vld [vmem:[%s5465 + $0x8a0] sm:$0xff]
      %v5743 = vld [vmem:[%s5465 + $0x8a8] sm:$0xff]
      %v5744 = vld [vmem:[%s5465 + $0x8b0] sm:$0xff]
      %v5745 = vld [vmem:[%s5465 + $0x8b8] sm:$0xff]
      %v5746 = vld [vmem:[%s5465 + $0x8c0] sm:$0xff]
      %v5747 = vld [vmem:[%s5465 + $0x8c8] sm:$0xff]
      %v5748 = vld [vmem:[%s5465 + $0x8d0] sm:$0xff]
      %v5749 = vld [vmem:[%s5465 + $0x8d8] sm:$0xff]
      %v5750 = vld [vmem:[%s5465 + $0x8e0] sm:$0xff]
      %v5751 = vld [vmem:[%s5465 + $0x8e8] sm:$0xff]
      %v5752 = vld [vmem:[%s5465 + $0x8f0] sm:$0xff]
      %v5753 = vld [vmem:[%s5465 + $0x8f8] sm:$0xff]
      %v5754 = vld [vmem:[%s5465 + $0x900] sm:$0xff]
      %v5755 = vld [vmem:[%s5465 + $0x908] sm:$0xff]
      %v5756 = vld [vmem:[%s5465 + $0x910] sm:$0xff]
      %v5757 = vld [vmem:[%s5465 + $0x918] sm:$0xff]
      %v5758 = vld [vmem:[%s5465 + $0x920] sm:$0xff]
      %v5759 = vld [vmem:[%s5465 + $0x928] sm:$0xff]
      %v5760 = vld [vmem:[%s5465 + $0x930] sm:$0xff]
      %v5761 = vld [vmem:[%s5465 + $0x938] sm:$0xff]
      %v5762 = vld [vmem:[%s5465 + $0x940] sm:$0xff]
      %v5763 = vld [vmem:[%s5465 + $0x948] sm:$0xff]
      %v5764 = vld [vmem:[%s5465 + $0x950] sm:$0xff]
      %v5765 = vld [vmem:[%s5465 + $0x958] sm:$0xff]
      %v5766 = vld [vmem:[%s5465 + $0x960] sm:$0xff]
      %v5767 = vld [vmem:[%s5465 + $0x968] sm:$0xff]
      %v5768 = vld [vmem:[%s5465 + $0x970] sm:$0xff]
      %v5769 = vld [vmem:[%s5465 + $0x978] sm:$0xff]
      %v5770 = vrot.slane %v1251, 1
      %v5771 = vrot.slane %v1252, 1
      %v5772 = vrot.slane %v1253, 1
      %v5773 = vrot.slane %v1254, 1
      %v5774 = vrot.slane %v1255, 1
      %v6083 = vunpack.c.l.b16 %v5466
      %v6084 = vunpack.c.h.b16 %v5466
      %v6085 = vunpack.c.l.b16 %v5467
      %v6086 = vunpack.c.h.b16 %v5467
      %v6087 = vunpack.c.l.b16 %v5468
      %v6088 = vunpack.c.h.b16 %v5468
      %v6089 = vunpack.c.l.b16 %v5469
      %v6090 = vunpack.c.h.b16 %v5469
      %v6091 = vunpack.c.l.b16 %v5470
      %v6092 = vunpack.c.h.b16 %v5470
      %v6093 = vunpack.c.l.b16 %v5471
      %v6094 = vunpack.c.h.b16 %v5471
      %v6095 = vunpack.c.l.b16 %v5472
      %v6096 = vunpack.c.h.b16 %v5472
      %v6097 = vunpack.c.l.b16 %v5473
      %v6098 = vunpack.c.h.b16 %v5473
      %v6099 = vunpack.c.l.b16 %v5474
      %v6100 = vunpack.c.h.b16 %v5474
      %v6101 = vunpack.c.l.b16 %v5475
      %v6102 = vunpack.c.h.b16 %v5475
      %v6103 = vunpack.c.l.b16 %v5476
      %v6104 = vunpack.c.h.b16 %v5476
      %v6105 = vunpack.c.l.b16 %v5477
      %v6106 = vunpack.c.h.b16 %v5477
      %v6107 = vunpack.c.l.b16 %v5478
      %v6108 = vunpack.c.h.b16 %v5478
      %v6109 = vunpack.c.l.b16 %v5479
      %v6110 = vunpack.c.h.b16 %v5479
      %v6111 = vunpack.c.l.b16 %v5480
      %v6112 = vunpack.c.h.b16 %v5480
      %v6113 = vunpack.c.l.b16 %v5481
      %v6114 = vunpack.c.h.b16 %v5481
      %v6115 = vunpack.c.l.b16 %v5482
      %v6116 = vunpack.c.h.b16 %v5482
      %v6117 = vunpack.c.l.b16 %v5483
      %v6118 = vunpack.c.h.b16 %v5483
      %v6119 = vunpack.c.l.b16 %v5484
      %v6120 = vunpack.c.h.b16 %v5484
      %v6121 = vunpack.c.l.b16 %v5485
      %v6122 = vunpack.c.h.b16 %v5485
      %v6123 = vunpack.c.l.b16 %v5486
      %v6124 = vunpack.c.h.b16 %v5486
      %v6125 = vunpack.c.l.b16 %v5487
      %v6126 = vunpack.c.h.b16 %v5487
      %v6127 = vunpack.c.l.b16 %v5488
      %v6128 = vunpack.c.h.b16 %v5488
      %v6129 = vunpack.c.l.b16 %v5489
      %v6130 = vunpack.c.h.b16 %v5489
      %v6131 = vunpack.c.l.b16 %v5490
      %v6132 = vunpack.c.h.b16 %v5490
      %v6133 = vunpack.c.l.b16 %v5491
      %v6134 = vunpack.c.h.b16 %v5491
      %v6135 = vunpack.c.l.b16 %v5492
      %v6136 = vunpack.c.h.b16 %v5492
      %v6137 = vunpack.c.l.b16 %v5493
      %v6138 = vunpack.c.h.b16 %v5493
      %v6139 = vunpack.c.l.b16 %v5494
      %v6140 = vunpack.c.h.b16 %v5494
      %v6141 = vunpack.c.l.b16 %v5495
      %v6142 = vunpack.c.h.b16 %v5495
      %v6143 = vunpack.c.l.b16 %v5496
      %v6144 = vunpack.c.h.b16 %v5496
      %v6145 = vunpack.c.l.b16 %v5497
      %v6146 = vunpack.c.h.b16 %v5497
      %v6147 = vunpack.c.l.b16 %v5498
      %v6148 = vunpack.c.h.b16 %v5498
      %v6149 = vunpack.c.l.b16 %v5499
      %v6150 = vunpack.c.h.b16 %v5499
      %v6151 = vunpack.c.l.b16 %v5500
      %v6152 = vunpack.c.h.b16 %v5500
      %v6153 = vunpack.c.l.b16 %v5501
      %v6154 = vunpack.c.h.b16 %v5501
      %v6155 = vunpack.c.l.b16 %v5502
      %v6156 = vunpack.c.h.b16 %v5502
      %v6157 = vunpack.c.l.b16 %v5503
      %v6158 = vunpack.c.h.b16 %v5503
      %v6159 = vunpack.c.l.b16 %v5504
      %v6160 = vunpack.c.h.b16 %v5504
      %v6161 = vunpack.c.l.b16 %v5505
      %v6162 = vunpack.c.h.b16 %v5505
      %v6163 = vunpack.c.l.b16 %v5506
      %v6164 = vunpack.c.h.b16 %v5506
      %v6165 = vunpack.c.l.b16 %v5507
      %v6166 = vunpack.c.h.b16 %v5507
      %v6167 = vunpack.c.l.b16 %v5508
      %v6168 = vunpack.c.h.b16 %v5508
      %v6169 = vunpack.c.l.b16 %v5509
      %v6170 = vunpack.c.h.b16 %v5509
      %v6171 = vunpack.c.l.b16 %v5510
      %v6172 = vunpack.c.h.b16 %v5510
      %v6173 = vunpack.c.l.b16 %v5511
      %v6174 = vunpack.c.h.b16 %v5511
      %v6175 = vunpack.c.l.b16 %v5512
      %v6176 = vunpack.c.h.b16 %v5512
      %v6177 = vunpack.c.l.b16 %v5513
      %v6178 = vunpack.c.h.b16 %v5513
      %v6179 = vunpack.c.l.b16 %v5514
      %v6180 = vunpack.c.h.b16 %v5514
      %v6181 = vunpack.c.l.b16 %v5515
      %v6182 = vunpack.c.h.b16 %v5515
      %v6183 = vunpack.c.l.b16 %v5516
      %v6184 = vunpack.c.h.b16 %v5516
      %v6185 = vunpack.c.l.b16 %v5517
      %v6186 = vunpack.c.h.b16 %v5517
      %v6187 = vunpack.c.l.b16 %v5518
      %v6188 = vunpack.c.h.b16 %v5518
      %v6189 = vunpack.c.l.b16 %v5519
      %v6190 = vunpack.c.h.b16 %v5519
      %v6191 = vunpack.c.l.b16 %v5520
      %v6192 = vunpack.c.h.b16 %v5520
      %v6193 = vunpack.c.l.b16 %v5521
      %v6194 = vunpack.c.h.b16 %v5521
      %v6195 = vunpack.c.l.b16 %v5522
      %v6196 = vunpack.c.h.b16 %v5522
      %v6197 = vunpack.c.l.b16 %v5523
      %v6198 = vunpack.c.h.b16 %v5523
      %v6199 = vunpack.c.l.b16 %v5524
      %v6200 = vunpack.c.h.b16 %v5524
      %v6201 = vunpack.c.l.b16 %v5525
      %v6202 = vunpack.c.h.b16 %v5525
      %v6203 = vunpack.c.l.b16 %v5526
      %v6204 = vunpack.c.h.b16 %v5526
      %v6205 = vunpack.c.l.b16 %v5527
      %v6206 = vunpack.c.h.b16 %v5527
      %v6207 = vunpack.c.l.b16 %v5528
      %v6208 = vunpack.c.h.b16 %v5528
      %v6209 = vunpack.c.l.b16 %v5529
      %v6210 = vunpack.c.h.b16 %v5529
      %v6211 = vunpack.c.l.b16 %v5530
      %v6212 = vunpack.c.h.b16 %v5530
      %v6213 = vunpack.c.l.b16 %v5531
      %v6214 = vunpack.c.h.b16 %v5531
      %v6215 = vunpack.c.l.b16 %v5532
      %v6216 = vunpack.c.h.b16 %v5532
      %v6217 = vunpack.c.l.b16 %v5533
      %v6218 = vunpack.c.h.b16 %v5533
      %v6219 = vunpack.c.l.b16 %v5534
      %v6220 = vunpack.c.h.b16 %v5534
      %v6221 = vunpack.c.l.b16 %v5535
      %v6222 = vunpack.c.h.b16 %v5535
      %v6223 = vunpack.c.l.b16 %v5536
      %v6224 = vunpack.c.h.b16 %v5536
      %v6225 = vunpack.c.l.b16 %v5537
      %v6226 = vunpack.c.h.b16 %v5537
      %v6227 = vunpack.c.l.b16 %v5538
      %v6228 = vunpack.c.h.b16 %v5538
      %v6229 = vunpack.c.l.b16 %v5539
      %v6230 = vunpack.c.h.b16 %v5539
      %v6231 = vunpack.c.l.b16 %v5540
      %v6232 = vunpack.c.h.b16 %v5540
      %v6233 = vunpack.c.l.b16 %v5541
      %v6234 = vunpack.c.h.b16 %v5541
      %v6235 = vunpack.c.l.b16 %v5542
      %v6236 = vunpack.c.h.b16 %v5542
      %v6237 = vunpack.c.l.b16 %v5543
      %v6238 = vunpack.c.h.b16 %v5543
      %v6239 = vunpack.c.l.b16 %v5544
      %v6240 = vunpack.c.h.b16 %v5544
      %v6241 = vunpack.c.l.b16 %v5545
      %v6242 = vunpack.c.h.b16 %v5545
      %v6243 = vunpack.c.l.b16 %v5546
      %v6244 = vunpack.c.h.b16 %v5546
      %v6245 = vunpack.c.l.b16 %v5547
      %v6246 = vunpack.c.h.b16 %v5547
      %v6247 = vunpack.c.l.b16 %v5548
      %v6248 = vunpack.c.h.b16 %v5548
      %v6249 = vunpack.c.l.b16 %v5549
      %v6250 = vunpack.c.h.b16 %v5549
      %v6251 = vunpack.c.l.b16 %v5550
      %v6252 = vunpack.c.h.b16 %v5550
      %v6253 = vunpack.c.l.b16 %v5551
      %v6254 = vunpack.c.h.b16 %v5551
      %v6255 = vunpack.c.l.b16 %v5552
      %v6256 = vunpack.c.h.b16 %v5552
      %v6257 = vunpack.c.l.b16 %v5553
      %v6258 = vunpack.c.h.b16 %v5553
      %v6259 = vunpack.c.l.b16 %v5554
      %v6260 = vunpack.c.h.b16 %v5554
      %v6261 = vunpack.c.l.b16 %v5555
      %v6262 = vunpack.c.h.b16 %v5555
      %v6263 = vunpack.c.l.b16 %v5556
      %v6264 = vunpack.c.h.b16 %v5556
      %v6265 = vunpack.c.l.b16 %v5557
      %v6266 = vunpack.c.h.b16 %v5557
      %v6267 = vunpack.c.l.b16 %v5558
      %v6268 = vunpack.c.h.b16 %v5558
      %v6269 = vunpack.c.l.b16 %v5559
      %v6270 = vunpack.c.h.b16 %v5559
      %v6271 = vunpack.c.l.b16 %v5560
      %v6272 = vunpack.c.h.b16 %v5560
      %v6273 = vunpack.c.l.b16 %v5561
      %v6274 = vunpack.c.h.b16 %v5561
      %v6275 = vunpack.c.l.b16 %v5562
      %v6276 = vunpack.c.h.b16 %v5562
      %v6277 = vunpack.c.l.b16 %v5563
      %v6278 = vunpack.c.h.b16 %v5563
      %v6279 = vunpack.c.l.b16 %v5564
      %v6280 = vunpack.c.h.b16 %v5564
      %v6281 = vunpack.c.l.b16 %v5565
      %v6282 = vunpack.c.h.b16 %v5565
      %v6283 = vunpack.c.l.b16 %v5566
      %v6284 = vunpack.c.h.b16 %v5566
      %v6285 = vunpack.c.l.b16 %v5567
      %v6286 = vunpack.c.h.b16 %v5567
      %v6287 = vunpack.c.l.b16 %v5568
      %v6288 = vunpack.c.h.b16 %v5568
      %v6289 = vunpack.c.l.b16 %v5569
      %v6290 = vunpack.c.h.b16 %v5569
      %v6291 = vunpack.c.l.b16 %v5570
      %v6292 = vunpack.c.h.b16 %v5570
      %v6293 = vunpack.c.l.b16 %v5571
      %v6294 = vunpack.c.h.b16 %v5571
      %v6295 = vunpack.c.l.b16 %v5572
      %v6296 = vunpack.c.h.b16 %v5572
      %v6297 = vunpack.c.l.b16 %v5573
      %v6298 = vunpack.c.h.b16 %v5573
      %v6299 = vunpack.c.l.b16 %v5574
      %v6300 = vunpack.c.h.b16 %v5574
      %v6301 = vunpack.c.l.b16 %v5575
      %v6302 = vunpack.c.h.b16 %v5575
      %v6303 = vunpack.c.l.b16 %v5576
      %v6304 = vunpack.c.h.b16 %v5576
      %v6305 = vunpack.c.l.b16 %v5577
      %v6306 = vunpack.c.h.b16 %v5577
      %v6307 = vunpack.c.l.b16 %v5578
      %v6308 = vunpack.c.h.b16 %v5578
      %v6309 = vunpack.c.l.b16 %v5579
      %v6310 = vunpack.c.h.b16 %v5579
      %v6311 = vunpack.c.l.b16 %v5580
      %v6312 = vunpack.c.h.b16 %v5580
      %v6313 = vunpack.c.l.b16 %v5581
      %v6314 = vunpack.c.h.b16 %v5581
      %v6315 = vunpack.c.l.b16 %v5582
      %v6316 = vunpack.c.h.b16 %v5582
      %v6317 = vunpack.c.l.b16 %v5583
      %v6318 = vunpack.c.h.b16 %v5583
      %v6319 = vunpack.c.l.b16 %v5584
      %v6320 = vunpack.c.h.b16 %v5584
      %v6321 = vunpack.c.l.b16 %v5585
      %v6322 = vunpack.c.h.b16 %v5585
      %v6323 = vunpack.c.l.b16 %v5586
      %v6324 = vunpack.c.h.b16 %v5586
      %v6325 = vunpack.c.l.b16 %v5587
      %v6326 = vunpack.c.h.b16 %v5587
      %v6327 = vunpack.c.l.b16 %v5588
      %v6328 = vunpack.c.h.b16 %v5588
      %v6329 = vunpack.c.l.b16 %v5589
      %v6330 = vunpack.c.h.b16 %v5589
      %v6331 = vunpack.c.l.b16 %v5590
      %v6332 = vunpack.c.h.b16 %v5590
      %v6333 = vunpack.c.l.b16 %v5591
      %v6334 = vunpack.c.h.b16 %v5591
      %v6335 = vunpack.c.l.b16 %v5592
      %v6336 = vunpack.c.h.b16 %v5592
      %v6337 = vunpack.c.l.b16 %v5593
      %v6338 = vunpack.c.h.b16 %v5593
      %v6339 = vunpack.c.l.b16 %v5594
      %v6340 = vunpack.c.h.b16 %v5594
      %v6341 = vunpack.c.l.b16 %v5595
      %v6342 = vunpack.c.h.b16 %v5595
      %v6343 = vunpack.c.l.b16 %v5596
      %v6344 = vunpack.c.h.b16 %v5596
      %v6345 = vunpack.c.l.b16 %v5597
      %v6346 = vunpack.c.h.b16 %v5597
      %v6347 = vunpack.c.l.b16 %v5598
      %v6348 = vunpack.c.h.b16 %v5598
      %v6349 = vunpack.c.l.b16 %v5599
      %v6350 = vunpack.c.h.b16 %v5599
      %v6351 = vunpack.c.l.b16 %v5600
      %v6352 = vunpack.c.h.b16 %v5600
      %v6353 = vunpack.c.l.b16 %v5601
      %v6354 = vunpack.c.h.b16 %v5601
      %v6355 = vunpack.c.l.b16 %v5602
      %v6356 = vunpack.c.h.b16 %v5602
      %v6357 = vunpack.c.l.b16 %v5603
      %v6358 = vunpack.c.h.b16 %v5603
      %v6359 = vunpack.c.l.b16 %v5604
      %v6360 = vunpack.c.h.b16 %v5604
      %v6361 = vunpack.c.l.b16 %v5605
      %v6362 = vunpack.c.h.b16 %v5605
      %v6363 = vunpack.c.l.b16 %v5606
      %v6364 = vunpack.c.h.b16 %v5606
      %v6365 = vunpack.c.l.b16 %v5607
      %v6366 = vunpack.c.h.b16 %v5607
      %v6367 = vunpack.c.l.b16 %v5608
      %v6368 = vunpack.c.h.b16 %v5608
      %v6369 = vunpack.c.l.b16 %v5609
      %v6370 = vunpack.c.h.b16 %v5609
      %v6371 = vunpack.c.l.b16 %v5610
      %v6372 = vunpack.c.h.b16 %v5610
      %v6373 = vunpack.c.l.b16 %v5611
      %v6374 = vunpack.c.h.b16 %v5611
      %v6375 = vunpack.c.l.b16 %v5612
      %v6376 = vunpack.c.h.b16 %v5612
      %v6377 = vunpack.c.l.b16 %v5613
      %v6378 = vunpack.c.h.b16 %v5613
      %v6379 = vunpack.c.l.b16 %v5614
      %v6380 = vunpack.c.h.b16 %v5614
      %v6381 = vunpack.c.l.b16 %v5615
      %v6382 = vunpack.c.h.b16 %v5615
      %v6383 = vunpack.c.l.b16 %v5616
      %v6384 = vunpack.c.h.b16 %v5616
      %v6385 = vunpack.c.l.b16 %v5617
      %v6386 = vunpack.c.h.b16 %v5617
      %v6387 = vunpack.c.l.b16 %v5618
      %v6388 = vunpack.c.h.b16 %v5618
      %v6389 = vunpack.c.l.b16 %v5619
      %v6390 = vunpack.c.h.b16 %v5619
      %v6391 = vunpack.c.l.b16 %v5620
      %v6392 = vunpack.c.h.b16 %v5620
      %v6393 = vunpack.c.l.b16 %v5621
      %v6394 = vunpack.c.h.b16 %v5621
      %v6395 = vunpack.c.l.b16 %v5622
      %v6396 = vunpack.c.h.b16 %v5622
      %v6397 = vunpack.c.l.b16 %v5623
      %v6398 = vunpack.c.h.b16 %v5623
      %v6399 = vunpack.c.l.b16 %v5624
      %v6400 = vunpack.c.h.b16 %v5624
      %v6401 = vunpack.c.l.b16 %v5625
      %v6402 = vunpack.c.h.b16 %v5625
      %v6403 = vunpack.c.l.b16 %v5626
      %v6404 = vunpack.c.h.b16 %v5626
      %v6405 = vunpack.c.l.b16 %v5627
      %v6406 = vunpack.c.h.b16 %v5627
      %v6407 = vunpack.c.l.b16 %v5628
      %v6408 = vunpack.c.h.b16 %v5628
      %v6409 = vunpack.c.l.b16 %v5629
      %v6410 = vunpack.c.h.b16 %v5629
      %v6411 = vunpack.c.l.b16 %v5630
      %v6412 = vunpack.c.h.b16 %v5630
      %v6413 = vunpack.c.l.b16 %v5631
      %v6414 = vunpack.c.h.b16 %v5631
      %v6415 = vunpack.c.l.b16 %v5632
      %v6416 = vunpack.c.h.b16 %v5632
      %v6417 = vunpack.c.l.b16 %v5633
      %v6418 = vunpack.c.h.b16 %v5633
      %v6419 = vunpack.c.l.b16 %v5634
      %v6420 = vunpack.c.h.b16 %v5634
      %v6421 = vunpack.c.l.b16 %v5635
      %v6422 = vunpack.c.h.b16 %v5635
      %v6423 = vunpack.c.l.b16 %v5636
      %v6424 = vunpack.c.h.b16 %v5636
      %v6425 = vunpack.c.l.b16 %v5637
      %v6426 = vunpack.c.h.b16 %v5637
      %v6427 = vunpack.c.l.b16 %v5638
      %v6428 = vunpack.c.h.b16 %v5638
      %v6429 = vunpack.c.l.b16 %v5639
      %v6430 = vunpack.c.h.b16 %v5639
      %v6431 = vunpack.c.l.b16 %v5640
      %v6432 = vunpack.c.h.b16 %v5640
      %v6433 = vunpack.c.l.b16 %v5641
      %v6434 = vunpack.c.h.b16 %v5641
      %v6435 = vunpack.c.l.b16 %v5642
      %v6436 = vunpack.c.h.b16 %v5642
      %v6437 = vunpack.c.l.b16 %v5643
      %v6438 = vunpack.c.h.b16 %v5643
      %v6439 = vunpack.c.l.b16 %v5644
      %v6440 = vunpack.c.h.b16 %v5644
      %v6441 = vunpack.c.l.b16 %v5645
      %v6442 = vunpack.c.h.b16 %v5645
      %v6443 = vunpack.c.l.b16 %v5646
      %v6444 = vunpack.c.h.b16 %v5646
      %v6445 = vunpack.c.l.b16 %v5647
      %v6446 = vunpack.c.h.b16 %v5647
      %v6447 = vunpack.c.l.b16 %v5648
      %v6448 = vunpack.c.h.b16 %v5648
      %v6449 = vunpack.c.l.b16 %v5649
      %v6450 = vunpack.c.h.b16 %v5649
      %v6451 = vunpack.c.l.b16 %v5650
      %v6452 = vunpack.c.h.b16 %v5650
      %v6453 = vunpack.c.l.b16 %v5651
      %v6454 = vunpack.c.h.b16 %v5651
      %v6455 = vunpack.c.l.b16 %v5652
      %v6456 = vunpack.c.h.b16 %v5652
      %v6457 = vunpack.c.l.b16 %v5653
      %v6458 = vunpack.c.h.b16 %v5653
      %v6459 = vunpack.c.l.b16 %v5654
      %v6460 = vunpack.c.h.b16 %v5654
      %v6461 = vunpack.c.l.b16 %v5655
      %v6462 = vunpack.c.h.b16 %v5655
      %v6463 = vunpack.c.l.b16 %v5656
      %v6464 = vunpack.c.h.b16 %v5656
      %v6465 = vunpack.c.l.b16 %v5657
      %v6466 = vunpack.c.h.b16 %v5657
      %v6467 = vunpack.c.l.b16 %v5658
      %v6468 = vunpack.c.h.b16 %v5658
      %v6469 = vunpack.c.l.b16 %v5659
      %v6470 = vunpack.c.h.b16 %v5659
      %v6471 = vunpack.c.l.b16 %v5660
      %v6472 = vunpack.c.h.b16 %v5660
      %v6473 = vunpack.c.l.b16 %v5661
      %v6474 = vunpack.c.h.b16 %v5661
      %v6475 = vunpack.c.l.b16 %v5662
      %v6476 = vunpack.c.h.b16 %v5662
      %v6477 = vunpack.c.l.b16 %v5663
      %v6478 = vunpack.c.h.b16 %v5663
      %v6479 = vunpack.c.l.b16 %v5664
      %v6480 = vunpack.c.h.b16 %v5664
      %v6481 = vunpack.c.l.b16 %v5665
      %v6482 = vunpack.c.h.b16 %v5665
      %v6483 = vunpack.c.l.b16 %v5666
      %v6484 = vunpack.c.h.b16 %v5666
      %v6485 = vunpack.c.l.b16 %v5667
      %v6486 = vunpack.c.h.b16 %v5667
      %v6487 = vunpack.c.l.b16 %v5668
      %v6488 = vunpack.c.h.b16 %v5668
      %v6489 = vunpack.c.l.b16 %v5669
      %v6490 = vunpack.c.h.b16 %v5669
      %v6491 = vunpack.c.l.b16 %v5670
      %v6492 = vunpack.c.h.b16 %v5670
      %v6493 = vunpack.c.l.b16 %v5671
      %v6494 = vunpack.c.h.b16 %v5671
      %v6495 = vunpack.c.l.b16 %v5672
      %v6496 = vunpack.c.h.b16 %v5672
      %v6497 = vunpack.c.l.b16 %v5673
      %v6498 = vunpack.c.h.b16 %v5673
      %v6499 = vunpack.c.l.b16 %v5674
      %v6500 = vunpack.c.h.b16 %v5674
      %v6501 = vunpack.c.l.b16 %v5675
      %v6502 = vunpack.c.h.b16 %v5675
      %v6503 = vunpack.c.l.b16 %v5676
      %v6504 = vunpack.c.h.b16 %v5676
      %v6505 = vunpack.c.l.b16 %v5677
      %v6506 = vunpack.c.h.b16 %v5677
      %v6507 = vunpack.c.l.b16 %v5678
      %v6508 = vunpack.c.h.b16 %v5678
      %v6509 = vunpack.c.l.b16 %v5679
      %v6510 = vunpack.c.h.b16 %v5679
      %v6511 = vunpack.c.l.b16 %v5680
      %v6512 = vunpack.c.h.b16 %v5680
      %v6513 = vunpack.c.l.b16 %v5681
      %v6514 = vunpack.c.h.b16 %v5681
      %v6515 = vunpack.c.l.b16 %v5682
      %v6516 = vunpack.c.h.b16 %v5682
      %v6517 = vunpack.c.l.b16 %v5683
      %v6518 = vunpack.c.h.b16 %v5683
      %v6519 = vunpack.c.l.b16 %v5684
      %v6520 = vunpack.c.h.b16 %v5684
      %v6521 = vunpack.c.l.b16 %v5685
      %v6522 = vunpack.c.h.b16 %v5685
      %v6523 = vunpack.c.l.b16 %v5686
      %v6524 = vunpack.c.h.b16 %v5686
      %v6525 = vunpack.c.l.b16 %v5687
      %v6526 = vunpack.c.h.b16 %v5687
      %v6527 = vunpack.c.l.b16 %v5688
      %v6528 = vunpack.c.h.b16 %v5688
      %v6529 = vunpack.c.l.b16 %v5689
      %v6530 = vunpack.c.h.b16 %v5689
      %v6531 = vunpack.c.l.b16 %v5690
      %v6532 = vunpack.c.h.b16 %v5690
      %v6533 = vunpack.c.l.b16 %v5691
      %v6534 = vunpack.c.h.b16 %v5691
      %v6535 = vunpack.c.l.b16 %v5692
      %v6536 = vunpack.c.h.b16 %v5692
      %v6537 = vunpack.c.l.b16 %v5693
      %v6538 = vunpack.c.h.b16 %v5693
      %v6539 = vunpack.c.l.b16 %v5694
      %v6540 = vunpack.c.h.b16 %v5694
      %v6541 = vunpack.c.l.b16 %v5695
      %v6542 = vunpack.c.h.b16 %v5695
      %v6543 = vunpack.c.l.b16 %v5696
      %v6544 = vunpack.c.h.b16 %v5696
      %v6545 = vunpack.c.l.b16 %v5697
      %v6546 = vunpack.c.h.b16 %v5697
      %v6547 = vunpack.c.l.b16 %v5698
      %v6548 = vunpack.c.h.b16 %v5698
      %v6549 = vunpack.c.l.b16 %v5699
      %v6550 = vunpack.c.h.b16 %v5699
      %v6551 = vunpack.c.l.b16 %v5700
      %v6552 = vunpack.c.h.b16 %v5700
      %v6553 = vunpack.c.l.b16 %v5701
      %v6554 = vunpack.c.h.b16 %v5701
      %v6555 = vunpack.c.l.b16 %v5702
      %v6556 = vunpack.c.h.b16 %v5702
      %v6557 = vunpack.c.l.b16 %v5703
      %v6558 = vunpack.c.h.b16 %v5703
      %v6559 = vunpack.c.l.b16 %v5704
      %v6560 = vunpack.c.h.b16 %v5704
      %v6561 = vunpack.c.l.b16 %v5705
      %v6562 = vunpack.c.h.b16 %v5705
      %v6563 = vunpack.c.l.b16 %v5706
      %v6564 = vunpack.c.h.b16 %v5706
      %v6565 = vunpack.c.l.b16 %v5707
      %v6566 = vunpack.c.h.b16 %v5707
      %v6567 = vunpack.c.l.b16 %v5708
      %v6568 = vunpack.c.h.b16 %v5708
      %v6569 = vunpack.c.l.b16 %v5709
      %v6570 = vunpack.c.h.b16 %v5709
      %v6571 = vunpack.c.l.b16 %v5710
      %v6572 = vunpack.c.h.b16 %v5710
      %v6573 = vunpack.c.l.b16 %v5711
      %v6574 = vunpack.c.h.b16 %v5711
      %v6575 = vunpack.c.l.b16 %v5712
      %v6576 = vunpack.c.h.b16 %v5712
      %v6577 = vunpack.c.l.b16 %v5713
      %v6578 = vunpack.c.h.b16 %v5713
      %v6579 = vunpack.c.l.b16 %v5714
      %v6580 = vunpack.c.h.b16 %v5714
      %v6581 = vunpack.c.l.b16 %v5715
      %v6582 = vunpack.c.h.b16 %v5715
      %v6583 = vunpack.c.l.b16 %v5716
      %v6584 = vunpack.c.h.b16 %v5716
      %v6585 = vunpack.c.l.b16 %v5717
      %v6586 = vunpack.c.h.b16 %v5717
      %v6587 = vunpack.c.l.b16 %v5718
      %v6588 = vunpack.c.h.b16 %v5718
      %v6589 = vunpack.c.l.b16 %v5719
      %v6590 = vunpack.c.h.b16 %v5719
      %v6591 = vunpack.c.l.b16 %v5720
      %v6592 = vunpack.c.h.b16 %v5720
      %v6593 = vunpack.c.l.b16 %v5721
      %v6594 = vunpack.c.h.b16 %v5721
      %v6595 = vunpack.c.l.b16 %v5722
      %v6596 = vunpack.c.h.b16 %v5722
      %v6597 = vunpack.c.l.b16 %v5723
      %v6598 = vunpack.c.h.b16 %v5723
      %v6599 = vunpack.c.l.b16 %v5724
      %v6600 = vunpack.c.h.b16 %v5724
      %v6601 = vunpack.c.l.b16 %v5725
      %v6602 = vunpack.c.h.b16 %v5725
      %v6603 = vunpack.c.l.b16 %v5726
      %v6604 = vunpack.c.h.b16 %v5726
      %v6605 = vunpack.c.l.b16 %v5727
      %v6606 = vunpack.c.h.b16 %v5727
      %v6607 = vunpack.c.l.b16 %v5728
      %v6608 = vunpack.c.h.b16 %v5728
      %v6609 = vunpack.c.l.b16 %v5729
      %v6610 = vunpack.c.h.b16 %v5729
      %v6611 = vunpack.c.l.b16 %v5730
      %v6612 = vunpack.c.h.b16 %v5730
      %v6613 = vunpack.c.l.b16 %v5731
      %v6614 = vunpack.c.h.b16 %v5731
      %v6615 = vunpack.c.l.b16 %v5732
      %v6616 = vunpack.c.h.b16 %v5732
      %v6617 = vunpack.c.l.b16 %v5733
      %v6618 = vunpack.c.h.b16 %v5733
      %v6619 = vunpack.c.l.b16 %v5734
      %v6620 = vunpack.c.h.b16 %v5734
      %v6621 = vunpack.c.l.b16 %v5735
      %v6622 = vunpack.c.h.b16 %v5735
      %v6623 = vunpack.c.l.b16 %v5736
      %v6624 = vunpack.c.h.b16 %v5736
      %v6625 = vunpack.c.l.b16 %v5737
      %v6626 = vunpack.c.h.b16 %v5737
      %v6627 = vunpack.c.l.b16 %v5738
      %v6628 = vunpack.c.h.b16 %v5738
      %v6629 = vunpack.c.l.b16 %v5739
      %v6630 = vunpack.c.h.b16 %v5739
      %v6631 = vunpack.c.l.b16 %v5740
      %v6632 = vunpack.c.h.b16 %v5740
      %v6633 = vunpack.c.l.b16 %v5741
      %v6634 = vunpack.c.h.b16 %v5741
      %v6635 = vunpack.c.l.b16 %v5742
      %v6636 = vunpack.c.h.b16 %v5742
      %v6637 = vunpack.c.l.b16 %v5743
      %v6638 = vunpack.c.h.b16 %v5743
      %v6639 = vunpack.c.l.b16 %v5744
      %v6640 = vunpack.c.h.b16 %v5744
      %v6641 = vunpack.c.l.b16 %v5745
      %v6642 = vunpack.c.h.b16 %v5745
      %v6643 = vunpack.c.l.b16 %v5746
      %v6644 = vunpack.c.h.b16 %v5746
      %v6645 = vunpack.c.l.b16 %v5747
      %v6646 = vunpack.c.h.b16 %v5747
      %v6647 = vunpack.c.l.b16 %v5748
      %v6648 = vunpack.c.h.b16 %v5748
      %v6649 = vunpack.c.l.b16 %v5749
      %v6650 = vunpack.c.h.b16 %v5749
      %v6651 = vunpack.c.l.b16 %v5750
      %v6652 = vunpack.c.h.b16 %v5750
      %v6653 = vunpack.c.l.b16 %v5751
      %v6654 = vunpack.c.h.b16 %v5751
      %v6655 = vunpack.c.l.b16 %v5752
      %v6656 = vunpack.c.h.b16 %v5752
      %v6657 = vunpack.c.l.b16 %v5753
      %v6658 = vunpack.c.h.b16 %v5753
      %v6659 = vunpack.c.l.b16 %v5754
      %v6660 = vunpack.c.h.b16 %v5754
      %v6661 = vunpack.c.l.b16 %v5755
      %v6662 = vunpack.c.h.b16 %v5755
      %v6663 = vunpack.c.l.b16 %v5756
      %v6664 = vunpack.c.h.b16 %v5756
      %v6665 = vunpack.c.l.b16 %v5757
      %v6666 = vunpack.c.h.b16 %v5757
      %v6667 = vunpack.c.l.b16 %v5758
      %v6668 = vunpack.c.h.b16 %v5758
      %v6669 = vunpack.c.l.b16 %v5759
      %v6670 = vunpack.c.h.b16 %v5759
      %v6671 = vunpack.c.l.b16 %v5760
      %v6672 = vunpack.c.h.b16 %v5760
      %v6673 = vunpack.c.l.b16 %v5761
      %v6674 = vunpack.c.h.b16 %v5761
      %v6675 = vunpack.c.l.b16 %v5762
      %v6676 = vunpack.c.h.b16 %v5762
      %v6677 = vunpack.c.l.b16 %v5763
      %v6678 = vunpack.c.h.b16 %v5763
      %v6679 = vunpack.c.l.b16 %v5764
      %v6680 = vunpack.c.h.b16 %v5764
      %v6681 = vunpack.c.l.b16 %v5765
      %v6682 = vunpack.c.h.b16 %v5765
      %v6683 = vunpack.c.l.b16 %v5766
      %v6684 = vunpack.c.h.b16 %v5766
      %v6685 = vunpack.c.l.b16 %v5767
      %v6686 = vunpack.c.h.b16 %v5767
      %v6687 = vunpack.c.l.b16 %v5768
      %v6688 = vunpack.c.h.b16 %v5768
      %v6689 = vunpack.c.l.b16 %v5769
      %v6690 = vunpack.c.h.b16 %v5769
      %v6691 = vpack.c.b16 %v6091, %v6083
      %v6692 = vpack.c.b16 %v6092, %v6084
      %v6693 = vpack.c.b16 %v6093, %v6085
      %v6694 = vpack.c.b16 %v6094, %v6086
      %v6695 = vpack.c.b16 %v6095, %v6087
      %v6696 = vpack.c.b16 %v6096, %v6088
      %v6697 = vpack.c.b16 %v6097, %v6089
      %v6698 = vpack.c.b16 %v6098, %v6090
      %v6699 = vpack.c.b16 %v6107, %v6099
      %v6700 = vpack.c.b16 %v6108, %v6100
      %v6701 = vpack.c.b16 %v6109, %v6101
      %v6702 = vpack.c.b16 %v6110, %v6102
      %v6703 = vpack.c.b16 %v6111, %v6103
      %v6704 = vpack.c.b16 %v6112, %v6104
      %v6705 = vpack.c.b16 %v6113, %v6105
      %v6706 = vpack.c.b16 %v6114, %v6106
      %v6707 = vpack.c.b16 %v6123, %v6115
      %v6708 = vpack.c.b16 %v6124, %v6116
      %v6709 = vpack.c.b16 %v6125, %v6117
      %v6710 = vpack.c.b16 %v6126, %v6118
      %v6711 = vpack.c.b16 %v6127, %v6119
      %v6712 = vpack.c.b16 %v6128, %v6120
      %v6713 = vpack.c.b16 %v6129, %v6121
      %v6714 = vpack.c.b16 %v6130, %v6122
      %v6715 = vpack.c.b16 %v6139, %v6131
      %v6716 = vpack.c.b16 %v6140, %v6132
      %v6717 = vpack.c.b16 %v6141, %v6133
      %v6718 = vpack.c.b16 %v6142, %v6134
      %v6719 = vpack.c.b16 %v6143, %v6135
      %v6720 = vpack.c.b16 %v6144, %v6136
      %v6721 = vpack.c.b16 %v6145, %v6137
      %v6722 = vpack.c.b16 %v6146, %v6138
      %v6723 = vpack.c.b16 %v6155, %v6147
      %v6724 = vpack.c.b16 %v6156, %v6148
      %v6725 = vpack.c.b16 %v6157, %v6149
      %v6726 = vpack.c.b16 %v6158, %v6150
      %v6727 = vpack.c.b16 %v6159, %v6151
      %v6728 = vpack.c.b16 %v6160, %v6152
      %v6729 = vpack.c.b16 %v6161, %v6153
      %v6730 = vpack.c.b16 %v6162, %v6154
      %v6731 = vpack.c.b16 %v6171, %v6163
      %v6732 = vpack.c.b16 %v6172, %v6164
      %v6733 = vpack.c.b16 %v6173, %v6165
      %v6734 = vpack.c.b16 %v6174, %v6166
      %v6735 = vpack.c.b16 %v6175, %v6167
      %v6736 = vpack.c.b16 %v6176, %v6168
      %v6737 = vpack.c.b16 %v6177, %v6169
      %v6738 = vpack.c.b16 %v6178, %v6170
      %v6739 = vpack.c.b16 %v6187, %v6179
      %v6740 = vpack.c.b16 %v6188, %v6180
      %v6741 = vpack.c.b16 %v6189, %v6181
      %v6742 = vpack.c.b16 %v6190, %v6182
      %v6743 = vpack.c.b16 %v6191, %v6183
      %v6744 = vpack.c.b16 %v6192, %v6184
      %v6745 = vpack.c.b16 %v6193, %v6185
      %v6746 = vpack.c.b16 %v6194, %v6186
      %v6747 = vpack.c.b16 %v6203, %v6195
      %v6748 = vpack.c.b16 %v6204, %v6196
      %v6749 = vpack.c.b16 %v6205, %v6197
      %v6750 = vpack.c.b16 %v6206, %v6198
      %v6751 = vpack.c.b16 %v6207, %v6199
      %v6752 = vpack.c.b16 %v6208, %v6200
      %v6753 = vpack.c.b16 %v6209, %v6201
      %v6754 = vpack.c.b16 %v6210, %v6202
      %v6755 = vpack.c.b16 %v6219, %v6211
      %v6756 = vpack.c.b16 %v6220, %v6212
      %v6757 = vpack.c.b16 %v6221, %v6213
      %v6758 = vpack.c.b16 %v6222, %v6214
      %v6759 = vpack.c.b16 %v6223, %v6215
      %v6760 = vpack.c.b16 %v6224, %v6216
      %v6761 = vpack.c.b16 %v6225, %v6217
      %v6762 = vpack.c.b16 %v6226, %v6218
      %v6763 = vpack.c.b16 %v6235, %v6227
      %v6764 = vpack.c.b16 %v6236, %v6228
      %v6765 = vpack.c.b16 %v6237, %v6229
      %v6766 = vpack.c.b16 %v6238, %v6230
      %v6767 = vpack.c.b16 %v6239, %v6231
      %v6768 = vpack.c.b16 %v6240, %v6232
      %v6769 = vpack.c.b16 %v6241, %v6233
      %v6770 = vpack.c.b16 %v6242, %v6234
      %v6771 = vpack.c.b16 %v6251, %v6243
      %v6772 = vpack.c.b16 %v6252, %v6244
      %v6773 = vpack.c.b16 %v6253, %v6245
      %v6774 = vpack.c.b16 %v6254, %v6246
      %v6775 = vpack.c.b16 %v6255, %v6247
      %v6776 = vpack.c.b16 %v6256, %v6248
      %v6777 = vpack.c.b16 %v6257, %v6249
      %v6778 = vpack.c.b16 %v6258, %v6250
      %v6779 = vpack.c.b16 %v6267, %v6259
      %v6780 = vpack.c.b16 %v6268, %v6260
      %v6781 = vpack.c.b16 %v6269, %v6261
      %v6782 = vpack.c.b16 %v6270, %v6262
      %v6783 = vpack.c.b16 %v6271, %v6263
      %v6784 = vpack.c.b16 %v6272, %v6264
      %v6785 = vpack.c.b16 %v6273, %v6265
      %v6786 = vpack.c.b16 %v6274, %v6266
      %v6787 = vpack.c.b16 %v6283, %v6275
      %v6788 = vpack.c.b16 %v6284, %v6276
      %v6789 = vpack.c.b16 %v6285, %v6277
      %v6790 = vpack.c.b16 %v6286, %v6278
      %v6791 = vpack.c.b16 %v6287, %v6279
      %v6792 = vpack.c.b16 %v6288, %v6280
      %v6793 = vpack.c.b16 %v6289, %v6281
      %v6794 = vpack.c.b16 %v6290, %v6282
      %v6795 = vpack.c.b16 %v6299, %v6291
      %v6796 = vpack.c.b16 %v6300, %v6292
      %v6797 = vpack.c.b16 %v6301, %v6293
      %v6798 = vpack.c.b16 %v6302, %v6294
      %v6799 = vpack.c.b16 %v6303, %v6295
      %v6800 = vpack.c.b16 %v6304, %v6296
      %v6801 = vpack.c.b16 %v6305, %v6297
      %v6802 = vpack.c.b16 %v6306, %v6298
      %v6803 = vpack.c.b16 %v6315, %v6307
      %v6804 = vpack.c.b16 %v6316, %v6308
      %v6805 = vpack.c.b16 %v6317, %v6309
      %v6806 = vpack.c.b16 %v6318, %v6310
      %v6807 = vpack.c.b16 %v6319, %v6311
      %v6808 = vpack.c.b16 %v6320, %v6312
      %v6809 = vpack.c.b16 %v6321, %v6313
      %v6810 = vpack.c.b16 %v6322, %v6314
      %v6811 = vpack.c.b16 %v6331, %v6323
      %v6812 = vpack.c.b16 %v6332, %v6324
      %v6813 = vpack.c.b16 %v6333, %v6325
      %v6814 = vpack.c.b16 %v6334, %v6326
      %v6815 = vpack.c.b16 %v6335, %v6327
      %v6816 = vpack.c.b16 %v6336, %v6328
      %v6817 = vpack.c.b16 %v6337, %v6329
      %v6818 = vpack.c.b16 %v6338, %v6330
      %v6819 = vpack.c.b16 %v6347, %v6339
      %v6820 = vpack.c.b16 %v6348, %v6340
      %v6821 = vpack.c.b16 %v6349, %v6341
      %v6822 = vpack.c.b16 %v6350, %v6342
      %v6823 = vpack.c.b16 %v6351, %v6343
      %v6824 = vpack.c.b16 %v6352, %v6344
      %v6825 = vpack.c.b16 %v6353, %v6345
      %v6826 = vpack.c.b16 %v6354, %v6346
      %v6827 = vpack.c.b16 %v6363, %v6355
      %v6828 = vpack.c.b16 %v6364, %v6356
      %v6829 = vpack.c.b16 %v6365, %v6357
      %v6830 = vpack.c.b16 %v6366, %v6358
      %v6831 = vpack.c.b16 %v6367, %v6359
      %v6832 = vpack.c.b16 %v6368, %v6360
      %v6833 = vpack.c.b16 %v6369, %v6361
      %v6834 = vpack.c.b16 %v6370, %v6362
      %v6835 = vpack.c.b16 %v6379, %v6371
      %v6836 = vpack.c.b16 %v6380, %v6372
      %v6837 = vpack.c.b16 %v6381, %v6373
      %v6838 = vpack.c.b16 %v6382, %v6374
      %v6839 = vpack.c.b16 %v6383, %v6375
      %v6840 = vpack.c.b16 %v6384, %v6376
      %v6841 = vpack.c.b16 %v6385, %v6377
      %v6842 = vpack.c.b16 %v6386, %v6378
      %v6843 = vpack.c.b16 %v6395, %v6387
      %v6844 = vpack.c.b16 %v6396, %v6388
      %v6845 = vpack.c.b16 %v6397, %v6389
      %v6846 = vpack.c.b16 %v6398, %v6390
      %v6847 = vpack.c.b16 %v6399, %v6391
      %v6848 = vpack.c.b16 %v6400, %v6392
      %v6849 = vpack.c.b16 %v6401, %v6393
      %v6850 = vpack.c.b16 %v6402, %v6394
      %v6851 = vpack.c.b16 %v6411, %v6403
      %v6852 = vpack.c.b16 %v6412, %v6404
      %v6853 = vpack.c.b16 %v6413, %v6405
      %v6854 = vpack.c.b16 %v6414, %v6406
      %v6855 = vpack.c.b16 %v6415, %v6407
      %v6856 = vpack.c.b16 %v6416, %v6408
      %v6857 = vpack.c.b16 %v6417, %v6409
      %v6858 = vpack.c.b16 %v6418, %v6410
      %v6859 = vpack.c.b16 %v6427, %v6419
      %v6860 = vpack.c.b16 %v6428, %v6420
      %v6861 = vpack.c.b16 %v6429, %v6421
      %v6862 = vpack.c.b16 %v6430, %v6422
      %v6863 = vpack.c.b16 %v6431, %v6423
      %v6864 = vpack.c.b16 %v6432, %v6424
      %v6865 = vpack.c.b16 %v6433, %v6425
      %v6866 = vpack.c.b16 %v6434, %v6426
      %v6867 = vpack.c.b16 %v6443, %v6435
      %v6868 = vpack.c.b16 %v6444, %v6436
      %v6869 = vpack.c.b16 %v6445, %v6437
      %v6870 = vpack.c.b16 %v6446, %v6438
      %v6871 = vpack.c.b16 %v6447, %v6439
      %v6872 = vpack.c.b16 %v6448, %v6440
      %v6873 = vpack.c.b16 %v6449, %v6441
      %v6874 = vpack.c.b16 %v6450, %v6442
      %v6875 = vpack.c.b16 %v6459, %v6451
      %v6876 = vpack.c.b16 %v6460, %v6452
      %v6877 = vpack.c.b16 %v6461, %v6453
      %v6878 = vpack.c.b16 %v6462, %v6454
      %v6879 = vpack.c.b16 %v6463, %v6455
      %v6880 = vpack.c.b16 %v6464, %v6456
      %v6881 = vpack.c.b16 %v6465, %v6457
      %v6882 = vpack.c.b16 %v6466, %v6458
      %v6883 = vpack.c.b16 %v6475, %v6467
      %v6884 = vpack.c.b16 %v6476, %v6468
      %v6885 = vpack.c.b16 %v6477, %v6469
      %v6886 = vpack.c.b16 %v6478, %v6470
      %v6887 = vpack.c.b16 %v6479, %v6471
      %v6888 = vpack.c.b16 %v6480, %v6472
      %v6889 = vpack.c.b16 %v6481, %v6473
      %v6890 = vpack.c.b16 %v6482, %v6474
      %v6891 = vpack.c.b16 %v6491, %v6483
      %v6892 = vpack.c.b16 %v6492, %v6484
      %v6893 = vpack.c.b16 %v6493, %v6485
      %v6894 = vpack.c.b16 %v6494, %v6486
      %v6895 = vpack.c.b16 %v6495, %v6487
      %v6896 = vpack.c.b16 %v6496, %v6488
      %v6897 = vpack.c.b16 %v6497, %v6489
      %v6898 = vpack.c.b16 %v6498, %v6490
      %v6899 = vpack.c.b16 %v6507, %v6499
      %v6900 = vpack.c.b16 %v6508, %v6500
      %v6901 = vpack.c.b16 %v6509, %v6501
      %v6902 = vpack.c.b16 %v6510, %v6502
      %v6903 = vpack.c.b16 %v6511, %v6503
      %v6904 = vpack.c.b16 %v6512, %v6504
      %v6905 = vpack.c.b16 %v6513, %v6505
      %v6906 = vpack.c.b16 %v6514, %v6506
      %v6907 = vpack.c.b16 %v6523, %v6515
      %v6908 = vpack.c.b16 %v6524, %v6516
      %v6909 = vpack.c.b16 %v6525, %v6517
      %v6910 = vpack.c.b16 %v6526, %v6518
      %v6911 = vpack.c.b16 %v6527, %v6519
      %v6912 = vpack.c.b16 %v6528, %v6520
      %v6913 = vpack.c.b16 %v6529, %v6521
      %v6914 = vpack.c.b16 %v6530, %v6522
      %v6915 = vpack.c.b16 %v6539, %v6531
      %v6916 = vpack.c.b16 %v6540, %v6532
      %v6917 = vpack.c.b16 %v6541, %v6533
      %v6918 = vpack.c.b16 %v6542, %v6534
      %v6919 = vpack.c.b16 %v6543, %v6535
      %v6920 = vpack.c.b16 %v6544, %v6536
      %v6921 = vpack.c.b16 %v6545, %v6537
      %v6922 = vpack.c.b16 %v6546, %v6538
      %v6923 = vpack.c.b16 %v6555, %v6547
      %v6924 = vpack.c.b16 %v6556, %v6548
      %v6925 = vpack.c.b16 %v6557, %v6549
      %v6926 = vpack.c.b16 %v6558, %v6550
      %v6927 = vpack.c.b16 %v6559, %v6551
      %v6928 = vpack.c.b16 %v6560, %v6552
      %v6929 = vpack.c.b16 %v6561, %v6553
      %v6930 = vpack.c.b16 %v6562, %v6554
      %v6931 = vpack.c.b16 %v6571, %v6563
      %v6932 = vpack.c.b16 %v6572, %v6564
      %v6933 = vpack.c.b16 %v6573, %v6565
      %v6934 = vpack.c.b16 %v6574, %v6566
      %v6935 = vpack.c.b16 %v6575, %v6567
      %v6936 = vpack.c.b16 %v6576, %v6568
      %v6937 = vpack.c.b16 %v6577, %v6569
      %v6938 = vpack.c.b16 %v6578, %v6570
      %v6939 = vpack.c.b16 %v6587, %v6579
      %v6940 = vpack.c.b16 %v6588, %v6580
      %v6941 = vpack.c.b16 %v6589, %v6581
      %v6942 = vpack.c.b16 %v6590, %v6582
      %v6943 = vpack.c.b16 %v6591, %v6583
      %v6944 = vpack.c.b16 %v6592, %v6584
      %v6945 = vpack.c.b16 %v6593, %v6585
      %v6946 = vpack.c.b16 %v6594, %v6586
      %v6947 = vpack.c.b16 %v6603, %v6595
      %v6948 = vpack.c.b16 %v6604, %v6596
      %v6949 = vpack.c.b16 %v6605, %v6597
      %v6950 = vpack.c.b16 %v6606, %v6598
      %v6951 = vpack.c.b16 %v6607, %v6599
      %v6952 = vpack.c.b16 %v6608, %v6600
      %v6953 = vpack.c.b16 %v6609, %v6601
      %v6954 = vpack.c.b16 %v6610, %v6602
      %v6955 = vpack.c.b16 %v6619, %v6611
      %v6956 = vpack.c.b16 %v6620, %v6612
      %v6957 = vpack.c.b16 %v6621, %v6613
      %v6958 = vpack.c.b16 %v6622, %v6614
      %v6959 = vpack.c.b16 %v6623, %v6615
      %v6960 = vpack.c.b16 %v6624, %v6616
      %v6961 = vpack.c.b16 %v6625, %v6617
      %v6962 = vpack.c.b16 %v6626, %v6618
      %v6963 = vpack.c.b16 %v6635, %v6627
      %v6964 = vpack.c.b16 %v6636, %v6628
      %v6965 = vpack.c.b16 %v6637, %v6629
      %v6966 = vpack.c.b16 %v6638, %v6630
      %v6967 = vpack.c.b16 %v6639, %v6631
      %v6968 = vpack.c.b16 %v6640, %v6632
      %v6969 = vpack.c.b16 %v6641, %v6633
      %v6970 = vpack.c.b16 %v6642, %v6634
      %v6971 = vpack.c.b16 %v6651, %v6643
      %v6972 = vpack.c.b16 %v6652, %v6644
      %v6973 = vpack.c.b16 %v6653, %v6645
      %v6974 = vpack.c.b16 %v6654, %v6646
      %v6975 = vpack.c.b16 %v6655, %v6647
      %v6976 = vpack.c.b16 %v6656, %v6648
      %v6977 = vpack.c.b16 %v6657, %v6649
      %v6978 = vpack.c.b16 %v6658, %v6650
      %v6979 = vpack.c.b16 %v6667, %v6659
      %v6980 = vpack.c.b16 %v6668, %v6660
      %v6981 = vpack.c.b16 %v6669, %v6661
      %v6982 = vpack.c.b16 %v6670, %v6662
      %v6983 = vpack.c.b16 %v6671, %v6663
      %v6984 = vpack.c.b16 %v6672, %v6664
      %v6985 = vpack.c.b16 %v6673, %v6665
      %v6986 = vpack.c.b16 %v6674, %v6666
      %v6987 = vpack.c.b16 %v6683, %v6675
      %v6988 = vpack.c.b16 %v6684, %v6676
      %v6989 = vpack.c.b16 %v6685, %v6677
      %v6990 = vpack.c.b16 %v6686, %v6678
      %v6991 = vpack.c.b16 %v6687, %v6679
      %v6992 = vpack.c.b16 %v6688, %v6680
      %v6993 = vpack.c.b16 %v6689, %v6681
      %v6994 = vpack.c.b16 %v6690, %v6682
      %v7300 = vsel %vm2815, %v5774, 0
      %7302 = vmatpush.bf16.msra.mxu0 %v6747
      %7303 = vmatpush.bf16.msra.mxu0 %v6739
      %7304 = vmatpush.bf16.msra.mxu0 %v6731
      %7305 = vmatpush.bf16.msra.mxu0 %v6723
      %7306 = vmatpush.bf16.msra.mxu0 %v6715
      %7307 = vmatpush.bf16.msra.mxu0 %v6707
      %7308 = vmatpush.bf16.msra.mxu0 %v6699
      %7309 = vmatpush.bf16.msra.mxu0 %v6691
      %7310 = vmatmul.bf16.gmra.mxu0 %v5770
      %v7311 = vpop.f32.mrf.mxu0
      %v7312 = vadd.f32 0.0, %v7311
      %v7313 = vpop.f32.mrf.mxu0
      %v7314 = vadd.f32 0.0, %v7313
      %7315 = vdwg.mxu0
      %7316 = vmatpush.bf16.msra.mxu0 %v6811
      %7317 = vmatpush.bf16.msra.mxu0 %v6803
      %7318 = vmatpush.bf16.msra.mxu0 %v6795
      %7319 = vmatpush.bf16.msra.mxu0 %v6787
      %7320 = vmatpush.bf16.msra.mxu0 %v6779
      %7321 = vmatpush.bf16.msra.mxu0 %v6771
      %7322 = vmatpush.bf16.msra.mxu0 %v6763
      %7323 = vmatpush.bf16.msra.mxu0 %v6755
      %7324 = vmatmul.bf16.gmra.mxu0 %v5771
      %v7325 = vpop.f32.mrf.mxu0
      %v7326 = vadd.f32 %v7312, %v7325
      %v7327 = vpop.f32.mrf.mxu0
      %v7328 = vadd.f32 %v7314, %v7327
      %7329 = vdwg.mxu0
      %7330 = vmatpush.bf16.msra.mxu0 %v6875
      %7331 = vmatpush.bf16.msra.mxu0 %v6867
      %7332 = vmatpush.bf16.msra.mxu0 %v6859
      %7333 = vmatpush.bf16.msra.mxu0 %v6851
      %7334 = vmatpush.bf16.msra.mxu0 %v6843
      %7335 = vmatpush.bf16.msra.mxu0 %v6835
      %7336 = vmatpush.bf16.msra.mxu0 %v6827
      %7337 = vmatpush.bf16.msra.mxu0 %v6819
      %7338 = vmatmul.bf16.gmra.mxu0 %v5772
      %v7339 = vpop.f32.mrf.mxu0
      %v7340 = vadd.f32 %v7326, %v7339
      %v7341 = vpop.f32.mrf.mxu0
      %v7342 = vadd.f32 %v7328, %v7341
      %7343 = vdwg.mxu0
      %7344 = vmatpush.bf16.msra.mxu0 %v6939
      %7345 = vmatpush.bf16.msra.mxu0 %v6931
      %7346 = vmatpush.bf16.msra.mxu0 %v6923
      %7347 = vmatpush.bf16.msra.mxu0 %v6915
      %7348 = vmatpush.bf16.msra.mxu0 %v6907
      %7349 = vmatpush.bf16.msra.mxu0 %v6899
      %7350 = vmatpush.bf16.msra.mxu0 %v6891
      %7351 = vmatpush.bf16.msra.mxu0 %v6883
      %7352 = vmatmul.bf16.gmra.mxu0 %v5773
      %v7353 = vpop.f32.mrf.mxu0
      %v7354 = vadd.f32 %v7340, %v7353
      %v7355 = vpop.f32.mrf.mxu0
      %v7356 = vadd.f32 %v7342, %v7355
      %7357 = vdwg.mxu0
      %7358 = vmatpush.bf16.msra.mxu0 0
      %7359 = vmatpush.bf16.msra.mxu0 0
      %7360 = vmatpush.bf16.msra.mxu0 %v6987
      %7361 = vmatpush.bf16.msra.mxu0 %v6979
      %7362 = vmatpush.bf16.msra.mxu0 %v6971
      %7363 = vmatpush.bf16.msra.mxu0 %v6963
      %7364 = vmatpush.bf16.msra.mxu0 %v6955
      %7365 = vmatpush.bf16.msra.mxu0 %v6947
      %7366 = vmatmul.bf16.gmra.mxu0 %v7300
      %v7367 = vpop.f32.mrf.mxu0
      %v7368 = vadd.f32 %v7354, %v7367
      %v7369 = vpop.f32.mrf.mxu0
      %v7370 = vadd.f32 %v7356, %v7369
      %7371 = vdwg.mxu0
      %7372 = vmatpush.bf16.msra.mxu0 %v6748
      %7373 = vmatpush.bf16.msra.mxu0 %v6740
      %7374 = vmatpush.bf16.msra.mxu0 %v6732
      %7375 = vmatpush.bf16.msra.mxu0 %v6724
      %7376 = vmatpush.bf16.msra.mxu0 %v6716
      %7377 = vmatpush.bf16.msra.mxu0 %v6708
      %7378 = vmatpush.bf16.msra.mxu0 %v6700
      %7379 = vmatpush.bf16.msra.mxu0 %v6692
      %7380 = vmatmul.bf16.gmra.mxu0 %v5770
      %v7381 = vpop.f32.mrf.mxu0
      %v7382 = vadd.f32 0.0, %v7381
      %v7383 = vpop.f32.mrf.mxu0
      %v7384 = vadd.f32 0.0, %v7383
      %7385 = vdwg.mxu0
      %7386 = vmatpush.bf16.msra.mxu0 %v6812
      %7387 = vmatpush.bf16.msra.mxu0 %v6804
      %7388 = vmatpush.bf16.msra.mxu0 %v6796
      %7389 = vmatpush.bf16.msra.mxu0 %v6788
      %7390 = vmatpush.bf16.msra.mxu0 %v6780
      %7391 = vmatpush.bf16.msra.mxu0 %v6772
      %7392 = vmatpush.bf16.msra.mxu0 %v6764
      %7393 = vmatpush.bf16.msra.mxu0 %v6756
      %7394 = vmatmul.bf16.gmra.mxu0 %v5771
      %v7395 = vpop.f32.mrf.mxu0
      %v7396 = vadd.f32 %v7382, %v7395
      %v7397 = vpop.f32.mrf.mxu0
      %v7398 = vadd.f32 %v7384, %v7397
      %7399 = vdwg.mxu0
      %7400 = vmatpush.bf16.msra.mxu0 %v6876
      %7401 = vmatpush.bf16.msra.mxu0 %v6868
      %7402 = vmatpush.bf16.msra.mxu0 %v6860
      %7403 = vmatpush.bf16.msra.mxu0 %v6852
      %7404 = vmatpush.bf16.msra.mxu0 %v6844
      %7405 = vmatpush.bf16.msra.mxu0 %v6836
      %7406 = vmatpush.bf16.msra.mxu0 %v6828
      %7407 = vmatpush.bf16.msra.mxu0 %v6820
      %7408 = vmatmul.bf16.gmra.mxu0 %v5772
      %v7409 = vpop.f32.mrf.mxu0
      %v7410 = vadd.f32 %v7396, %v7409
      %v7411 = vpop.f32.mrf.mxu0
      %v7412 = vadd.f32 %v7398, %v7411
      %7413 = vdwg.mxu0
      %7414 = vmatpush.bf16.msra.mxu0 %v6940
      %7415 = vmatpush.bf16.msra.mxu0 %v6932
      %7416 = vmatpush.bf16.msra.mxu0 %v6924
      %7417 = vmatpush.bf16.msra.mxu0 %v6916
      %7418 = vmatpush.bf16.msra.mxu0 %v6908
      %7419 = vmatpush.bf16.msra.mxu0 %v6900
      %7420 = vmatpush.bf16.msra.mxu0 %v6892
      %7421 = vmatpush.bf16.msra.mxu0 %v6884
      %7422 = vmatmul.bf16.gmra.mxu0 %v5773
      %v7423 = vpop.f32.mrf.mxu0
      %v7424 = vadd.f32 %v7410, %v7423
      %v7425 = vpop.f32.mrf.mxu0
      %v7426 = vadd.f32 %v7412, %v7425
      %7427 = vdwg.mxu0
      %7428 = vmatpush.bf16.msra.mxu0 0
      %7429 = vmatpush.bf16.msra.mxu0 0
      %7430 = vmatpush.bf16.msra.mxu0 %v6988
      %7431 = vmatpush.bf16.msra.mxu0 %v6980
      %7432 = vmatpush.bf16.msra.mxu0 %v6972
      %7433 = vmatpush.bf16.msra.mxu0 %v6964
      %7434 = vmatpush.bf16.msra.mxu0 %v6956
      %7435 = vmatpush.bf16.msra.mxu0 %v6948
      %7436 = vmatmul.bf16.gmra.mxu0 %v7300
      %v7437 = vpop.f32.mrf.mxu0
      %v7438 = vadd.f32 %v7424, %v7437
      %v7439 = vpop.f32.mrf.mxu0
      %v7440 = vadd.f32 %v7426, %v7439
      %7441 = vdwg.mxu0
      %7442 = vmatpush.bf16.msra.mxu0 %v6749
      %7443 = vmatpush.bf16.msra.mxu0 %v6741
      %7444 = vmatpush.bf16.msra.mxu0 %v6733
      %7445 = vmatpush.bf16.msra.mxu0 %v6725
      %7446 = vmatpush.bf16.msra.mxu0 %v6717
      %7447 = vmatpush.bf16.msra.mxu0 %v6709
      %7448 = vmatpush.bf16.msra.mxu0 %v6701
      %7449 = vmatpush.bf16.msra.mxu0 %v6693
      %7450 = vmatmul.bf16.gmra.mxu0 %v5770
      %v7451 = vpop.f32.mrf.mxu0
      %v7452 = vadd.f32 0.0, %v7451
      %v7453 = vpop.f32.mrf.mxu0
      %v7454 = vadd.f32 0.0, %v7453
      %7455 = vdwg.mxu0
      %7456 = vmatpush.bf16.msra.mxu0 %v6813
      %7457 = vmatpush.bf16.msra.mxu0 %v6805
      %7458 = vmatpush.bf16.msra.mxu0 %v6797
      %7459 = vmatpush.bf16.msra.mxu0 %v6789
      %7460 = vmatpush.bf16.msra.mxu0 %v6781
      %7461 = vmatpush.bf16.msra.mxu0 %v6773
      %7462 = vmatpush.bf16.msra.mxu0 %v6765
      %7463 = vmatpush.bf16.msra.mxu0 %v6757
      %7464 = vmatmul.bf16.gmra.mxu0 %v5771
      %v7465 = vpop.f32.mrf.mxu0
      %v7466 = vadd.f32 %v7452, %v7465
      %v7467 = vpop.f32.mrf.mxu0
      %v7468 = vadd.f32 %v7454, %v7467
      %7469 = vdwg.mxu0
      %7470 = vmatpush.bf16.msra.mxu0 %v6877
      %7471 = vmatpush.bf16.msra.mxu0 %v6869
      %7472 = vmatpush.bf16.msra.mxu0 %v6861
      %7473 = vmatpush.bf16.msra.mxu0 %v6853
      %7474 = vmatpush.bf16.msra.mxu0 %v6845
      %7475 = vmatpush.bf16.msra.mxu0 %v6837
      %7476 = vmatpush.bf16.msra.mxu0 %v6829
      %7477 = vmatpush.bf16.msra.mxu0 %v6821
      %7478 = vmatmul.bf16.gmra.mxu0 %v5772
      %v7479 = vpop.f32.mrf.mxu0
      %v7480 = vadd.f32 %v7466, %v7479
      %v7481 = vpop.f32.mrf.mxu0
      %v7482 = vadd.f32 %v7468, %v7481
      %7483 = vdwg.mxu0
      %7484 = vmatpush.bf16.msra.mxu0 %v6941
      %7485 = vmatpush.bf16.msra.mxu0 %v6933
      %7486 = vmatpush.bf16.msra.mxu0 %v6925
      %7487 = vmatpush.bf16.msra.mxu0 %v6917
      %7488 = vmatpush.bf16.msra.mxu0 %v6909
      %7489 = vmatpush.bf16.msra.mxu0 %v6901
      %7490 = vmatpush.bf16.msra.mxu0 %v6893
      %7491 = vmatpush.bf16.msra.mxu0 %v6885
      %7492 = vmatmul.bf16.gmra.mxu0 %v5773
      %v7493 = vpop.f32.mrf.mxu0
      %v7494 = vadd.f32 %v7480, %v7493
      %v7495 = vpop.f32.mrf.mxu0
      %v7496 = vadd.f32 %v7482, %v7495
      %7497 = vdwg.mxu0
      %7498 = vmatpush.bf16.msra.mxu0 0
      %7499 = vmatpush.bf16.msra.mxu0 0
      %7500 = vmatpush.bf16.msra.mxu0 %v6989
      %7501 = vmatpush.bf16.msra.mxu0 %v6981
      %7502 = vmatpush.bf16.msra.mxu0 %v6973
      %7503 = vmatpush.bf16.msra.mxu0 %v6965
      %7504 = vmatpush.bf16.msra.mxu0 %v6957
      %7505 = vmatpush.bf16.msra.mxu0 %v6949
      %7506 = vmatmul.bf16.gmra.mxu0 %v7300
      %v7507 = vpop.f32.mrf.mxu0
      %v7508 = vadd.f32 %v7494, %v7507
      %v7509 = vpop.f32.mrf.mxu0
      %v7510 = vadd.f32 %v7496, %v7509
      %7511 = vdwg.mxu0
      %7512 = vmatpush.bf16.msra.mxu0 %v6750
      %7513 = vmatpush.bf16.msra.mxu0 %v6742
      %7514 = vmatpush.bf16.msra.mxu0 %v6734
      %7515 = vmatpush.bf16.msra.mxu0 %v6726
      %7516 = vmatpush.bf16.msra.mxu0 %v6718
      %7517 = vmatpush.bf16.msra.mxu0 %v6710
      %7518 = vmatpush.bf16.msra.mxu0 %v6702
      %7519 = vmatpush.bf16.msra.mxu0 %v6694
      %7520 = vmatmul.bf16.gmra.mxu0 %v5770
      %v7521 = vpop.f32.mrf.mxu0
      %v7522 = vadd.f32 0.0, %v7521
      %v7523 = vpop.f32.mrf.mxu0
      %v7524 = vadd.f32 0.0, %v7523
      %7525 = vdwg.mxu0
      %7526 = vmatpush.bf16.msra.mxu0 %v6814
      %7527 = vmatpush.bf16.msra.mxu0 %v6806
      %7528 = vmatpush.bf16.msra.mxu0 %v6798
      %7529 = vmatpush.bf16.msra.mxu0 %v6790
      %7530 = vmatpush.bf16.msra.mxu0 %v6782
      %7531 = vmatpush.bf16.msra.mxu0 %v6774
      %7532 = vmatpush.bf16.msra.mxu0 %v6766
      %7533 = vmatpush.bf16.msra.mxu0 %v6758
      %7534 = vmatmul.bf16.gmra.mxu0 %v5771
      %v7535 = vpop.f32.mrf.mxu0
      %v7536 = vadd.f32 %v7522, %v7535
      %v7537 = vpop.f32.mrf.mxu0
      %v7538 = vadd.f32 %v7524, %v7537
      %7539 = vdwg.mxu0
      %7540 = vmatpush.bf16.msra.mxu0 %v6878
      %7541 = vmatpush.bf16.msra.mxu0 %v6870
      %7542 = vmatpush.bf16.msra.mxu0 %v6862
      %7543 = vmatpush.bf16.msra.mxu0 %v6854
      %7544 = vmatpush.bf16.msra.mxu0 %v6846
      %7545 = vmatpush.bf16.msra.mxu0 %v6838
      %7546 = vmatpush.bf16.msra.mxu0 %v6830
      %7547 = vmatpush.bf16.msra.mxu0 %v6822
      %7548 = vmatmul.bf16.gmra.mxu0 %v5772
      %v7549 = vpop.f32.mrf.mxu0
      %v7550 = vadd.f32 %v7536, %v7549
      %v7551 = vpop.f32.mrf.mxu0
      %v7552 = vadd.f32 %v7538, %v7551
      %7553 = vdwg.mxu0
      %7554 = vmatpush.bf16.msra.mxu0 %v6942
      %7555 = vmatpush.bf16.msra.mxu0 %v6934
      %7556 = vmatpush.bf16.msra.mxu0 %v6926
      %7557 = vmatpush.bf16.msra.mxu0 %v6918
      %7558 = vmatpush.bf16.msra.mxu0 %v6910
      %7559 = vmatpush.bf16.msra.mxu0 %v6902
      %7560 = vmatpush.bf16.msra.mxu0 %v6894
      %7561 = vmatpush.bf16.msra.mxu0 %v6886
      %7562 = vmatmul.bf16.gmra.mxu0 %v5773
      %v7563 = vpop.f32.mrf.mxu0
      %v7564 = vadd.f32 %v7550, %v7563
      %v7565 = vpop.f32.mrf.mxu0
      %v7566 = vadd.f32 %v7552, %v7565
      %7567 = vdwg.mxu0
      %7568 = vmatpush.bf16.msra.mxu0 0
      %7569 = vmatpush.bf16.msra.mxu0 0
      %7570 = vmatpush.bf16.msra.mxu0 %v6990
      %7571 = vmatpush.bf16.msra.mxu0 %v6982
      %7572 = vmatpush.bf16.msra.mxu0 %v6974
      %7573 = vmatpush.bf16.msra.mxu0 %v6966
      %7574 = vmatpush.bf16.msra.mxu0 %v6958
      %7575 = vmatpush.bf16.msra.mxu0 %v6950
      %7576 = vmatmul.bf16.gmra.mxu0 %v7300
      %v7577 = vpop.f32.mrf.mxu0
      %v7578 = vadd.f32 %v7564, %v7577
      %v7579 = vpop.f32.mrf.mxu0
      %v7580 = vadd.f32 %v7566, %v7579
      %7581 = vdwg.mxu0
      %7582 = vmatpush.bf16.msra.mxu0 %v6751
      %7583 = vmatpush.bf16.msra.mxu0 %v6743
      %7584 = vmatpush.bf16.msra.mxu0 %v6735
      %7585 = vmatpush.bf16.msra.mxu0 %v6727
      %7586 = vmatpush.bf16.msra.mxu0 %v6719
      %7587 = vmatpush.bf16.msra.mxu0 %v6711
      %7588 = vmatpush.bf16.msra.mxu0 %v6703
      %7589 = vmatpush.bf16.msra.mxu0 %v6695
      %7590 = vmatmul.bf16.gmra.mxu0 %v5770
      %v7591 = vpop.f32.mrf.mxu0
      %v7592 = vadd.f32 0.0, %v7591
      %v7593 = vpop.f32.mrf.mxu0
      %v7594 = vadd.f32 0.0, %v7593
      %7595 = vdwg.mxu0
      %7596 = vmatpush.bf16.msra.mxu0 %v6815
      %7597 = vmatpush.bf16.msra.mxu0 %v6807
      %7598 = vmatpush.bf16.msra.mxu0 %v6799
      %7599 = vmatpush.bf16.msra.mxu0 %v6791
      %7600 = vmatpush.bf16.msra.mxu0 %v6783
      %7601 = vmatpush.bf16.msra.mxu0 %v6775
      %7602 = vmatpush.bf16.msra.mxu0 %v6767
      %7603 = vmatpush.bf16.msra.mxu0 %v6759
      %7604 = vmatmul.bf16.gmra.mxu0 %v5771
      %v7605 = vpop.f32.mrf.mxu0
      %v7606 = vadd.f32 %v7592, %v7605
      %v7607 = vpop.f32.mrf.mxu0
      %v7608 = vadd.f32 %v7594, %v7607
      %7609 = vdwg.mxu0
      %7610 = vmatpush.bf16.msra.mxu0 %v6879
      %7611 = vmatpush.bf16.msra.mxu0 %v6871
      %7612 = vmatpush.bf16.msra.mxu0 %v6863
      %7613 = vmatpush.bf16.msra.mxu0 %v6855
      %7614 = vmatpush.bf16.msra.mxu0 %v6847
      %7615 = vmatpush.bf16.msra.mxu0 %v6839
      %7616 = vmatpush.bf16.msra.mxu0 %v6831
      %7617 = vmatpush.bf16.msra.mxu0 %v6823
      %7618 = vmatmul.bf16.gmra.mxu0 %v5772
      %v7619 = vpop.f32.mrf.mxu0
      %v7620 = vadd.f32 %v7606, %v7619
      %v7621 = vpop.f32.mrf.mxu0
      %v7622 = vadd.f32 %v7608, %v7621
      %7623 = vdwg.mxu0
      %7624 = vmatpush.bf16.msra.mxu0 %v6943
      %7625 = vmatpush.bf16.msra.mxu0 %v6935
      %7626 = vmatpush.bf16.msra.mxu0 %v6927
      %7627 = vmatpush.bf16.msra.mxu0 %v6919
      %7628 = vmatpush.bf16.msra.mxu0 %v6911
      %7629 = vmatpush.bf16.msra.mxu0 %v6903
      %7630 = vmatpush.bf16.msra.mxu0 %v6895
      %7631 = vmatpush.bf16.msra.mxu0 %v6887
      %7632 = vmatmul.bf16.gmra.mxu0 %v5773
      %v7633 = vpop.f32.mrf.mxu0
      %v7634 = vadd.f32 %v7620, %v7633
      %v7635 = vpop.f32.mrf.mxu0
      %v7636 = vadd.f32 %v7622, %v7635
      %7637 = vdwg.mxu0
      %7638 = vmatpush.bf16.msra.mxu0 0
      %7639 = vmatpush.bf16.msra.mxu0 0
      %7640 = vmatpush.bf16.msra.mxu0 %v6991
      %7641 = vmatpush.bf16.msra.mxu0 %v6983
      %7642 = vmatpush.bf16.msra.mxu0 %v6975
      %7643 = vmatpush.bf16.msra.mxu0 %v6967
      %7644 = vmatpush.bf16.msra.mxu0 %v6959
      %7645 = vmatpush.bf16.msra.mxu0 %v6951
      %7646 = vmatmul.bf16.gmra.mxu0 %v7300
      %v7647 = vpop.f32.mrf.mxu0
      %v7648 = vadd.f32 %v7634, %v7647
      %v7649 = vpop.f32.mrf.mxu0
      %v7650 = vadd.f32 %v7636, %v7649
      %7651 = vdwg.mxu0
      %7652 = vmatpush.bf16.msra.mxu0 %v6752
      %7653 = vmatpush.bf16.msra.mxu0 %v6744
      %7654 = vmatpush.bf16.msra.mxu0 %v6736
      %7655 = vmatpush.bf16.msra.mxu0 %v6728
      %7656 = vmatpush.bf16.msra.mxu0 %v6720
      %7657 = vmatpush.bf16.msra.mxu0 %v6712
      %7658 = vmatpush.bf16.msra.mxu0 %v6704
      %7659 = vmatpush.bf16.msra.mxu0 %v6696
      %7660 = vmatmul.bf16.gmra.mxu0 %v5770
      %v7661 = vpop.f32.mrf.mxu0
      %v7662 = vadd.f32 0.0, %v7661
      %v7663 = vpop.f32.mrf.mxu0
      %v7664 = vadd.f32 0.0, %v7663
      %7665 = vdwg.mxu0
      %7666 = vmatpush.bf16.msra.mxu0 %v6816
      %7667 = vmatpush.bf16.msra.mxu0 %v6808
      %7668 = vmatpush.bf16.msra.mxu0 %v6800
      %7669 = vmatpush.bf16.msra.mxu0 %v6792
      %7670 = vmatpush.bf16.msra.mxu0 %v6784
      %7671 = vmatpush.bf16.msra.mxu0 %v6776
      %7672 = vmatpush.bf16.msra.mxu0 %v6768
      %7673 = vmatpush.bf16.msra.mxu0 %v6760
      %7674 = vmatmul.bf16.gmra.mxu0 %v5771
      %v7675 = vpop.f32.mrf.mxu0
      %v7676 = vadd.f32 %v7662, %v7675
      %v7677 = vpop.f32.mrf.mxu0
      %v7678 = vadd.f32 %v7664, %v7677
      %7679 = vdwg.mxu0
      %7680 = vmatpush.bf16.msra.mxu0 %v6880
      %7681 = vmatpush.bf16.msra.mxu0 %v6872
      %7682 = vmatpush.bf16.msra.mxu0 %v6864
      %7683 = vmatpush.bf16.msra.mxu0 %v6856
      %7684 = vmatpush.bf16.msra.mxu0 %v6848
      %7685 = vmatpush.bf16.msra.mxu0 %v6840
      %7686 = vmatpush.bf16.msra.mxu0 %v6832
      %7687 = vmatpush.bf16.msra.mxu0 %v6824
      %7688 = vmatmul.bf16.gmra.mxu0 %v5772
      %v7689 = vpop.f32.mrf.mxu0
      %v7690 = vadd.f32 %v7676, %v7689
      %v7691 = vpop.f32.mrf.mxu0
      %v7692 = vadd.f32 %v7678, %v7691
      %7693 = vdwg.mxu0
      %7694 = vmatpush.bf16.msra.mxu0 %v6944
      %7695 = vmatpush.bf16.msra.mxu0 %v6936
      %7696 = vmatpush.bf16.msra.mxu0 %v6928
      %7697 = vmatpush.bf16.msra.mxu0 %v6920
      %7698 = vmatpush.bf16.msra.mxu0 %v6912
      %7699 = vmatpush.bf16.msra.mxu0 %v6904
      %7700 = vmatpush.bf16.msra.mxu0 %v6896
      %7701 = vmatpush.bf16.msra.mxu0 %v6888
      %7702 = vmatmul.bf16.gmra.mxu0 %v5773
      %v7703 = vpop.f32.mrf.mxu0
      %v7704 = vadd.f32 %v7690, %v7703
      %v7705 = vpop.f32.mrf.mxu0
      %v7706 = vadd.f32 %v7692, %v7705
      %7707 = vdwg.mxu0
      %7708 = vmatpush.bf16.msra.mxu0 0
      %7709 = vmatpush.bf16.msra.mxu0 0
      %7710 = vmatpush.bf16.msra.mxu0 %v6992
      %7711 = vmatpush.bf16.msra.mxu0 %v6984
      %7712 = vmatpush.bf16.msra.mxu0 %v6976
      %7713 = vmatpush.bf16.msra.mxu0 %v6968
      %7714 = vmatpush.bf16.msra.mxu0 %v6960
      %7715 = vmatpush.bf16.msra.mxu0 %v6952
      %7716 = vmatmul.bf16.gmra.mxu0 %v7300
      %v7717 = vpop.f32.mrf.mxu0
      %v7718 = vadd.f32 %v7704, %v7717
      %v7719 = vpop.f32.mrf.mxu0
      %v7720 = vadd.f32 %v7706, %v7719
      %7721 = vdwg.mxu0
      %7722 = vmatpush.bf16.msra.mxu0 %v6753
      %7723 = vmatpush.bf16.msra.mxu0 %v6745
      %7724 = vmatpush.bf16.msra.mxu0 %v6737
      %7725 = vmatpush.bf16.msra.mxu0 %v6729
      %7726 = vmatpush.bf16.msra.mxu0 %v6721
      %7727 = vmatpush.bf16.msra.mxu0 %v6713
      %7728 = vmatpush.bf16.msra.mxu0 %v6705
      %7729 = vmatpush.bf16.msra.mxu0 %v6697
      %7730 = vmatmul.bf16.gmra.mxu0 %v5770
      %v7731 = vpop.f32.mrf.mxu0
      %v7732 = vadd.f32 0.0, %v7731
      %v7733 = vpop.f32.mrf.mxu0
      %v7734 = vadd.f32 0.0, %v7733
      %7735 = vdwg.mxu0
      %7736 = vmatpush.bf16.msra.mxu0 %v6817
      %7737 = vmatpush.bf16.msra.mxu0 %v6809
      %7738 = vmatpush.bf16.msra.mxu0 %v6801
      %7739 = vmatpush.bf16.msra.mxu0 %v6793
      %7740 = vmatpush.bf16.msra.mxu0 %v6785
      %7741 = vmatpush.bf16.msra.mxu0 %v6777
      %7742 = vmatpush.bf16.msra.mxu0 %v6769
      %7743 = vmatpush.bf16.msra.mxu0 %v6761
      %7744 = vmatmul.bf16.gmra.mxu0 %v5771
      %v7745 = vpop.f32.mrf.mxu0
      %v7746 = vadd.f32 %v7732, %v7745
      %v7747 = vpop.f32.mrf.mxu0
      %v7748 = vadd.f32 %v7734, %v7747
      %7749 = vdwg.mxu0
      %7750 = vmatpush.bf16.msra.mxu0 %v6881
      %7751 = vmatpush.bf16.msra.mxu0 %v6873
      %7752 = vmatpush.bf16.msra.mxu0 %v6865
      %7753 = vmatpush.bf16.msra.mxu0 %v6857
      %7754 = vmatpush.bf16.msra.mxu0 %v6849
      %7755 = vmatpush.bf16.msra.mxu0 %v6841
      %7756 = vmatpush.bf16.msra.mxu0 %v6833
      %7757 = vmatpush.bf16.msra.mxu0 %v6825
      %7758 = vmatmul.bf16.gmra.mxu0 %v5772
      %v7759 = vpop.f32.mrf.mxu0
      %v7760 = vadd.f32 %v7746, %v7759
      %v7761 = vpop.f32.mrf.mxu0
      %v7762 = vadd.f32 %v7748, %v7761
      %7763 = vdwg.mxu0
      %7764 = vmatpush.bf16.msra.mxu0 %v6945
      %7765 = vmatpush.bf16.msra.mxu0 %v6937
      %7766 = vmatpush.bf16.msra.mxu0 %v6929
      %7767 = vmatpush.bf16.msra.mxu0 %v6921
      %7768 = vmatpush.bf16.msra.mxu0 %v6913
      %7769 = vmatpush.bf16.msra.mxu0 %v6905
      %7770 = vmatpush.bf16.msra.mxu0 %v6897
      %7771 = vmatpush.bf16.msra.mxu0 %v6889
      %7772 = vmatmul.bf16.gmra.mxu0 %v5773
      %v7773 = vpop.f32.mrf.mxu0
      %v7774 = vadd.f32 %v7760, %v7773
      %v7775 = vpop.f32.mrf.mxu0
      %v7776 = vadd.f32 %v7762, %v7775
      %7777 = vdwg.mxu0
      %7778 = vmatpush.bf16.msra.mxu0 0
      %7779 = vmatpush.bf16.msra.mxu0 0
      %7780 = vmatpush.bf16.msra.mxu0 %v6993
      %7781 = vmatpush.bf16.msra.mxu0 %v6985
      %7782 = vmatpush.bf16.msra.mxu0 %v6977
      %7783 = vmatpush.bf16.msra.mxu0 %v6969
      %7784 = vmatpush.bf16.msra.mxu0 %v6961
      %7785 = vmatpush.bf16.msra.mxu0 %v6953
      %7786 = vmatmul.bf16.gmra.mxu0 %v7300
      %v7787 = vpop.f32.mrf.mxu0
      %v7788 = vadd.f32 %v7774, %v7787
      %v7789 = vpop.f32.mrf.mxu0
      %v7790 = vadd.f32 %v7776, %v7789
      %7791 = vdwg.mxu0
      %7792 = vmatpush.bf16.msra.mxu0 %v6754
      %7793 = vmatpush.bf16.msra.mxu0 %v6746
      %7794 = vmatpush.bf16.msra.mxu0 %v6738
      %7795 = vmatpush.bf16.msra.mxu0 %v6730
      %7796 = vmatpush.bf16.msra.mxu0 %v6722
      %7797 = vmatpush.bf16.msra.mxu0 %v6714
      %7798 = vmatpush.bf16.msra.mxu0 %v6706
      %7799 = vmatpush.bf16.msra.mxu0 %v6698
      %7800 = vmatmul.bf16.gmra.mxu0 %v5770
      %v7801 = vpop.f32.mrf.mxu0
      %v7802 = vadd.f32 0.0, %v7801
      %v7803 = vpop.f32.mrf.mxu0
      %v7804 = vadd.f32 0.0, %v7803
      %7805 = vdwg.mxu0
      %7806 = vmatpush.bf16.msra.mxu0 %v6818
      %7807 = vmatpush.bf16.msra.mxu0 %v6810
      %7808 = vmatpush.bf16.msra.mxu0 %v6802
      %7809 = vmatpush.bf16.msra.mxu0 %v6794
      %7810 = vmatpush.bf16.msra.mxu0 %v6786
      %7811 = vmatpush.bf16.msra.mxu0 %v6778
      %7812 = vmatpush.bf16.msra.mxu0 %v6770
      %7813 = vmatpush.bf16.msra.mxu0 %v6762
      %7814 = vmatmul.bf16.gmra.mxu0 %v5771
      %v7815 = vpop.f32.mrf.mxu0
      %v7816 = vadd.f32 %v7802, %v7815
      %v7817 = vpop.f32.mrf.mxu0
      %v7818 = vadd.f32 %v7804, %v7817
      %7819 = vdwg.mxu0
      %7820 = vmatpush.bf16.msra.mxu0 %v6882
      %7821 = vmatpush.bf16.msra.mxu0 %v6874
      %7822 = vmatpush.bf16.msra.mxu0 %v6866
      %7823 = vmatpush.bf16.msra.mxu0 %v6858
      %7824 = vmatpush.bf16.msra.mxu0 %v6850
      %7825 = vmatpush.bf16.msra.mxu0 %v6842
      %7826 = vmatpush.bf16.msra.mxu0 %v6834
      %7827 = vmatpush.bf16.msra.mxu0 %v6826
      %7828 = vmatmul.bf16.gmra.mxu0 %v5772
      %v7829 = vpop.f32.mrf.mxu0
      %v7830 = vadd.f32 %v7816, %v7829
      %v7831 = vpop.f32.mrf.mxu0
      %v7832 = vadd.f32 %v7818, %v7831
      %7833 = vdwg.mxu0
      %7834 = vmatpush.bf16.msra.mxu0 %v6946
      %7835 = vmatpush.bf16.msra.mxu0 %v6938
      %7836 = vmatpush.bf16.msra.mxu0 %v6930
      %7837 = vmatpush.bf16.msra.mxu0 %v6922
      %7838 = vmatpush.bf16.msra.mxu0 %v6914
      %7839 = vmatpush.bf16.msra.mxu0 %v6906
      %7840 = vmatpush.bf16.msra.mxu0 %v6898
      %7841 = vmatpush.bf16.msra.mxu0 %v6890
      %7842 = vmatmul.bf16.gmra.mxu0 %v5773
      %v7843 = vpop.f32.mrf.mxu0
      %v7844 = vadd.f32 %v7830, %v7843
      %v7845 = vpop.f32.mrf.mxu0
      %v7846 = vadd.f32 %v7832, %v7845
      %7847 = vdwg.mxu0
      %7848 = vmatpush.bf16.msra.mxu0 0
      %7849 = vmatpush.bf16.msra.mxu0 0
      %7850 = vmatpush.bf16.msra.mxu0 %v6994
      %7851 = vmatpush.bf16.msra.mxu0 %v6986
      %7852 = vmatpush.bf16.msra.mxu0 %v6978
      %7853 = vmatpush.bf16.msra.mxu0 %v6970
      %7854 = vmatpush.bf16.msra.mxu0 %v6962
      %7855 = vmatpush.bf16.msra.mxu0 %v6954
      %7856 = vmatmul.bf16.gmra.mxu0 %v7300
      %v7857 = vpop.f32.mrf.mxu0
      %v7858 = vadd.f32 %v7844, %v7857
      %v7859 = vpop.f32.mrf.mxu0
      %v7860 = vadd.f32 %v7846, %v7859
      %7861 = vdwg.mxu0
      %v7862 = vadd.f32 %v4971, %v7368
      %v7863 = vadd.f32 %v5041, %v7438
      %v7864 = vadd.f32 %v5111, %v7508
      %v7865 = vadd.f32 %v5181, %v7578
      %v7866 = vadd.f32 %v5251, %v7648
      %v7867 = vadd.f32 %v5321, %v7718
      %v7868 = vadd.f32 %v5391, %v7788
      %v7869 = vadd.f32 %v5461, %v7858
      %v7870 = vadd.f32 %v4973, %v7370
      %v7871 = vadd.f32 %v5043, %v7440
      %v7872 = vadd.f32 %v5113, %v7510
      %v7873 = vadd.f32 %v5183, %v7580
      %v7874 = vadd.f32 %v5253, %v7650
      %v7875 = vadd.f32 %v5323, %v7720
      %v7876 = vadd.f32 %v5393, %v7790
      %v7877 = vadd.f32 %v5463, %v7860
      %v7878 = vmax.f32 %v7862, 0.0
      %v7879 = vmax.f32 %v7863, 0.0
      %v7880 = vmax.f32 %v7864, 0.0
      %v7881 = vmax.f32 %v7865, 0.0
      %v7882 = vmax.f32 %v7866, 0.0
      %v7883 = vmax.f32 %v7867, 0.0
      %v7884 = vmax.f32 %v7868, 0.0
      %v7885 = vmax.f32 %v7869, 0.0
      %v7886 = vmax.f32 %v7870, 0.0
      %v7887 = vmax.f32 %v7871, 0.0
      %v7888 = vmax.f32 %v7872, 0.0
      %v7889 = vmax.f32 %v7873, 0.0
      %v7890 = vmax.f32 %v7874, 0.0
      %v7891 = vmax.f32 %v7875, 0.0
      %v7892 = vmax.f32 %v7876, 0.0
      %v7893 = vmax.f32 %v7877, 0.0
      %7894 = vst [vmem:[%s170] sm:$0xff] %v7878
      %7895 = vst [vmem:[%s170 + $0x8] sm:$0xff] %v7879
      %7896 = vst [vmem:[%s170 + $0x10] sm:$0xff] %v7880
      %7897 = vst [vmem:[%s170 + $0x18] sm:$0xff] %v7881
      %7898 = vst [vmem:[%s170 + $0x20] sm:$0xff] %v7882
      %7899 = vst [vmem:[%s170 + $0x28] sm:$0xff] %v7883
      %7900 = vst [vmem:[%s170 + $0x30] sm:$0xff] %v7884
      %vm7901 = vcmask 523264
      %7902 = vst.msk [vmem:[%s170 + $0x38] sm:$0xff] %vm7901, %v7885
      %7903 = vst [vmem:[%s170 + $0x40] sm:$0xf] %v7886
      %7904 = vst [vmem:[%s170 + $0x48] sm:$0xf] %v7887
      %7905 = vst [vmem:[%s170 + $0x50] sm:$0xf] %v7888
      %7906 = vst [vmem:[%s170 + $0x58] sm:$0xf] %v7889
      %7907 = vst [vmem:[%s170 + $0x60] sm:$0xf] %v7890
      %7908 = vst [vmem:[%s170 + $0x68] sm:$0xf] %v7891
      %7909 = vst [vmem:[%s170 + $0x70] sm:$0xf] %v7892
      %vm7910 = vcmask 519168
      %7911 = vst.msk [vmem:[%s170 + $0x78] sm:$0xf] %vm7910, %v7893
      %p7912 = scmp.lt.s32.totalorder %s14, 1
      %s7913 = scalar_select %p7912, %s14, 1
      %s7914 = smul.addr %s7913, 16
      %s7915 = smul.addr %s7914, 8
      %s7916 = scalar_lea.vmem %s3, %s7915
      // Predicated region
      $region33: #{tpu_custom_call.1} parent=31 // pred_check
        %p7917 = pneg %p100
      $region34: #{tpu_custom_call.1} parent=31 // pred_check_branch
        %7919 = sbr.rel (%p7917) target = $region36
      $region35: #{tpu_custom_call.1} parent=31 // pred_region
        _
      $region36: #{tpu_custom_call.1} parent=31 // pred_fallthru
        _
    $region32: #{tpu_custom_call.1} parent=5 // pred_fallthru
      _
    %p7920 = scmp.le.s32.totalorder 2, %s9
    // Predicated region
    $region37: #{tpu_custom_call.1} parent=5 // pred_check
      %p7921 = pneg %p7920
    $region38: #{tpu_custom_call.1} parent=5 // pred_check_branch
      %7923 = sbr.rel (%p7921) target = $region40
    $region39: #{tpu_custom_call.1} parent=5 // pred_region
      %s7924 = ssub.s32 %s9, 2
      // Predicated region
      $region41: #{tpu_custom_call.1} parent=39 // pred_check
        %p7925 = pneg %p106
      $region42: #{tpu_custom_call.1} parent=39 // pred_check_branch
        %7927 = sbr.rel (%p7925) target = $region44
      $region43: #{tpu_custom_call.1} parent=39 // pred_region
        %p7928 = scmp.lt.s32.totalorder %s15, 1
        %s7929 = scalar_select %p7928, %s15, 1
        %s7930 = smul.addr %s7929, 16
        %s7931 = smul.addr %s7930, 8
        %s7932 = scalar_lea.vmem %s3, %s7931
      $region44: #{tpu_custom_call.1} parent=39 // pred_fallthru
        _
    $region40: #{tpu_custom_call.1} parent=5 // pred_fallthru
      _
  $region6: #{tpu_custom_call.1} parent=0 // loop_footer
    %s13 = sadd.s32 1, %s9
  $region7: #{tpu_custom_call.1} parent=0 // loop_footer_branch
    %8 = sbr.rel target = $region3
  $region8: #{tpu_custom_call.1} parent=0 // loop_exit
    _

</llo_original>
